<compile_context>
chip_gen: v6e
topology: v6e:2x2x1
jax: 0.10.0
libtpu: 0.0.40
codegen_flags: <defaults>
</compile_context>

<pallas_src>
import functools

import numpy as np
import jax
import jax.numpy as jnp
from jax import lax
from jax.experimental import pallas as pl
from jax.experimental.pallas import tpu as pltpu

_INV_SQRT2 = 0.7071067811865476


# ----------------------------- fused Pallas kernel ------------------------------------

def _encoder_kernel(*refs, use_bf16=False):
    """refs = (x2d, A_1, R_1, b_1, ..., A_6, R_6, b_6, out).

    x2d : int32 [B*H, W*Cin] raw pixel values (0..15) in NHWC-row-major 2-D layout.
    Layer i is computed as  X <- act( sum_t (A_i[t] @ X) @ R_i[t] + b_i )  with GELU
    for the 5 conv layers and identity for the final FC layer.
    """
    x_ref = refs[0]
    out_ref = refs[-1]
    layer_refs = refs[1:-1]
    n_layers = len(layer_refs) // 3

    def mm(a, b):
        if use_bf16:
            a = a.astype(jnp.bfloat16)
            b = b.astype(jnp.bfloat16)
        return jnp.dot(a, b, preferred_element_type=jnp.float32)

    # Input normalization (x.float() / 15 * 2 - 1), fused into the kernel (VPU, free).
    x = x_ref[...].astype(jnp.float32) / 15.0 * 2.0 - 1.0

    for i in range(n_layers):
        a_ref = layer_refs[3 * i]       # [T, rows_out, rows_in]
        r_ref = layer_refs[3 * i + 1]   # [T, cols_in, cols_out]
        b_ref = layer_refs[3 * i + 2]   # [1, cols_out]
        acc = None
        for t in range(a_ref.shape[0]):            # 3 taps for convs, 4 for the FC
            y = mm(mm(a_ref[t], x), r_ref[t])
            acc = y if acc is None else acc + y
        acc = acc + b_ref[...]
        if i < n_layers - 1:                        # GELU after every conv, not after FC
            acc = 0.5 * acc * (1.0 + lax.erf(acc * _INV_SQRT2))   # exact (erf) GELU, f32
        x = acc

    out_ref[...] = x.astype(out_ref.dtype)


# ----------------------------- parameters ----------------------------------------------

def init_params(key, num_input_channels=1, num_filters=8, z_dim=10):
    """PyTorch-default-style uniform init, PyTorch layouts (OIHW conv, [out,in] fc)."""
    ks = jax.random.split(key, 12)

    def conv_wb(kw, kb, cout, cin):
        bound = 1.0 / float(np.sqrt(cin * 9))
        w = jax.random.uniform(kw, (cout, cin, 3, 3), jnp.float32, -bound, bound)
        b = jax.random.uniform(kb, (cout,), jnp.float32, -bound, bound)
        return w, b

    nf = num_filters
    params = {
        "conv1": (*conv_wb(ks[0], ks[1], nf, num_input_channels), 2),
        "conv2": (*conv_wb(ks[2], ks[3], nf, nf), 1),
        "conv3": (*conv_wb(ks[4], ks[5], 2 * nf, nf), 2),
        "conv4": (*conv_wb(ks[6], ks[7], 2 * nf, 2 * nf), 1),
        "conv5": (*conv_wb(ks[8], ks[9], 2 * nf, 2 * nf), 2),
    }
    feat = 2 * nf * 4 * 4
    bound = 1.0 / float(np.sqrt(feat))
    params["fc_w"] = jax.random.uniform(ks[10], (z_dim, feat), jnp.float32, -bound, bound)
    params["fc_b"] = jax.random.uniform(ks[11], (z_dim,), jnp.float32, -bound, bound)
    return params


def prepare_encoder_params(params, batch_size, height, width):
    """Fold conv weights/stride/padding, bias tiling, the NCHW flatten permutation and
    the FC weights into the constant (A, R, bias_row) matrices consumed by the fused
    kernel.  Runs ONCE on the host (numpy) — zero per-call cost."""
    B, Hin, Win = batch_size, height, width
    mats = []
    Cin = int(np.asarray(params["conv1"][0]).shape[1])

    for name in ("conv1", "conv2", "conv3", "conv4", "conv5"):
        w, b, stride = params[name]
        w = np.asarray(w, dtype=np.float32)          # [Cout, Cin, 3, 3]
        b = np.asarray(b, dtype=np.float32)
        Cout = w.shape[0]
        assert w.shape[1] == Cin
        Hout = (Hin + 2 - 3) // stride + 1
        Wout = (Win + 2 - 3) // stride + 1

        # Row selection per kernel-row tap ky (handles stride + zero padding).
        A = np.zeros((3, B * Hout, B * Hin), np.float32)
        for ky in range(3):
            for bb in range(B):
                for ho in range(Hout):
                    hi = stride * ho + ky - 1
                    if 0 <= hi < Hin:
                        A[ky, bb * Hout + ho, bb * Hin + hi] = 1.0

        # Column mixing per ky: folds the 3 kx taps + Cin->Cout channel mixing.
        R = np.zeros((3, Win * Cin, Wout * Cout), np.float32)
        for ky in range(3):
            for wo in range(Wout):
                for kx in range(3):
                    wi = stride * wo + kx - 1
                    if 0 <= wi < Win:
                        R[ky, wi * Cin:(wi + 1) * Cin,
                              wo * Cout:(wo + 1) * Cout] = w[:, :, ky, kx].T

        bias_row = np.tile(b, Wout).reshape(1, Wout * Cout).astype(np.float32)
        mats += [A, R, bias_row]
        Hin, Win, Cin = Hout, Wout, Cout

    # Final Linear with PyTorch's NCHW flatten order folded into G (4 "row taps" = h).
    fc_w = np.asarray(params["fc_w"], np.float32)    # [z, Cf*Hf*Wf], NCHW flatten order
    fc_b = np.asarray(params["fc_b"], np.float32)
    z = fc_w.shape[0]
    assert fc_w.shape[1] == Cin * Hin * Win
    fw4 = fc_w.reshape(z, Cin, Hin, Win)             # [z, c, h, w]

    S = np.zeros((Hin, B, B * Hin), np.float32)
    for h in range(Hin):
        for bb in range(B):
            S[h, bb, bb * Hin + h] = 1.0
    G = np.zeros((Hin, Win * Cin, z), np.float32)
    for h in range(Hin):
        # G[h, w*Cin + c, :] = fc_w[:, c*Hf*Wf + h*Wf + w]
        G[h] = np.transpose(fw4[:, :, h, :], (2, 1, 0)).reshape(Win * Cin, z)
    fc_bias_row = fc_b.reshape(1, z).astype(np.float32)
    mats += [S, G, fc_bias_row]

    return tuple(jnp.asarray(m) for m in mats)


# ----------------------------- forward --------------------------------------------------

@functools.partial(jax.jit, static_argnames=("use_bf16",))
def cnn_encoder_forward(mats, x, use_bf16=False):
    """x: integer image batch [B, C, H, W] with values in [0, 15].  Returns (mean, log_std)."""
    B, C, H, W = x.shape
    z = mats[-1].shape[-1]
    # NCHW -> [B*H, W*C] row-major layout expected by the kernel (a no-op copy for C==1).
    x2d = jnp.transpose(x, (0, 2, 3, 1)).reshape(B * H, W * C).astype(jnp.int32)
    out = pl.pallas_call(
        functools.partial(_encoder_kernel, use_bf16=use_bf16),
        out_shape=jax.ShapeDtypeStruct((B, z), jnp.float32),
        # empty grid + whole-array (VMEM-resident) blocks: one fused invocation
        compiler_params=pltpu.CompilerParams(vmem_limit_bytes=32 * 1024 * 1024),
    )(x2d, *mats)
    # The PyTorch module applies the same fc_out twice -> mean and log_std are identical.
    return out, out


# ----------------------------- pure-XLA reference (for validation) ----------------------

def reference_forward(params, x):
    act = x.astype(jnp.float32) / 15.0 * 2.0 - 1.0          # NCHW
    for name in ("conv1", "conv2", "conv3", "conv4", "conv5"):
        w, b, s = params[name]
        act = lax.conv_general_dilated(
            act, w, window_strides=(s, s), padding=((1, 1), (1, 1)),
            dimension_numbers=("NCHW", "OIHW", "NCHW"),
            precision=lax.Precision.HIGHEST)
        act = act + b[None, :, None, None]
        act = jax.nn.gelu(act, approximate=False)
    feat = act.reshape(act.shape[0], -1)                     # nn.Flatten on NCHW
    out = jnp.dot(feat, params["fc_w"].T, precision=lax.Precision.HIGHEST) + params["fc_b"]
    return out, out


# ----------------------------- test harness ---------------------------------------------

if __name__ == "__main__":
    key = jax.random.PRNGKey(0)
    kp, kx = jax.random.split(key)

    num_input_channels, num_filters, z_dim = 1, 8, 10
    B, H, W = 2, 32, 32   # 32 -> 16 -> 16 -> 8 -> 8 -> 4, matching fc_in = 2*nf*4*4

    params = init_params(kp, num_input_channels, num_filters, z_dim)
    mats = prepare_encoder_params(params, B, H, W)

    x = jax.random.randint(kx, (B, num_input_channels, H, W), 0, 16, dtype=jnp.int32)

    mean, log_std = cnn_encoder_forward(mats, x)
    jax.block_until_ready((mean, log_std))

    assert mean.shape == (B, z_dim) and log_std.shape == (B, z_dim)
    assert mean.dtype == jnp.float32 and log_std.dtype == jnp.float32

    # Sanity check the fused kernel against a pure-XLA implementation of the module.
    ref_mean, _ = reference_forward(params, x)
    np.testing.assert_allclose(np.asarray(mean), np.asarray(ref_mean),
                               rtol=2e-2, atol=2e-3)

    print("KERNEL_OK")
</pallas_src>

<mosaic_0001>
module attributes {stable_mosaic.version = 11 : i64} {
  func.func @_encoder_kernel(%arg0: memref<64x32xi32, #tpu.memory_space<vmem>>, %arg1: memref<3x32x64xf32, #tpu.memory_space<vmem>>, %arg2: memref<3x32x128xf32, #tpu.memory_space<vmem>>, %arg3: memref<1x128xf32, #tpu.memory_space<vmem>>, %arg4: memref<3x32x32xf32, #tpu.memory_space<vmem>>, %arg5: memref<3x128x128xf32, #tpu.memory_space<vmem>>, %arg6: memref<1x128xf32, #tpu.memory_space<vmem>>, %arg7: memref<3x16x32xf32, #tpu.memory_space<vmem>>, %arg8: memref<3x128x128xf32, #tpu.memory_space<vmem>>, %arg9: memref<1x128xf32, #tpu.memory_space<vmem>>, %arg10: memref<3x16x16xf32, #tpu.memory_space<vmem>>, %arg11: memref<3x128x128xf32, #tpu.memory_space<vmem>>, %arg12: memref<1x128xf32, #tpu.memory_space<vmem>>, %arg13: memref<3x8x16xf32, #tpu.memory_space<vmem>>, %arg14: memref<3x128x64xf32, #tpu.memory_space<vmem>>, %arg15: memref<1x64xf32, #tpu.memory_space<vmem>>, %arg16: memref<4x2x8xf32, #tpu.memory_space<vmem>>, %arg17: memref<4x64x10xf32, #tpu.memory_space<vmem>>, %arg18: memref<1x10xf32, #tpu.memory_space<vmem>>, %arg19: memref<2x10xf32, #tpu.memory_space<vmem>>) attributes {dimension_semantics = [], scalar_prefetch = 0 : i64, scratch_operands = 0 : i64, tpu.core_type = #tpu.core_type<tc>} {
    %c0 = arith.constant 0 : index
    %c0_0 = arith.constant 0 : index
    %0 = vector.load %arg0[%c0, %c0_0] : memref<64x32xi32, #tpu.memory_space<vmem>>, vector<64x32xi32>
    %1 = arith.sitofp %0 : vector<64x32xi32> to vector<64x32xf32>
    %cst = arith.constant 1.500000e+01 : f32
    %2 = vector.broadcast %cst : f32 to vector<64x32xf32>
    %3 = arith.divf %1, %2 : vector<64x32xf32>
    %cst_1 = arith.constant 2.000000e+00 : f32
    %4 = vector.broadcast %cst_1 : f32 to vector<64x32xf32>
    %5 = arith.mulf %3, %4 : vector<64x32xf32>
    %cst_2 = arith.constant 1.000000e+00 : f32
    %6 = vector.broadcast %cst_2 : f32 to vector<64x32xf32>
    %7 = arith.subf %5, %6 : vector<64x32xf32>
    %c0_3 = arith.constant 0 : index
    %c0_4 = arith.constant 0 : index
    %c0_5 = arith.constant 0 : index
    %8 = vector.load %arg1[%c0_3, %c0_4, %c0_5] : memref<3x32x64xf32, #tpu.memory_space<vmem>>, vector<1x32x64xf32>
    %9 = vector.shape_cast %8 : vector<1x32x64xf32> to vector<32x64xf32>
    %cst_6 = arith.constant dense<0.000000e+00> : vector<32x32xf32>
    %10 = tpu.matmul %9, %7, %cst_6 {dimension_numbers = #tpu.dot_dimension_numbers<[1], [0], [0], [1], [0, 0, 1, 1], [], []>} : vector<32x64xf32>, vector<64x32xf32>, vector<32x32xf32> -> vector<32x32xf32>
    %c0_7 = arith.constant 0 : index
    %c0_8 = arith.constant 0 : index
    %c0_9 = arith.constant 0 : index
    %11 = vector.load %arg2[%c0_7, %c0_8, %c0_9] : memref<3x32x128xf32, #tpu.memory_space<vmem>>, vector<1x32x128xf32>
    %12 = vector.shape_cast %11 : vector<1x32x128xf32> to vector<32x128xf32>
    %cst_10 = arith.constant dense<0.000000e+00> : vector<32x128xf32>
    %13 = tpu.matmul %10, %12, %cst_10 {dimension_numbers = #tpu.dot_dimension_numbers<[1], [0], [0], [1], [0, 0, 1, 1], [], []>} : vector<32x32xf32>, vector<32x128xf32>, vector<32x128xf32> -> vector<32x128xf32>
    %c1 = arith.constant 1 : index
    %c0_11 = arith.constant 0 : index
    %c0_12 = arith.constant 0 : index
    %14 = vector.load %arg1[%c1, %c0_11, %c0_12] : memref<3x32x64xf32, #tpu.memory_space<vmem>>, vector<1x32x64xf32>
    %15 = vector.shape_cast %14 : vector<1x32x64xf32> to vector<32x64xf32>
    %cst_13 = arith.constant dense<0.000000e+00> : vector<32x32xf32>
    %16 = tpu.matmul %15, %7, %cst_13 {dimension_numbers = #tpu.dot_dimension_numbers<[1], [0], [0], [1], [0, 0, 1, 1], [], []>} : vector<32x64xf32>, vector<64x32xf32>, vector<32x32xf32> -> vector<32x32xf32>
    %c1_14 = arith.constant 1 : index
    %c0_15 = arith.constant 0 : index
    %c0_16 = arith.constant 0 : index
    %17 = vector.load %arg2[%c1_14, %c0_15, %c0_16] : memref<3x32x128xf32, #tpu.memory_space<vmem>>, vector<1x32x128xf32>
    %18 = vector.shape_cast %17 : vector<1x32x128xf32> to vector<32x128xf32>
    %cst_17 = arith.constant dense<0.000000e+00> : vector<32x128xf32>
    %19 = tpu.matmul %16, %18, %cst_17 {dimension_numbers = #tpu.dot_dimension_numbers<[1], [0], [0], [1], [0, 0, 1, 1], [], []>} : vector<32x32xf32>, vector<32x128xf32>, vector<32x128xf32> -> vector<32x128xf32>
    %20 = arith.addf %13, %19 : vector<32x128xf32>
    %c2 = arith.constant 2 : index
    %c0_18 = arith.constant 0 : index
    %c0_19 = arith.constant 0 : index
    %21 = vector.load %arg1[%c2, %c0_18, %c0_19] : memref<3x32x64xf32, #tpu.memory_space<vmem>>, vector<1x32x64xf32>
    %22 = vector.shape_cast %21 : vector<1x32x64xf32> to vector<32x64xf32>
    %cst_20 = arith.constant dense<0.000000e+00> : vector<32x32xf32>
    %23 = tpu.matmul %22, %7, %cst_20 {dimension_numbers = #tpu.dot_dimension_numbers<[1], [0], [0], [1], [0, 0, 1, 1], [], []>} : vector<32x64xf32>, vector<64x32xf32>, vector<32x32xf32> -> vector<32x32xf32>
    %c2_21 = arith.constant 2 : index
    %c0_22 = arith.constant 0 : index
    %c0_23 = arith.constant 0 : index
    %24 = vector.load %arg2[%c2_21, %c0_22, %c0_23] : memref<3x32x128xf32, #tpu.memory_space<vmem>>, vector<1x32x128xf32>
    %25 = vector.shape_cast %24 : vector<1x32x128xf32> to vector<32x128xf32>
    %cst_24 = arith.constant dense<0.000000e+00> : vector<32x128xf32>
    %26 = tpu.matmul %23, %25, %cst_24 {dimension_numbers = #tpu.dot_dimension_numbers<[1], [0], [0], [1], [0, 0, 1, 1], [], []>} : vector<32x32xf32>, vector<32x128xf32>, vector<32x128xf32> -> vector<32x128xf32>
    %27 = arith.addf %20, %26 : vector<32x128xf32>
    %c0_25 = arith.constant 0 : index
    %c0_26 = arith.constant 0 : index
    %28 = vector.load %arg3[%c0_25, %c0_26] : memref<1x128xf32, #tpu.memory_space<vmem>>, vector<1x128xf32>
    %29 = vector.broadcast %28 : vector<1x128xf32> to vector<32x128xf32>
    %30 = arith.addf %27, %29 : vector<32x128xf32>
    %cst_27 = arith.constant 5.000000e-01 : f32
    %31 = vector.broadcast %cst_27 : f32 to vector<32x128xf32>
    %32 = arith.mulf %31, %30 : vector<32x128xf32>
    %cst_28 = arith.constant 0.707106769 : f32
    %33 = vector.broadcast %cst_28 : f32 to vector<32x128xf32>
    %34 = arith.mulf %30, %33 : vector<32x128xf32>
    %35 = math.erf %34 : vector<32x128xf32>
    %cst_29 = arith.constant 1.000000e+00 : f32
    %36 = vector.broadcast %cst_29 : f32 to vector<32x128xf32>
    %37 = arith.addf %36, %35 : vector<32x128xf32>
    %38 = arith.mulf %32, %37 : vector<32x128xf32>
    %c0_30 = arith.constant 0 : index
    %c0_31 = arith.constant 0 : index
    %c0_32 = arith.constant 0 : index
    %39 = vector.load %arg4[%c0_30, %c0_31, %c0_32] : memref<3x32x32xf32, #tpu.memory_space<vmem>>, vector<1x32x32xf32>
    %40 = vector.shape_cast %39 : vector<1x32x32xf32> to vector<32x32xf32>
    %cst_33 = arith.constant dense<0.000000e+00> : vector<32x128xf32>
    %41 = tpu.matmul %40, %38, %cst_33 {dimension_numbers = #tpu.dot_dimension_numbers<[1], [0], [0], [1], [0, 0, 1, 1], [], []>} : vector<32x32xf32>, vector<32x128xf32>, vector<32x128xf32> -> vector<32x128xf32>
    %c0_34 = arith.constant 0 : index
    %c0_35 = arith.constant 0 : index
    %c0_36 = arith.constant 0 : index
    %42 = vector.load %arg5[%c0_34, %c0_35, %c0_36] : memref<3x128x128xf32, #tpu.memory_space<vmem>>, vector<1x128x128xf32>
    %43 = vector.shape_cast %42 : vector<1x128x128xf32> to vector<128x128xf32>
    %cst_37 = arith.constant dense<0.000000e+00> : vector<32x128xf32>
    %44 = tpu.matmul %41, %43, %cst_37 {dimension_numbers = #tpu.dot_dimension_numbers<[1], [0], [0], [1], [0, 0, 1, 1], [], []>} : vector<32x128xf32>, vector<128x128xf32>, vector<32x128xf32> -> vector<32x128xf32>
    %c1_38 = arith.constant 1 : index
    %c0_39 = arith.constant 0 : index
    %c0_40 = arith.constant 0 : index
    %45 = vector.load %arg4[%c1_38, %c0_39, %c0_40] : memref<3x32x32xf32, #tpu.memory_space<vmem>>, vector<1x32x32xf32>
    %46 = vector.shape_cast %45 : vector<1x32x32xf32> to vector<32x32xf32>
    %cst_41 = arith.constant dense<0.000000e+00> : vector<32x128xf32>
    %47 = tpu.matmul %46, %38, %cst_41 {dimension_numbers = #tpu.dot_dimension_numbers<[1], [0], [0], [1], [0, 0, 1, 1], [], []>} : vector<32x32xf32>, vector<32x128xf32>, vector<32x128xf32> -> vector<32x128xf32>
    %c1_42 = arith.constant 1 : index
    %c0_43 = arith.constant 0 : index
    %c0_44 = arith.constant 0 : index
    %48 = vector.load %arg5[%c1_42, %c0_43, %c0_44] : memref<3x128x128xf32, #tpu.memory_space<vmem>>, vector<1x128x128xf32>
    %49 = vector.shape_cast %48 : vector<1x128x128xf32> to vector<128x128xf32>
    %cst_45 = arith.constant dense<0.000000e+00> : vector<32x128xf32>
    %50 = tpu.matmul %47, %49, %cst_45 {dimension_numbers = #tpu.dot_dimension_numbers<[1], [0], [0], [1], [0, 0, 1, 1], [], []>} : vector<32x128xf32>, vector<128x128xf32>, vector<32x128xf32> -> vector<32x128xf32>
    %51 = arith.addf %44, %50 : vector<32x128xf32>
    %c2_46 = arith.constant 2 : index
    %c0_47 = arith.constant 0 : index
    %c0_48 = arith.constant 0 : index
    %52 = vector.load %arg4[%c2_46, %c0_47, %c0_48] : memref<3x32x32xf32, #tpu.memory_space<vmem>>, vector<1x32x32xf32>
    %53 = vector.shape_cast %52 : vector<1x32x32xf32> to vector<32x32xf32>
    %cst_49 = arith.constant dense<0.000000e+00> : vector<32x128xf32>
    %54 = tpu.matmul %53, %38, %cst_49 {dimension_numbers = #tpu.dot_dimension_numbers<[1], [0], [0], [1], [0, 0, 1, 1], [], []>} : vector<32x32xf32>, vector<32x128xf32>, vector<32x128xf32> -> vector<32x128xf32>
    %c2_50 = arith.constant 2 : index
    %c0_51 = arith.constant 0 : index
    %c0_52 = arith.constant 0 : index
    %55 = vector.load %arg5[%c2_50, %c0_51, %c0_52] : memref<3x128x128xf32, #tpu.memory_space<vmem>>, vector<1x128x128xf32>
    %56 = vector.shape_cast %55 : vector<1x128x128xf32> to vector<128x128xf32>
    %cst_53 = arith.constant dense<0.000000e+00> : vector<32x128xf32>
    %57 = tpu.matmul %54, %56, %cst_53 {dimension_numbers = #tpu.dot_dimension_numbers<[1], [0], [0], [1], [0, 0, 1, 1], [], []>} : vector<32x128xf32>, vector<128x128xf32>, vector<32x128xf32> -> vector<32x128xf32>
    %58 = arith.addf %51, %57 : vector<32x128xf32>
    %c0_54 = arith.constant 0 : index
    %c0_55 = arith.constant 0 : index
    %59 = vector.load %arg6[%c0_54, %c0_55] : memref<1x128xf32, #tpu.memory_space<vmem>>, vector<1x128xf32>
    %60 = vector.broadcast %59 : vector<1x128xf32> to vector<32x128xf32>
    %61 = arith.addf %58, %60 : vector<32x128xf32>
    %cst_56 = arith.constant 5.000000e-01 : f32
    %62 = vector.broadcast %cst_56 : f32 to vector<32x128xf32>
    %63 = arith.mulf %62, %61 : vector<32x128xf32>
    %cst_57 = arith.constant 0.707106769 : f32
    %64 = vector.broadcast %cst_57 : f32 to vector<32x128xf32>
    %65 = arith.mulf %61, %64 : vector<32x128xf32>
    %66 = math.erf %65 : vector<32x128xf32>
    %cst_58 = arith.constant 1.000000e+00 : f32
    %67 = vector.broadcast %cst_58 : f32 to vector<32x128xf32>
    %68 = arith.addf %67, %66 : vector<32x128xf32>
    %69 = arith.mulf %63, %68 : vector<32x128xf32>
    %c0_59 = arith.constant 0 : index
    %c0_60 = arith.constant 0 : index
    %c0_61 = arith.constant 0 : index
    %70 = vector.load %arg7[%c0_59, %c0_60, %c0_61] : memref<3x16x32xf32, #tpu.memory_space<vmem>>, vector<1x16x32xf32>
    %71 = vector.shape_cast %70 : vector<1x16x32xf32> to vector<16x32xf32>
    %cst_62 = arith.constant dense<0.000000e+00> : vector<16x128xf32>
    %72 = tpu.matmul %71, %69, %cst_62 {dimension_numbers = #tpu.dot_dimension_numbers<[1], [0], [0], [1], [0, 0, 1, 1], [], []>} : vector<16x32xf32>, vector<32x128xf32>, vector<16x128xf32> -> vector<16x128xf32>
    %c0_63 = arith.constant 0 : index
    %c0_64 = arith.constant 0 : index
    %c0_65 = arith.constant 0 : index
    %73 = vector.load %arg8[%c0_63, %c0_64, %c0_65] : memref<3x128x128xf32, #tpu.memory_space<vmem>>, vector<1x128x128xf32>
    %74 = vector.shape_cast %73 : vector<1x128x128xf32> to vector<128x128xf32>
    %cst_66 = arith.constant dense<0.000000e+00> : vector<16x128xf32>
    %75 = tpu.matmul %72, %74, %cst_66 {dimension_numbers = #tpu.dot_dimension_numbers<[1], [0], [0], [1], [0, 0, 1, 1], [], []>} : vector<16x128xf32>, vector<128x128xf32>, vector<16x128xf32> -> vector<16x128xf32>
    %c1_67 = arith.constant 1 : index
    %c0_68 = arith.constant 0 : index
    %c0_69 = arith.constant 0 : index
    %76 = vector.load %arg7[%c1_67, %c0_68, %c0_69] : memref<3x16x32xf32, #tpu.memory_space<vmem>>, vector<1x16x32xf32>
    %77 = vector.shape_cast %76 : vector<1x16x32xf32> to vector<16x32xf32>
    %cst_70 = arith.constant dense<0.000000e+00> : vector<16x128xf32>
    %78 = tpu.matmul %77, %69, %cst_70 {dimension_numbers = #tpu.dot_dimension_numbers<[1], [0], [0], [1], [0, 0, 1, 1], [], []>} : vector<16x32xf32>, vector<32x128xf32>, vector<16x128xf32> -> vector<16x128xf32>
    %c1_71 = arith.constant 1 : index
    %c0_72 = arith.constant 0 : index
    %c0_73 = arith.constant 0 : index
    %79 = vector.load %arg8[%c1_71, %c0_72, %c0_73] : memref<3x128x128xf32, #tpu.memory_space<vmem>>, vector<1x128x128xf32>
    %80 = vector.shape_cast %79 : vector<1x128x128xf32> to vector<128x128xf32>
    %cst_74 = arith.constant dense<0.000000e+00> : vector<16x128xf32>
    %81 = tpu.matmul %78, %80, %cst_74 {dimension_numbers = #tpu.dot_dimension_numbers<[1], [0], [0], [1], [0, 0, 1, 1], [], []>} : vector<16x128xf32>, vector<128x128xf32>, vector<16x128xf32> -> vector<16x128xf32>
    %82 = arith.addf %75, %81 : vector<16x128xf32>
    %c2_75 = arith.constant 2 : index
    %c0_76 = arith.constant 0 : index
    %c0_77 = arith.constant 0 : index
    %83 = vector.load %arg7[%c2_75, %c0_76, %c0_77] : memref<3x16x32xf32, #tpu.memory_space<vmem>>, vector<1x16x32xf32>
    %84 = vector.shape_cast %83 : vector<1x16x32xf32> to vector<16x32xf32>
    %cst_78 = arith.constant dense<0.000000e+00> : vector<16x128xf32>
    %85 = tpu.matmul %84, %69, %cst_78 {dimension_numbers = #tpu.dot_dimension_numbers<[1], [0], [0], [1], [0, 0, 1, 1], [], []>} : vector<16x32xf32>, vector<32x128xf32>, vector<16x128xf32> -> vector<16x128xf32>
    %c2_79 = arith.constant 2 : index
    %c0_80 = arith.constant 0 : index
    %c0_81 = arith.constant 0 : index
    %86 = vector.load %arg8[%c2_79, %c0_80, %c0_81] : memref<3x128x128xf32, #tpu.memory_space<vmem>>, vector<1x128x128xf32>
    %87 = vector.shape_cast %86 : vector<1x128x128xf32> to vector<128x128xf32>
    %cst_82 = arith.constant dense<0.000000e+00> : vector<16x128xf32>
    %88 = tpu.matmul %85, %87, %cst_82 {dimension_numbers = #tpu.dot_dimension_numbers<[1], [0], [0], [1], [0, 0, 1, 1], [], []>} : vector<16x128xf32>, vector<128x128xf32>, vector<16x128xf32> -> vector<16x128xf32>
    %89 = arith.addf %82, %88 : vector<16x128xf32>
    %c0_83 = arith.constant 0 : index
    %c0_84 = arith.constant 0 : index
    %90 = vector.load %arg9[%c0_83, %c0_84] : memref<1x128xf32, #tpu.memory_space<vmem>>, vector<1x128xf32>
    %91 = vector.broadcast %90 : vector<1x128xf32> to vector<16x128xf32>
    %92 = arith.addf %89, %91 : vector<16x128xf32>
    %cst_85 = arith.constant 5.000000e-01 : f32
    %93 = vector.broadcast %cst_85 : f32 to vector<16x128xf32>
    %94 = arith.mulf %93, %92 : vector<16x128xf32>
    %cst_86 = arith.constant 0.707106769 : f32
    %95 = vector.broadcast %cst_86 : f32 to vector<16x128xf32>
    %96 = arith.mulf %92, %95 : vector<16x128xf32>
    %97 = math.erf %96 : vector<16x128xf32>
    %cst_87 = arith.constant 1.000000e+00 : f32
    %98 = vector.broadcast %cst_87 : f32 to vector<16x128xf32>
    %99 = arith.addf %98, %97 : vector<16x128xf32>
    %100 = arith.mulf %94, %99 : vector<16x128xf32>
    %c0_88 = arith.constant 0 : index
    %c0_89 = arith.constant 0 : index
    %c0_90 = arith.constant 0 : index
    %101 = vector.load %arg10[%c0_88, %c0_89, %c0_90] : memref<3x16x16xf32, #tpu.memory_space<vmem>>, vector<1x16x16xf32>
    %102 = vector.shape_cast %101 : vector<1x16x16xf32> to vector<16x16xf32>
    %cst_91 = arith.constant dense<0.000000e+00> : vector<16x128xf32>
    %103 = tpu.matmul %102, %100, %cst_91 {dimension_numbers = #tpu.dot_dimension_numbers<[1], [0], [0], [1], [0, 0, 1, 1], [], []>} : vector<16x16xf32>, vector<16x128xf32>, vector<16x128xf32> -> vector<16x128xf32>
    %c0_92 = arith.constant 0 : index
    %c0_93 = arith.constant 0 : index
    %c0_94 = arith.constant 0 : index
    %104 = vector.load %arg11[%c0_92, %c0_93, %c0_94] : memref<3x128x128xf32, #tpu.memory_space<vmem>>, vector<1x128x128xf32>
    %105 = vector.shape_cast %104 : vector<1x128x128xf32> to vector<128x128xf32>
    %cst_95 = arith.constant dense<0.000000e+00> : vector<16x128xf32>
    %106 = tpu.matmul %103, %105, %cst_95 {dimension_numbers = #tpu.dot_dimension_numbers<[1], [0], [0], [1], [0, 0, 1, 1], [], []>} : vector<16x128xf32>, vector<128x128xf32>, vector<16x128xf32> -> vector<16x128xf32>
    %c1_96 = arith.constant 1 : index
    %c0_97 = arith.constant 0 : index
    %c0_98 = arith.constant 0 : index
    %107 = vector.load %arg10[%c1_96, %c0_97, %c0_98] : memref<3x16x16xf32, #tpu.memory_space<vmem>>, vector<1x16x16xf32>
    %108 = vector.shape_cast %107 : vector<1x16x16xf32> to vector<16x16xf32>
    %cst_99 = arith.constant dense<0.000000e+00> : vector<16x128xf32>
    %109 = tpu.matmul %108, %100, %cst_99 {dimension_numbers = #tpu.dot_dimension_numbers<[1], [0], [0], [1], [0, 0, 1, 1], [], []>} : vector<16x16xf32>, vector<16x128xf32>, vector<16x128xf32> -> vector<16x128xf32>
    %c1_100 = arith.constant 1 : index
    %c0_101 = arith.constant 0 : index
    %c0_102 = arith.constant 0 : index
    %110 = vector.load %arg11[%c1_100, %c0_101, %c0_102] : memref<3x128x128xf32, #tpu.memory_space<vmem>>, vector<1x128x128xf32>
    %111 = vector.shape_cast %110 : vector<1x128x128xf32> to vector<128x128xf32>
    %cst_103 = arith.constant dense<0.000000e+00> : vector<16x128xf32>
    %112 = tpu.matmul %109, %111, %cst_103 {dimension_numbers = #tpu.dot_dimension_numbers<[1], [0], [0], [1], [0, 0, 1, 1], [], []>} : vector<16x128xf32>, vector<128x128xf32>, vector<16x128xf32> -> vector<16x128xf32>
    %113 = arith.addf %106, %112 : vector<16x128xf32>
    %c2_104 = arith.constant 2 : index
    %c0_105 = arith.constant 0 : index
    %c0_106 = arith.constant 0 : index
    %114 = vector.load %arg10[%c2_104, %c0_105, %c0_106] : memref<3x16x16xf32, #tpu.memory_space<vmem>>, vector<1x16x16xf32>
    %115 = vector.shape_cast %114 : vector<1x16x16xf32> to vector<16x16xf32>
    %cst_107 = arith.constant dense<0.000000e+00> : vector<16x128xf32>
    %116 = tpu.matmul %115, %100, %cst_107 {dimension_numbers = #tpu.dot_dimension_numbers<[1], [0], [0], [1], [0, 0, 1, 1], [], []>} : vector<16x16xf32>, vector<16x128xf32>, vector<16x128xf32> -> vector<16x128xf32>
    %c2_108 = arith.constant 2 : index
    %c0_109 = arith.constant 0 : index
    %c0_110 = arith.constant 0 : index
    %117 = vector.load %arg11[%c2_108, %c0_109, %c0_110] : memref<3x128x128xf32, #tpu.memory_space<vmem>>, vector<1x128x128xf32>
    %118 = vector.shape_cast %117 : vector<1x128x128xf32> to vector<128x128xf32>
    %cst_111 = arith.constant dense<0.000000e+00> : vector<16x128xf32>
    %119 = tpu.matmul %116, %118, %cst_111 {dimension_numbers = #tpu.dot_dimension_numbers<[1], [0], [0], [1], [0, 0, 1, 1], [], []>} : vector<16x128xf32>, vector<128x128xf32>, vector<16x128xf32> -> vector<16x128xf32>
    %120 = arith.addf %113, %119 : vector<16x128xf32>
    %c0_112 = arith.constant 0 : index
    %c0_113 = arith.constant 0 : index
    %121 = vector.load %arg12[%c0_112, %c0_113] : memref<1x128xf32, #tpu.memory_space<vmem>>, vector<1x128xf32>
    %122 = vector.broadcast %121 : vector<1x128xf32> to vector<16x128xf32>
    %123 = arith.addf %120, %122 : vector<16x128xf32>
    %cst_114 = arith.constant 5.000000e-01 : f32
    %124 = vector.broadcast %cst_114 : f32 to vector<16x128xf32>
    %125 = arith.mulf %124, %123 : vector<16x128xf32>
    %cst_115 = arith.constant 0.707106769 : f32
    %126 = vector.broadcast %cst_115 : f32 to vector<16x128xf32>
    %127 = arith.mulf %123, %126 : vector<16x128xf32>
    %128 = math.erf %127 : vector<16x128xf32>
    %cst_116 = arith.constant 1.000000e+00 : f32
    %129 = vector.broadcast %cst_116 : f32 to vector<16x128xf32>
    %130 = arith.addf %129, %128 : vector<16x128xf32>
    %131 = arith.mulf %125, %130 : vector<16x128xf32>
    %c0_117 = arith.constant 0 : index
    %c0_118 = arith.constant 0 : index
    %c0_119 = arith.constant 0 : index
    %132 = vector.load %arg13[%c0_117, %c0_118, %c0_119] : memref<3x8x16xf32, #tpu.memory_space<vmem>>, vector<1x8x16xf32>
    %133 = vector.shape_cast %132 : vector<1x8x16xf32> to vector<8x16xf32>
    %cst_120 = arith.constant dense<0.000000e+00> : vector<8x128xf32>
    %134 = tpu.matmul %133, %131, %cst_120 {dimension_numbers = #tpu.dot_dimension_numbers<[1], [0], [0], [1], [0, 0, 1, 1], [], []>} : vector<8x16xf32>, vector<16x128xf32>, vector<8x128xf32> -> vector<8x128xf32>
    %c0_121 = arith.constant 0 : index
    %c0_122 = arith.constant 0 : index
    %c0_123 = arith.constant 0 : index
    %135 = vector.load %arg14[%c0_121, %c0_122, %c0_123] : memref<3x128x64xf32, #tpu.memory_space<vmem>>, vector<1x128x64xf32>
    %136 = vector.shape_cast %135 : vector<1x128x64xf32> to vector<128x64xf32>
    %cst_124 = arith.constant dense<0.000000e+00> : vector<8x64xf32>
    %137 = tpu.matmul %134, %136, %cst_124 {dimension_numbers = #tpu.dot_dimension_numbers<[1], [0], [0], [1], [0, 0, 1, 1], [], []>} : vector<8x128xf32>, vector<128x64xf32>, vector<8x64xf32> -> vector<8x64xf32>
    %c1_125 = arith.constant 1 : index
    %c0_126 = arith.constant 0 : index
    %c0_127 = arith.constant 0 : index
    %138 = vector.load %arg13[%c1_125, %c0_126, %c0_127] : memref<3x8x16xf32, #tpu.memory_space<vmem>>, vector<1x8x16xf32>
    %139 = vector.shape_cast %138 : vector<1x8x16xf32> to vector<8x16xf32>
    %cst_128 = arith.constant dense<0.000000e+00> : vector<8x128xf32>
    %140 = tpu.matmul %139, %131, %cst_128 {dimension_numbers = #tpu.dot_dimension_numbers<[1], [0], [0], [1], [0, 0, 1, 1], [], []>} : vector<8x16xf32>, vector<16x128xf32>, vector<8x128xf32> -> vector<8x128xf32>
    %c1_129 = arith.constant 1 : index
    %c0_130 = arith.constant 0 : index
    %c0_131 = arith.constant 0 : index
    %141 = vector.load %arg14[%c1_129, %c0_130, %c0_131] : memref<3x128x64xf32, #tpu.memory_space<vmem>>, vector<1x128x64xf32>
    %142 = vector.shape_cast %141 : vector<1x128x64xf32> to vector<128x64xf32>
    %cst_132 = arith.constant dense<0.000000e+00> : vector<8x64xf32>
    %143 = tpu.matmul %140, %142, %cst_132 {dimension_numbers = #tpu.dot_dimension_numbers<[1], [0], [0], [1], [0, 0, 1, 1], [], []>} : vector<8x128xf32>, vector<128x64xf32>, vector<8x64xf32> -> vector<8x64xf32>
    %144 = arith.addf %137, %143 : vector<8x64xf32>
    %c2_133 = arith.constant 2 : index
    %c0_134 = arith.constant 0 : index
    %c0_135 = arith.constant 0 : index
    %145 = vector.load %arg13[%c2_133, %c0_134, %c0_135] : memref<3x8x16xf32, #tpu.memory_space<vmem>>, vector<1x8x16xf32>
    %146 = vector.shape_cast %145 : vector<1x8x16xf32> to vector<8x16xf32>
    %cst_136 = arith.constant dense<0.000000e+00> : vector<8x128xf32>
    %147 = tpu.matmul %146, %131, %cst_136 {dimension_numbers = #tpu.dot_dimension_numbers<[1], [0], [0], [1], [0, 0, 1, 1], [], []>} : vector<8x16xf32>, vector<16x128xf32>, vector<8x128xf32> -> vector<8x128xf32>
    %c2_137 = arith.constant 2 : index
    %c0_138 = arith.constant 0 : index
    %c0_139 = arith.constant 0 : index
    %148 = vector.load %arg14[%c2_137, %c0_138, %c0_139] : memref<3x128x64xf32, #tpu.memory_space<vmem>>, vector<1x128x64xf32>
    %149 = vector.shape_cast %148 : vector<1x128x64xf32> to vector<128x64xf32>
    %cst_140 = arith.constant dense<0.000000e+00> : vector<8x64xf32>
    %150 = tpu.matmul %147, %149, %cst_140 {dimension_numbers = #tpu.dot_dimension_numbers<[1], [0], [0], [1], [0, 0, 1, 1], [], []>} : vector<8x128xf32>, vector<128x64xf32>, vector<8x64xf32> -> vector<8x64xf32>
    %151 = arith.addf %144, %150 : vector<8x64xf32>
    %c0_141 = arith.constant 0 : index
    %c0_142 = arith.constant 0 : index
    %152 = vector.load %arg15[%c0_141, %c0_142] : memref<1x64xf32, #tpu.memory_space<vmem>>, vector<1x64xf32>
    %153 = vector.broadcast %152 : vector<1x64xf32> to vector<8x64xf32>
    %154 = arith.addf %151, %153 : vector<8x64xf32>
    %cst_143 = arith.constant 5.000000e-01 : f32
    %155 = vector.broadcast %cst_143 : f32 to vector<8x64xf32>
    %156 = arith.mulf %155, %154 : vector<8x64xf32>
    %cst_144 = arith.constant 0.707106769 : f32
    %157 = vector.broadcast %cst_144 : f32 to vector<8x64xf32>
    %158 = arith.mulf %154, %157 : vector<8x64xf32>
    %159 = math.erf %158 : vector<8x64xf32>
    %cst_145 = arith.constant 1.000000e+00 : f32
    %160 = vector.broadcast %cst_145 : f32 to vector<8x64xf32>
    %161 = arith.addf %160, %159 : vector<8x64xf32>
    %162 = arith.mulf %156, %161 : vector<8x64xf32>
    %c0_146 = arith.constant 0 : index
    %c0_147 = arith.constant 0 : index
    %c0_148 = arith.constant 0 : index
    %163 = vector.load %arg16[%c0_146, %c0_147, %c0_148] : memref<4x2x8xf32, #tpu.memory_space<vmem>>, vector<1x2x8xf32>
    %164 = vector.shape_cast %163 : vector<1x2x8xf32> to vector<2x8xf32>
    %cst_149 = arith.constant dense<0.000000e+00> : vector<2x64xf32>
    %165 = tpu.matmul %164, %162, %cst_149 {dimension_numbers = #tpu.dot_dimension_numbers<[1], [0], [0], [1], [0, 0, 1, 1], [], []>} : vector<2x8xf32>, vector<8x64xf32>, vector<2x64xf32> -> vector<2x64xf32>
    %c0_150 = arith.constant 0 : index
    %c0_151 = arith.constant 0 : index
    %c0_152 = arith.constant 0 : index
    %166 = vector.load %arg17[%c0_150, %c0_151, %c0_152] : memref<4x64x10xf32, #tpu.memory_space<vmem>>, vector<1x64x10xf32>
    %167 = vector.shape_cast %166 : vector<1x64x10xf32> to vector<64x10xf32>
    %cst_153 = arith.constant dense<0.000000e+00> : vector<2x10xf32>
    %168 = tpu.matmul %165, %167, %cst_153 {dimension_numbers = #tpu.dot_dimension_numbers<[1], [0], [0], [1], [0, 0, 1, 1], [], []>} : vector<2x64xf32>, vector<64x10xf32>, vector<2x10xf32> -> vector<2x10xf32>
    %c1_154 = arith.constant 1 : index
    %c0_155 = arith.constant 0 : index
    %c0_156 = arith.constant 0 : index
    %169 = vector.load %arg16[%c1_154, %c0_155, %c0_156] : memref<4x2x8xf32, #tpu.memory_space<vmem>>, vector<1x2x8xf32>
    %170 = vector.shape_cast %169 : vector<1x2x8xf32> to vector<2x8xf32>
    %cst_157 = arith.constant dense<0.000000e+00> : vector<2x64xf32>
    %171 = tpu.matmul %170, %162, %cst_157 {dimension_numbers = #tpu.dot_dimension_numbers<[1], [0], [0], [1], [0, 0, 1, 1], [], []>} : vector<2x8xf32>, vector<8x64xf32>, vector<2x64xf32> -> vector<2x64xf32>
    %c1_158 = arith.constant 1 : index
    %c0_159 = arith.constant 0 : index
    %c0_160 = arith.constant 0 : index
    %172 = vector.load %arg17[%c1_158, %c0_159, %c0_160] : memref<4x64x10xf32, #tpu.memory_space<vmem>>, vector<1x64x10xf32>
    %173 = vector.shape_cast %172 : vector<1x64x10xf32> to vector<64x10xf32>
    %cst_161 = arith.constant dense<0.000000e+00> : vector<2x10xf32>
    %174 = tpu.matmul %171, %173, %cst_161 {dimension_numbers = #tpu.dot_dimension_numbers<[1], [0], [0], [1], [0, 0, 1, 1], [], []>} : vector<2x64xf32>, vector<64x10xf32>, vector<2x10xf32> -> vector<2x10xf32>
    %175 = arith.addf %168, %174 : vector<2x10xf32>
    %c2_162 = arith.constant 2 : index
    %c0_163 = arith.constant 0 : index
    %c0_164 = arith.constant 0 : index
    %176 = vector.load %arg16[%c2_162, %c0_163, %c0_164] : memref<4x2x8xf32, #tpu.memory_space<vmem>>, vector<1x2x8xf32>
    %177 = vector.shape_cast %176 : vector<1x2x8xf32> to vector<2x8xf32>
    %cst_165 = arith.constant dense<0.000000e+00> : vector<2x64xf32>
    %178 = tpu.matmul %177, %162, %cst_165 {dimension_numbers = #tpu.dot_dimension_numbers<[1], [0], [0], [1], [0, 0, 1, 1], [], []>} : vector<2x8xf32>, vector<8x64xf32>, vector<2x64xf32> -> vector<2x64xf32>
    %c2_166 = arith.constant 2 : index
    %c0_167 = arith.constant 0 : index
    %c0_168 = arith.constant 0 : index
    %179 = vector.load %arg17[%c2_166, %c0_167, %c0_168] : memref<4x64x10xf32, #tpu.memory_space<vmem>>, vector<1x64x10xf32>
    %180 = vector.shape_cast %179 : vector<1x64x10xf32> to vector<64x10xf32>
    %cst_169 = arith.constant dense<0.000000e+00> : vector<2x10xf32>
    %181 = tpu.matmul %178, %180, %cst_169 {dimension_numbers = #tpu.dot_dimension_numbers<[1], [0], [0], [1], [0, 0, 1, 1], [], []>} : vector<2x64xf32>, vector<64x10xf32>, vector<2x10xf32> -> vector<2x10xf32>
    %182 = arith.addf %175, %181 : vector<2x10xf32>
    %c3 = arith.constant 3 : index
    %c0_170 = arith.constant 0 : index
    %c0_171 = arith.constant 0 : index
    %183 = vector.load %arg16[%c3, %c0_170, %c0_171] : memref<4x2x8xf32, #tpu.memory_space<vmem>>, vector<1x2x8xf32>
    %184 = vector.shape_cast %183 : vector<1x2x8xf32> to vector<2x8xf32>
    %cst_172 = arith.constant dense<0.000000e+00> : vector<2x64xf32>
    %185 = tpu.matmul %184, %162, %cst_172 {dimension_numbers = #tpu.dot_dimension_numbers<[1], [0], [0], [1], [0, 0, 1, 1], [], []>} : vector<2x8xf32>, vector<8x64xf32>, vector<2x64xf32> -> vector<2x64xf32>
    %c3_173 = arith.constant 3 : index
    %c0_174 = arith.constant 0 : index
    %c0_175 = arith.constant 0 : index
    %186 = vector.load %arg17[%c3_173, %c0_174, %c0_175] : memref<4x64x10xf32, #tpu.memory_space<vmem>>, vector<1x64x10xf32>
    %187 = vector.shape_cast %186 : vector<1x64x10xf32> to vector<64x10xf32>
    %cst_176 = arith.constant dense<0.000000e+00> : vector<2x10xf32>
    %188 = tpu.matmul %185, %187, %cst_176 {dimension_numbers = #tpu.dot_dimension_numbers<[1], [0], [0], [1], [0, 0, 1, 1], [], []>} : vector<2x64xf32>, vector<64x10xf32>, vector<2x10xf32> -> vector<2x10xf32>
    %189 = arith.addf %182, %188 : vector<2x10xf32>
    %c0_177 = arith.constant 0 : index
    %c0_178 = arith.constant 0 : index
    %190 = vector.load %arg18[%c0_177, %c0_178] : memref<1x10xf32, #tpu.memory_space<vmem>>, vector<1x10xf32>
    %191 = vector.broadcast %190 : vector<1x10xf32> to vector<2x10xf32>
    %192 = arith.addf %189, %191 : vector<2x10xf32>
    %c0_179 = arith.constant 0 : index
    %c0_180 = arith.constant 0 : index
    %193 = vector.load %arg19[%c0_179, %c0_180] : memref<2x10xf32, #tpu.memory_space<vmem>>, vector<2x10xf32>
    tpu.vector_store %arg19[%c0_179, %c0_180], %192 {strides = array<i32>} : memref<2x10xf32, #tpu.memory_space<vmem>>, vector<2x10xf32>,
    return
  }
}

</mosaic_0001>

<llo_original>
// kernel: cnn_encoder_forward.1
$region0: #{cnn_encoder_forward.1}
  #allocation0 [shape = 'u32[]', space=smem, size = 0x4, offset = 0x4, fixed_abs, tag = 'smem constant byte address 0x4 - core index']
  #allocation1 [shape = 'u32[144,128]{1,0:T(1,128)}', space=vmem, size = 0x12000, scoped, tag = 'internal scratch']
  %s0 = inlined_call_operand.hbm [shape: s32[64,32], index: 0, kind: input, shape index: {}]
  %s1 = inlined_call_operand.vmem [shape: f32[3,32,64], index: 1, kind: input, shape index: {}]
  %s2 = inlined_call_operand.hbm [shape: f32[3,32,128], index: 2, kind: input, shape index: {}]
  %s3 = inlined_call_operand.vmem [shape: f32[1,128], index: 3, kind: input, shape index: {}]
  %s4 = inlined_call_operand.hbm [shape: f32[3,32,32], index: 4, kind: input, shape index: {}]
  %s5 = inlined_call_operand.vmem [shape: f32[3,128,128], index: 5, kind: input, shape index: {}]
  %s6 = inlined_call_operand.vmem [shape: f32[1,128], index: 6, kind: input, shape index: {}]
  %s7 = inlined_call_operand.hbm [shape: f32[3,16,32], index: 7, kind: input, shape index: {}]
  %s8 = inlined_call_operand.vmem [shape: f32[3,128,128], index: 8, kind: input, shape index: {}]
  %s9 = inlined_call_operand.hbm [shape: f32[1,128], index: 9, kind: input, shape index: {}]
  %s10 = inlined_call_operand.hbm [shape: f32[3,16,16], index: 10, kind: input, shape index: {}]
  %s11 = inlined_call_operand.hbm [shape: f32[3,128,128], index: 11, kind: input, shape index: {}]
  %s12 = inlined_call_operand.hbm [shape: f32[1,128], index: 12, kind: input, shape index: {}]
  %s13 = inlined_call_operand.vmem [shape: f32[3,8,16], index: 13, kind: input, shape index: {}]
  %s14 = inlined_call_operand.vmem [shape: f32[3,128,64], index: 14, kind: input, shape index: {}]
  %s15 = inlined_call_operand.vmem [shape: f32[1,64], index: 15, kind: input, shape index: {}]
  %s16 = inlined_call_operand.vmem [shape: f32[4,2,8], index: 16, kind: input, shape index: {}]
  %s17 = inlined_call_operand.vmem [shape: f32[4,64,10], index: 17, kind: input, shape index: {}]
  %s18 = inlined_call_operand.hbm [shape: f32[1,10], index: 18, kind: input, shape index: {}]
  %s19 = inlined_call_operand.vmem [shape: f32[2,10], index: 19, kind: output, shape index: {}]
  %s20 = sld [smem:[#allocation0]]
  $region122: #{cnn_encoder_forward.1} parent=0
    _
  %s22 = ssub.s32 1, %s20
  %s23 = scalar_select 0, %s22, %s20
  $region1: #{cnn_encoder_forward.1} parent=0
    #allocation2 [shape = 'u8[32768]{0}', space=vmem, size = 0x8000, scoped, tag = 'input window, operand 0, single buffered']
    #allocation3 [shape = 's32[1]{0}', space=sflag, size = 0x4, scoped, tag = 'scoped memory for cnn_encoder_forward.1']
    #allocation4 [shape = 'u8[49152]{0}', space=vmem, size = 0xc000, scoped, tag = 'input window, operand 2, single buffered']
    #allocation5 [shape = 's32[1]{0}', space=sflag, size = 0x4, scoped, tag = 'scoped memory for cnn_encoder_forward.1']
    #allocation6 [shape = 'u8[49152]{0}', space=vmem, size = 0xc000, scoped, tag = 'input window, operand 4, single buffered']
    #allocation7 [shape = 'u8[24576]{0}', space=vmem, size = 0x6000, scoped, tag = 'input window, operand 7, single buffered']
    #allocation8 [shape = 's32[1]{0}', space=sflag, size = 0x4, scoped, tag = 'scoped memory for cnn_encoder_forward.1']
    #allocation9 [shape = 'u8[512]{0}', space=vmem, size = 0x400, scoped, tag = 'input window, operand 9, single buffered']
    #allocation10 [shape = 'u8[24576]{0}', space=vmem, size = 0x6000, scoped, tag = 'input window, operand 10, single buffered']
    #allocation11 [shape = 's32[1]{0}', space=sflag, size = 0x4, scoped, tag = 'scoped memory for cnn_encoder_forward.1']
    #allocation12 [shape = 'u8[196608]{0}', space=vmem, size = 0x30000, scoped, tag = 'input window, operand 11, single buffered']
    #allocation13 [shape = 'u8[512]{0}', space=vmem, size = 0x400, scoped, tag = 'input window, operand 12, single buffered']
    #allocation14 [shape = 's32[1]{0}', space=sflag, size = 0x4, scoped, tag = 'scoped memory for cnn_encoder_forward.1']
    #allocation15 [shape = 'u8[512]{0}', space=vmem, size = 0x400, scoped, tag = 'input window, operand 18, single buffered']
    %24 = vsyncpa [#allocation3], 0
    %25 = vsyncpa [#allocation5], 0
    %26 = vsyncpa [#allocation8], 0
    %27 = vsyncpa [#allocation11], 0
    %28 = vsyncpa [#allocation14], 0
    // Predicated region
    $region2: #{cnn_encoder_forward.1} parent=1 // pred_check
      _
    $region3: #{cnn_encoder_forward.1} parent=1 // pred_check_branch
      %30 = sbr.rel (0) target = $region5
    $region4: #{cnn_encoder_forward.1} parent=1 // pred_region
      %s32 = ssub.s32 1024, 1024
      %33 = vsyncadd [#allocation3], %s32
      %s34 = sshll.u32 [#allocation2], 4
      %s35 = int_to_ptr.vmem [resolvable:$true] %s34
      %40 = dma.hbm_to_vmem [thread:$0]  %s0, 1024, %s35, [#allocation3], 128, 128, 8
    $region5: #{cnn_encoder_forward.1} parent=1 // pred_fallthru
      _
    // Predicated region
    $region6: #{cnn_encoder_forward.1} parent=1 // pred_check
      _
    $region7: #{cnn_encoder_forward.1} parent=1 // pred_check_branch
      %42 = sbr.rel (0) target = $region9
    $region8: #{cnn_encoder_forward.1} parent=1 // pred_region
      _
    $region9: #{cnn_encoder_forward.1} parent=1 // pred_fallthru
      _
    // Predicated region
    $region10: #{cnn_encoder_forward.1} parent=1 // pred_check
      _
    $region11: #{cnn_encoder_forward.1} parent=1 // pred_check_branch
      %44 = sbr.rel (0) target = $region13
    $region12: #{cnn_encoder_forward.1} parent=1 // pred_region
      %s46 = ssub.s32 1536, 1536
      %47 = vsyncadd [#allocation5], %s46
      %s48 = sshll.u32 [#allocation4], 4
      %s49 = int_to_ptr.vmem [resolvable:$true] %s48
      %54 = dma.hbm_to_vmem [thread:$0]  %s2, 1536, %s49, [#allocation5], 128, 128, 8
    $region13: #{cnn_encoder_forward.1} parent=1 // pred_fallthru
      _
    // Predicated region
    $region14: #{cnn_encoder_forward.1} parent=1 // pred_check
      _
    $region15: #{cnn_encoder_forward.1} parent=1 // pred_check_branch
      %56 = sbr.rel (0) target = $region17
    $region16: #{cnn_encoder_forward.1} parent=1 // pred_region
      _
    $region17: #{cnn_encoder_forward.1} parent=1 // pred_fallthru
      _
    // Predicated region
    $region18: #{cnn_encoder_forward.1} parent=1 // pred_check
      _
    $region19: #{cnn_encoder_forward.1} parent=1 // pred_check_branch
      %58 = sbr.rel (0) target = $region21
    $region20: #{cnn_encoder_forward.1} parent=1 // pred_region
      %s60 = ssub.s32 1536, 1536
      %61 = vsyncadd [#allocation5], %s60
      %s62 = sshll.u32 [#allocation6], 4
      %s63 = int_to_ptr.vmem [resolvable:$true] %s62
      %68 = dma.hbm_to_vmem [thread:$0]  %s4, 1536, %s63, [#allocation5], 128, 128, 8
    $region21: #{cnn_encoder_forward.1} parent=1 // pred_fallthru
      _
    // Predicated region
    $region22: #{cnn_encoder_forward.1} parent=1 // pred_check
      _
    $region23: #{cnn_encoder_forward.1} parent=1 // pred_check_branch
      %70 = sbr.rel (0) target = $region25
    $region24: #{cnn_encoder_forward.1} parent=1 // pred_region
      _
    $region25: #{cnn_encoder_forward.1} parent=1 // pred_fallthru
      _
    // Predicated region
    $region26: #{cnn_encoder_forward.1} parent=1 // pred_check
      _
    $region27: #{cnn_encoder_forward.1} parent=1 // pred_check_branch
      %72 = sbr.rel (0) target = $region29
    $region28: #{cnn_encoder_forward.1} parent=1 // pred_region
      _
    $region29: #{cnn_encoder_forward.1} parent=1 // pred_fallthru
      _
    // Predicated region
    $region30: #{cnn_encoder_forward.1} parent=1 // pred_check
      _
    $region31: #{cnn_encoder_forward.1} parent=1 // pred_check_branch
      %74 = sbr.rel (0) target = $region33
    $region32: #{cnn_encoder_forward.1} parent=1 // pred_region
      %s76 = ssub.s32 768, 768
      %77 = vsyncadd [#allocation8], %s76
      %s78 = sshll.u32 [#allocation7], 4
      %s79 = int_to_ptr.vmem [resolvable:$true] %s78
      %84 = dma.hbm_to_vmem [thread:$0]  %s7, 768, %s79, [#allocation8], 128, 128, 8
    $region33: #{cnn_encoder_forward.1} parent=1 // pred_fallthru
      _
    // Predicated region
    $region34: #{cnn_encoder_forward.1} parent=1 // pred_check
      _
    $region35: #{cnn_encoder_forward.1} parent=1 // pred_check_branch
      %86 = sbr.rel (0) target = $region37
    $region36: #{cnn_encoder_forward.1} parent=1 // pred_region
      _
    $region37: #{cnn_encoder_forward.1} parent=1 // pred_fallthru
      _
    // Predicated region
    $region38: #{cnn_encoder_forward.1} parent=1 // pred_check
      _
    $region39: #{cnn_encoder_forward.1} parent=1 // pred_check_branch
      %88 = sbr.rel (0) target = $region41
    $region40: #{cnn_encoder_forward.1} parent=1 // pred_region
      %s90 = ssub.s32 16, 16
      %91 = vsyncadd [#allocation8], %s90
      %s93 = sshll.u32 [#allocation9], 4
      %s94 = int_to_ptr.vmem [resolvable:$true] %s93
      %96 = dma.hbm_to_vmem [thread:$0]  %s9, 16, %s94, [#allocation8]
    $region41: #{cnn_encoder_forward.1} parent=1 // pred_fallthru
      _
    // Predicated region
    $region42: #{cnn_encoder_forward.1} parent=1 // pred_check
      _
    $region43: #{cnn_encoder_forward.1} parent=1 // pred_check_branch
      %98 = sbr.rel (0) target = $region45
    $region44: #{cnn_encoder_forward.1} parent=1 // pred_region
      %s100 = ssub.s32 768, 768
      %101 = vsyncadd [#allocation11], %s100
      %s102 = sshll.u32 [#allocation10], 4
      %s103 = int_to_ptr.vmem [resolvable:$true] %s102
      %108 = dma.hbm_to_vmem [thread:$0]  %s10, 768, %s103, [#allocation11], 128, 128, 8
    $region45: #{cnn_encoder_forward.1} parent=1 // pred_fallthru
      _
    // Predicated region
    $region46: #{cnn_encoder_forward.1} parent=1 // pred_check
      _
    $region47: #{cnn_encoder_forward.1} parent=1 // pred_check_branch
      %110 = sbr.rel (0) target = $region49
    $region48: #{cnn_encoder_forward.1} parent=1 // pred_region
      %s112 = ssub.s32 6144, 6144
      %113 = vsyncadd [#allocation11], %s112
      %s114 = sshll.u32 [#allocation12], 4
      %s115 = int_to_ptr.vmem [resolvable:$true] %s114
      %120 = dma.hbm_to_vmem [thread:$0]  %s11, 6144, %s115, [#allocation11], 128, 128, 8
    $region49: #{cnn_encoder_forward.1} parent=1 // pred_fallthru
      _
    // Predicated region
    $region50: #{cnn_encoder_forward.1} parent=1 // pred_check
      _
    $region51: #{cnn_encoder_forward.1} parent=1 // pred_check_branch
      %122 = sbr.rel (0) target = $region53
    $region52: #{cnn_encoder_forward.1} parent=1 // pred_region
      %s124 = ssub.s32 16, 16
      %125 = vsyncadd [#allocation14], %s124
      %s127 = sshll.u32 [#allocation13], 4
      %s128 = int_to_ptr.vmem [resolvable:$true] %s127
      %130 = dma.hbm_to_vmem [thread:$0]  %s12, 16, %s128, [#allocation14]
    $region53: #{cnn_encoder_forward.1} parent=1 // pred_fallthru
      _
    // Predicated region
    $region54: #{cnn_encoder_forward.1} parent=1 // pred_check
      _
    $region55: #{cnn_encoder_forward.1} parent=1 // pred_check_branch
      %132 = sbr.rel (0) target = $region57
    $region56: #{cnn_encoder_forward.1} parent=1 // pred_region
      _
    $region57: #{cnn_encoder_forward.1} parent=1 // pred_fallthru
      _
    // Predicated region
    $region58: #{cnn_encoder_forward.1} parent=1 // pred_check
      _
    $region59: #{cnn_encoder_forward.1} parent=1 // pred_check_branch
      %134 = sbr.rel (0) target = $region61
    $region60: #{cnn_encoder_forward.1} parent=1 // pred_region
      _
    $region61: #{cnn_encoder_forward.1} parent=1 // pred_fallthru
      _
    // Predicated region
    $region62: #{cnn_encoder_forward.1} parent=1 // pred_check
      _
    $region63: #{cnn_encoder_forward.1} parent=1 // pred_check_branch
      %136 = sbr.rel (0) target = $region65
    $region64: #{cnn_encoder_forward.1} parent=1 // pred_region
      _
    $region65: #{cnn_encoder_forward.1} parent=1 // pred_fallthru
      _
    // Predicated region
    $region66: #{cnn_encoder_forward.1} parent=1 // pred_check
      _
    $region67: #{cnn_encoder_forward.1} parent=1 // pred_check_branch
      %138 = sbr.rel (0) target = $region69
    $region68: #{cnn_encoder_forward.1} parent=1 // pred_region
      _
    $region69: #{cnn_encoder_forward.1} parent=1 // pred_fallthru
      _
    // Predicated region
    $region70: #{cnn_encoder_forward.1} parent=1 // pred_check
      _
    $region71: #{cnn_encoder_forward.1} parent=1 // pred_check_branch
      %140 = sbr.rel (0) target = $region73
    $region72: #{cnn_encoder_forward.1} parent=1 // pred_region
      _
    $region73: #{cnn_encoder_forward.1} parent=1 // pred_fallthru
      _
    // Predicated region
    $region74: #{cnn_encoder_forward.1} parent=1 // pred_check
      _
    $region75: #{cnn_encoder_forward.1} parent=1 // pred_check_branch
      %142 = sbr.rel (0) target = $region77
    $region76: #{cnn_encoder_forward.1} parent=1 // pred_region
      %s144 = ssub.s32 16, 16
      %145 = vsyncadd [#allocation14], %s144
      %s147 = sshll.u32 [#allocation15], 4
      %s148 = int_to_ptr.vmem [resolvable:$true] %s147
      %150 = dma.hbm_to_vmem [thread:$0]  %s18, 16, %s148, [#allocation14]
    $region77: #{cnn_encoder_forward.1} parent=1 // pred_fallthru
      _
    // Predicated region
    $region78: #{cnn_encoder_forward.1} parent=1 // pred_check
      _
    $region79: #{cnn_encoder_forward.1} parent=1 // pred_check_branch
      %152 = sbr.rel (0) target = $region81
    $region80: #{cnn_encoder_forward.1} parent=1 // pred_region
      %153 = dma.done [#allocation3], 1024
    $region81: #{cnn_encoder_forward.1} parent=1 // pred_fallthru
      _
    // Predicated region
    $region82: #{cnn_encoder_forward.1} parent=1 // pred_check
      _
    $region83: #{cnn_encoder_forward.1} parent=1 // pred_check_branch
      %155 = sbr.rel (0) target = $region85
    $region84: #{cnn_encoder_forward.1} parent=1 // pred_region
      %156 = dma.done [#allocation5], 1536
    $region85: #{cnn_encoder_forward.1} parent=1 // pred_fallthru
      _
    // Predicated region
    $region86: #{cnn_encoder_forward.1} parent=1 // pred_check
      _
    $region87: #{cnn_encoder_forward.1} parent=1 // pred_check_branch
      %158 = sbr.rel (0) target = $region89
    $region88: #{cnn_encoder_forward.1} parent=1 // pred_region
      %159 = dma.done [#allocation5], 1536
    $region89: #{cnn_encoder_forward.1} parent=1 // pred_fallthru
      _
    // Predicated region
    $region90: #{cnn_encoder_forward.1} parent=1 // pred_check
      _
    $region91: #{cnn_encoder_forward.1} parent=1 // pred_check_branch
      %161 = sbr.rel (0) target = $region93
    $region92: #{cnn_encoder_forward.1} parent=1 // pred_region
      %162 = dma.done [#allocation8], 768
    $region93: #{cnn_encoder_forward.1} parent=1 // pred_fallthru
      _
    // Predicated region
    $region94: #{cnn_encoder_forward.1} parent=1 // pred_check
      _
    $region95: #{cnn_encoder_forward.1} parent=1 // pred_check_branch
      %164 = sbr.rel (0) target = $region97
    $region96: #{cnn_encoder_forward.1} parent=1 // pred_region
      %165 = dma.done [#allocation8], 16
    $region97: #{cnn_encoder_forward.1} parent=1 // pred_fallthru
      _
    // Predicated region
    $region98: #{cnn_encoder_forward.1} parent=1 // pred_check
      _
    $region99: #{cnn_encoder_forward.1} parent=1 // pred_check_branch
      %167 = sbr.rel (0) target = $region101
    $region100: #{cnn_encoder_forward.1} parent=1 // pred_region
      %168 = dma.done [#allocation11], 768
    $region101: #{cnn_encoder_forward.1} parent=1 // pred_fallthru
      _
    // Predicated region
    $region102: #{cnn_encoder_forward.1} parent=1 // pred_check
      _
    $region103: #{cnn_encoder_forward.1} parent=1 // pred_check_branch
      %170 = sbr.rel (0) target = $region105
    $region104: #{cnn_encoder_forward.1} parent=1 // pred_region
      %171 = dma.done [#allocation11], 6144
    $region105: #{cnn_encoder_forward.1} parent=1 // pred_fallthru
      _
    // Predicated region
    $region106: #{cnn_encoder_forward.1} parent=1 // pred_check
      _
    $region107: #{cnn_encoder_forward.1} parent=1 // pred_check_branch
      %173 = sbr.rel (0) target = $region109
    $region108: #{cnn_encoder_forward.1} parent=1 // pred_region
      %174 = dma.done [#allocation14], 16
    $region109: #{cnn_encoder_forward.1} parent=1 // pred_fallthru
      _
    // Predicated region
    $region110: #{cnn_encoder_forward.1} parent=1 // pred_check
      _
    $region111: #{cnn_encoder_forward.1} parent=1 // pred_check_branch
      %176 = sbr.rel (0) target = $region113
    $region112: #{cnn_encoder_forward.1} parent=1 // pred_region
      %177 = dma.done [#allocation14], 16
    $region113: #{cnn_encoder_forward.1} parent=1 // pred_fallthru
      _
    %v178 = vld [vmem:[#allocation2] sm:$0xff]
    %v179 = vld [vmem:[#allocation2 + $0x8] sm:$0xff]
    %v180 = vld [vmem:[#allocation2 + $0x10] sm:$0xff]
    %v181 = vld [vmem:[#allocation2 + $0x18] sm:$0xff]
    %v182 = vld [vmem:[#allocation2 + $0x20] sm:$0xff]
    %v183 = vld [vmem:[#allocation2 + $0x28] sm:$0xff]
    %v184 = vld [vmem:[#allocation2 + $0x30] sm:$0xff]
    %v185 = vld [vmem:[#allocation2 + $0x38] sm:$0xff]
    %v186 = vcvt.s32.f32 %v178
    %v187 = vcvt.s32.f32 %v179
    %v188 = vcvt.s32.f32 %v180
    %v189 = vcvt.s32.f32 %v181
    %v190 = vcvt.s32.f32 %v182
    %v191 = vcvt.s32.f32 %v183
    %v192 = vcvt.s32.f32 %v184
    %v193 = vcvt.s32.f32 %v185
    %v194 = vrcp.pop 15.0
    %v195 = vmul.f32 %v186, %v194
    %v196 = vmul.f32 %v187, %v194
    %v197 = vmul.f32 %v188, %v194
    %v198 = vmul.f32 %v189, %v194
    %v199 = vmul.f32 %v190, %v194
    %v200 = vmul.f32 %v191, %v194
    %v201 = vmul.f32 %v192, %v194
    %v202 = vmul.f32 %v193, %v194
    %v203 = vmul.f32 %v195, 2.0
    %v204 = vmul.f32 %v196, 2.0
    %v205 = vmul.f32 %v197, 2.0
    %v206 = vmul.f32 %v198, 2.0
    %v207 = vmul.f32 %v199, 2.0
    %v208 = vmul.f32 %v200, 2.0
    %v209 = vmul.f32 %v201, 2.0
    %v210 = vmul.f32 %v202, 2.0
    %v211 = vsub.f32 %v203, 1.0
    %v212 = vsub.f32 %v204, 1.0
    %v213 = vsub.f32 %v205, 1.0
    %v214 = vsub.f32 %v206, 1.0
    %v215 = vsub.f32 %v207, 1.0
    %v216 = vsub.f32 %v208, 1.0
    %v217 = vsub.f32 %v209, 1.0
    %v218 = vsub.f32 %v210, 1.0
    %v219 = vld [vmem:[%s1] sm:$0xff]
    %v220 = vld [vmem:[%s1 + $0x8] sm:$0xff]
    %v221 = vld [vmem:[%s1 + $0x10] sm:$0xff]
    %v222 = vld [vmem:[%s1 + $0x18] sm:$0xff]
    %vm223 = vcmask 523264
    %v225 = vsel %vm223, %v219, 0
    %v228 = vsel %vm223, %v220, 0
    %v231 = vsel %vm223, %v221, 0
    %v234 = vsel %vm223, %v222, 0
    %236 = vmatprep.subr.mxu0 0.0
    %237 = vmatpush1.msra.mxu0 0.0
    %238 = vmatprep.subr.mxu0 0.0
    %239 = vmatpush1.msra.mxu0 0.0
    %240 = vmatprep.subr.mxu0 0.0
    %241 = vmatpush1.msra.mxu0 0.0
    %242 = vmatprep.subr.mxu0 0.0
    %243 = vmatpush1.msra.mxu0 0.0
    %244 = vmatprep.subr.mxu0 0.0
    %245 = vmatpush1.msra.mxu0 0.0
    %246 = vmatprep.subr.mxu0 0.0
    %247 = vmatpush1.msra.mxu0 0.0
    %248 = vmatprep.subr.mxu0 0.0
    %249 = vmatpush1.msra.mxu0 0.0
    %250 = vmatprep.subr.mxu0 0.0
    %251 = vmatpush1.msra.mxu0 0.0
    %252 = vmatprep.subr.mxu0 0.0
    %253 = vmatpush1.msra.mxu0 %v218
    %254 = vmatprep.subr.mxu0 0.0
    %255 = vmatpush1.msra.mxu0 %v217
    %256 = vmatprep.subr.mxu0 0.0
    %257 = vmatpush1.msra.mxu0 %v216
    %258 = vmatprep.subr.mxu0 0.0
    %259 = vmatpush1.msra.mxu0 %v215
    %260 = vmatprep.subr.mxu0 0.0
    %261 = vmatpush1.msra.mxu0 %v214
    %262 = vmatprep.subr.mxu0 0.0
    %263 = vmatpush1.msra.mxu0 %v213
    %264 = vmatprep.subr.mxu0 0.0
    %265 = vmatpush1.msra.mxu0 %v212
    %266 = vmatprep.subr.mxu0 0.0
    %267 = vmatpush1.msra.mxu0 %v211
    %268 = vmatprep.subr.mxu0 0.0
    %269 = vmatpush2.msra.mxu0 0.0
    %270 = vmatprep.subr.mxu0 0.0
    %271 = vmatpush2.msra.mxu0 0.0
    %272 = vmatprep.subr.mxu0 0.0
    %273 = vmatpush2.msra.mxu0 0.0
    %274 = vmatprep.subr.mxu0 0.0
    %275 = vmatpush2.msra.mxu0 0.0
    %276 = vmatprep.subr.mxu0 0.0
    %277 = vmatpush2.msra.mxu0 0.0
    %278 = vmatprep.subr.mxu0 0.0
    %279 = vmatpush2.msra.mxu0 0.0
    %280 = vmatprep.subr.mxu0 0.0
    %281 = vmatpush2.msra.mxu0 0.0
    %282 = vmatprep.subr.mxu0 0.0
    %283 = vmatpush2.msra.mxu0 0.0
    %284 = vmatprep.subr.mxu0 0.0
    %285 = vmatpush2.msra.mxu0 0.0
    %286 = vmatprep.subr.mxu0 0.0
    %287 = vmatpush2.msra.mxu0 0.0
    %288 = vmatprep.subr.mxu0 0.0
    %289 = vmatpush2.msra.mxu0 0.0
    %290 = vmatprep.subr.mxu0 0.0
    %291 = vmatpush2.msra.mxu0 0.0
    %292 = vmatprep.subr.mxu0 0.0
    %293 = vmatpush2.msra.mxu0 0.0
    %294 = vmatprep.subr.mxu0 0.0
    %295 = vmatpush2.msra.mxu0 0.0
    %296 = vmatprep.subr.mxu0 0.0
    %297 = vmatpush2.msra.mxu0 0.0
    %298 = vmatprep.subr.mxu0 0.0
    %299 = vmatpush2.msra.mxu0 0.0
    %300 = vmatprep.mubr.f32.mxu0 0.0
    %301 = vmatmul.mubr.f32.gmra.mxu0 %v225
    %v302 = vpop.f32.mrf.mxu0
    %v303 = vadd.f32 0.0, %v302
    %v304 = vpop.f32.mrf.mxu0
    %305 = vmatprep.mubr.f32.mxu0 0.0
    %306 = vmatmul.mubr.f32.gmra.mxu0 %v228
    %v307 = vpop.f32.mrf.mxu0
    %v308 = vadd.f32 0.0, %v307
    %v309 = vpop.f32.mrf.mxu0
    %310 = vmatprep.mubr.f32.mxu0 0.0
    %311 = vmatmul.mubr.f32.gmra.mxu0 %v231
    %v312 = vpop.f32.mrf.mxu0
    %v313 = vadd.f32 0.0, %v312
    %v314 = vpop.f32.mrf.mxu0
    %315 = vmatprep.mubr.f32.mxu0 0.0
    %316 = vmatmul.mubr.f32.gmra.mxu0 %v234
    %v317 = vpop.f32.mrf.mxu0
    %v318 = vadd.f32 0.0, %v317
    %v319 = vpop.f32.mrf.mxu0
    %320 = vdwg.mxu0
    %v321 = vld [vmem:[#allocation4] sm:$0xff]
    %v322 = vld [vmem:[#allocation4 + $0x8] sm:$0xff]
    %v323 = vld [vmem:[#allocation4 + $0x10] sm:$0xff]
    %v324 = vld [vmem:[#allocation4 + $0x18] sm:$0xff]
    %s325 = scalar_lea.vmem %s1, 32
    %v326 = vld [vmem:[%s325] sm:$0xff]
    %v327 = vld [vmem:[%s325 + $0x8] sm:$0xff]
    %v328 = vld [vmem:[%s325 + $0x10] sm:$0xff]
    %v329 = vld [vmem:[%s325 + $0x18] sm:$0xff]
    %v331 = vsel %vm223, %v326, 0
    %v334 = vsel %vm223, %v327, 0
    %v337 = vsel %vm223, %v328, 0
    %v340 = vsel %vm223, %v329, 0
    %342 = vmatprep.subr.mxu0 0.0
    %343 = vmatpush1.msra.mxu0 0.0
    %344 = vmatprep.subr.mxu0 0.0
    %345 = vmatpush1.msra.mxu0 0.0
    %346 = vmatprep.subr.mxu0 0.0
    %347 = vmatpush1.msra.mxu0 0.0
    %348 = vmatprep.subr.mxu0 0.0
    %349 = vmatpush1.msra.mxu0 0.0
    %350 = vmatprep.subr.mxu0 0.0
    %351 = vmatpush1.msra.mxu0 0.0
    %352 = vmatprep.subr.mxu0 0.0
    %353 = vmatpush1.msra.mxu0 0.0
    %354 = vmatprep.subr.mxu0 0.0
    %355 = vmatpush1.msra.mxu0 0.0
    %356 = vmatprep.subr.mxu0 0.0
    %357 = vmatpush1.msra.mxu0 0.0
    %358 = vmatprep.subr.mxu0 0.0
    %359 = vmatpush1.msra.mxu0 %v218
    %360 = vmatprep.subr.mxu0 0.0
    %361 = vmatpush1.msra.mxu0 %v217
    %362 = vmatprep.subr.mxu0 0.0
    %363 = vmatpush1.msra.mxu0 %v216
    %364 = vmatprep.subr.mxu0 0.0
    %365 = vmatpush1.msra.mxu0 %v215
    %366 = vmatprep.subr.mxu0 0.0
    %367 = vmatpush1.msra.mxu0 %v214
    %368 = vmatprep.subr.mxu0 0.0
    %369 = vmatpush1.msra.mxu0 %v213
    %370 = vmatprep.subr.mxu0 0.0
    %371 = vmatpush1.msra.mxu0 %v212
    %372 = vmatprep.subr.mxu0 0.0
    %373 = vmatpush1.msra.mxu0 %v211
    %374 = vmatprep.subr.mxu0 0.0
    %375 = vmatpush2.msra.mxu0 0.0
    %376 = vmatprep.subr.mxu0 0.0
    %377 = vmatpush2.msra.mxu0 0.0
    %378 = vmatprep.subr.mxu0 0.0
    %379 = vmatpush2.msra.mxu0 0.0
    %380 = vmatprep.subr.mxu0 0.0
    %381 = vmatpush2.msra.mxu0 0.0
    %382 = vmatprep.subr.mxu0 0.0
    %383 = vmatpush2.msra.mxu0 0.0
    %384 = vmatprep.subr.mxu0 0.0
    %385 = vmatpush2.msra.mxu0 0.0
    %386 = vmatprep.subr.mxu0 0.0
    %387 = vmatpush2.msra.mxu0 0.0
    %388 = vmatprep.subr.mxu0 0.0
    %389 = vmatpush2.msra.mxu0 0.0
    %390 = vmatprep.subr.mxu0 0.0
    %391 = vmatpush2.msra.mxu0 0.0
    %392 = vmatprep.subr.mxu0 0.0
    %393 = vmatpush2.msra.mxu0 0.0
    %394 = vmatprep.subr.mxu0 0.0
    %395 = vmatpush2.msra.mxu0 0.0
    %396 = vmatprep.subr.mxu0 0.0
    %397 = vmatpush2.msra.mxu0 0.0
    %398 = vmatprep.subr.mxu0 0.0
    %399 = vmatpush2.msra.mxu0 0.0
    %400 = vmatprep.subr.mxu0 0.0
    %401 = vmatpush2.msra.mxu0 0.0
    %402 = vmatprep.subr.mxu0 0.0
    %403 = vmatpush2.msra.mxu0 0.0
    %404 = vmatprep.subr.mxu0 0.0
    %405 = vmatpush2.msra.mxu0 0.0
    %406 = vmatprep.mubr.f32.mxu0 0.0
    %407 = vmatmul.mubr.f32.gmra.mxu0 %v331
    %v408 = vpop.f32.mrf.mxu0
    %v409 = vadd.f32 0.0, %v408
    %v410 = vpop.f32.mrf.mxu0
    %411 = vmatprep.mubr.f32.mxu0 0.0
    %412 = vmatmul.mubr.f32.gmra.mxu0 %v334
    %v413 = vpop.f32.mrf.mxu0
    %v414 = vadd.f32 0.0, %v413
    %v415 = vpop.f32.mrf.mxu0
    %416 = vmatprep.mubr.f32.mxu0 0.0
    %417 = vmatmul.mubr.f32.gmra.mxu0 %v337
    %v418 = vpop.f32.mrf.mxu0
    %v419 = vadd.f32 0.0, %v418
    %v420 = vpop.f32.mrf.mxu0
    %421 = vmatprep.mubr.f32.mxu0 0.0
    %422 = vmatmul.mubr.f32.gmra.mxu0 %v340
    %v423 = vpop.f32.mrf.mxu0
    %v424 = vadd.f32 0.0, %v423
    %v425 = vpop.f32.mrf.mxu0
    %426 = vdwg.mxu0
    %s427 = scalar_lea.vmem [#allocation4], 32
    %v428 = vld [vmem:[%s427] sm:$0xff]
    %v429 = vld [vmem:[%s427 + $0x8] sm:$0xff]
    %v430 = vld [vmem:[%s427 + $0x10] sm:$0xff]
    %v431 = vld [vmem:[%s427 + $0x18] sm:$0xff]
    %vm432 = vcmask 261120
    %v434 = vsel %vm432, %v409, 0
    %v437 = vsel %vm432, %v414, 0
    %v440 = vsel %vm432, %v419, 0
    %v443 = vsel %vm432, %v424, 0
    %445 = vmatprep.subr.mxu0 0.0
    %446 = vmatpush1.msra.mxu0 0.0
    %447 = vmatprep.subr.mxu0 0.0
    %448 = vmatpush1.msra.mxu0 0.0
    %449 = vmatprep.subr.mxu0 0.0
    %450 = vmatpush1.msra.mxu0 0.0
    %451 = vmatprep.subr.mxu0 0.0
    %452 = vmatpush1.msra.mxu0 0.0
    %453 = vmatprep.subr.mxu0 0.0
    %454 = vmatpush1.msra.mxu0 0.0
    %455 = vmatprep.subr.mxu0 0.0
    %456 = vmatpush1.msra.mxu0 0.0
    %457 = vmatprep.subr.mxu0 0.0
    %458 = vmatpush1.msra.mxu0 0.0
    %459 = vmatprep.subr.mxu0 0.0
    %460 = vmatpush1.msra.mxu0 0.0
    %461 = vmatprep.subr.mxu0 0.0
    %462 = vmatpush1.msra.mxu0 0.0
    %463 = vmatprep.subr.mxu0 0.0
    %464 = vmatpush1.msra.mxu0 0.0
    %465 = vmatprep.subr.mxu0 0.0
    %466 = vmatpush1.msra.mxu0 0.0
    %467 = vmatprep.subr.mxu0 0.0
    %468 = vmatpush1.msra.mxu0 0.0
    %469 = vmatprep.subr.mxu0 0.0
    %470 = vmatpush1.msra.mxu0 %v431
    %471 = vmatprep.subr.mxu0 0.0
    %472 = vmatpush1.msra.mxu0 %v430
    %473 = vmatprep.subr.mxu0 0.0
    %474 = vmatpush1.msra.mxu0 %v429
    %475 = vmatprep.subr.mxu0 0.0
    %476 = vmatpush1.msra.mxu0 %v428
    %477 = vmatprep.subr.mxu0 0.0
    %478 = vmatpush2.msra.mxu0 0.0
    %479 = vmatprep.subr.mxu0 0.0
    %480 = vmatpush2.msra.mxu0 0.0
    %481 = vmatprep.subr.mxu0 0.0
    %482 = vmatpush2.msra.mxu0 0.0
    %483 = vmatprep.subr.mxu0 0.0
    %484 = vmatpush2.msra.mxu0 0.0
    %485 = vmatprep.subr.mxu0 0.0
    %486 = vmatpush2.msra.mxu0 0.0
    %487 = vmatprep.subr.mxu0 0.0
    %488 = vmatpush2.msra.mxu0 0.0
    %489 = vmatprep.subr.mxu0 0.0
    %490 = vmatpush2.msra.mxu0 0.0
    %491 = vmatprep.subr.mxu0 0.0
    %492 = vmatpush2.msra.mxu0 0.0
    %493 = vmatprep.subr.mxu0 0.0
    %494 = vmatpush2.msra.mxu0 0.0
    %495 = vmatprep.subr.mxu0 0.0
    %496 = vmatpush2.msra.mxu0 0.0
    %497 = vmatprep.subr.mxu0 0.0
    %498 = vmatpush2.msra.mxu0 0.0
    %499 = vmatprep.subr.mxu0 0.0
    %500 = vmatpush2.msra.mxu0 0.0
    %501 = vmatprep.subr.mxu0 0.0
    %502 = vmatpush2.msra.mxu0 0.0
    %503 = vmatprep.subr.mxu0 0.0
    %504 = vmatpush2.msra.mxu0 0.0
    %505 = vmatprep.subr.mxu0 0.0
    %506 = vmatpush2.msra.mxu0 0.0
    %507 = vmatprep.subr.mxu0 0.0
    %508 = vmatpush2.msra.mxu0 0.0
    %509 = vmatprep.mubr.f32.mxu0 0.0
    %510 = vmatmul.mubr.f32.gmra.mxu0 %v434
    %v511 = vpop.f32.mrf.mxu0
    %v512 = vadd.f32 0.0, %v511
    %v513 = vpop.f32.mrf.mxu0
    %514 = vmatprep.mubr.f32.mxu0 0.0
    %515 = vmatmul.mubr.f32.gmra.mxu0 %v437
    %v516 = vpop.f32.mrf.mxu0
    %v517 = vadd.f32 0.0, %v516
    %v518 = vpop.f32.mrf.mxu0
    %519 = vmatprep.mubr.f32.mxu0 0.0
    %520 = vmatmul.mubr.f32.gmra.mxu0 %v440
    %v521 = vpop.f32.mrf.mxu0
    %v522 = vadd.f32 0.0, %v521
    %v523 = vpop.f32.mrf.mxu0
    %524 = vmatprep.mubr.f32.mxu0 0.0
    %525 = vmatmul.mubr.f32.gmra.mxu0 %v443
    %v526 = vpop.f32.mrf.mxu0
    %v527 = vadd.f32 0.0, %v526
    %v528 = vpop.f32.mrf.mxu0
    %529 = vdwg.mxu0
    %v531 = vsel %vm432, %v303, 0
    %v534 = vsel %vm432, %v308, 0
    %v537 = vsel %vm432, %v313, 0
    %v540 = vsel %vm432, %v318, 0
    %542 = vmatprep.subr.mxu0 0.0
    %543 = vmatpush1.msra.mxu0 0.0
    %544 = vmatprep.subr.mxu0 0.0
    %545 = vmatpush1.msra.mxu0 0.0
    %546 = vmatprep.subr.mxu0 0.0
    %547 = vmatpush1.msra.mxu0 0.0
    %548 = vmatprep.subr.mxu0 0.0
    %549 = vmatpush1.msra.mxu0 0.0
    %550 = vmatprep.subr.mxu0 0.0
    %551 = vmatpush1.msra.mxu0 0.0
    %552 = vmatprep.subr.mxu0 0.0
    %553 = vmatpush1.msra.mxu0 0.0
    %554 = vmatprep.subr.mxu0 0.0
    %555 = vmatpush1.msra.mxu0 0.0
    %556 = vmatprep.subr.mxu0 0.0
    %557 = vmatpush1.msra.mxu0 0.0
    %558 = vmatprep.subr.mxu0 0.0
    %559 = vmatpush1.msra.mxu0 0.0
    %560 = vmatprep.subr.mxu0 0.0
    %561 = vmatpush1.msra.mxu0 0.0
    %562 = vmatprep.subr.mxu0 0.0
    %563 = vmatpush1.msra.mxu0 0.0
    %564 = vmatprep.subr.mxu0 0.0
    %565 = vmatpush1.msra.mxu0 0.0
    %566 = vmatprep.subr.mxu0 0.0
    %567 = vmatpush1.msra.mxu0 %v324
    %568 = vmatprep.subr.mxu0 0.0
    %569 = vmatpush1.msra.mxu0 %v323
    %570 = vmatprep.subr.mxu0 0.0
    %571 = vmatpush1.msra.mxu0 %v322
    %572 = vmatprep.subr.mxu0 0.0
    %573 = vmatpush1.msra.mxu0 %v321
    %574 = vmatprep.subr.mxu0 0.0
    %575 = vmatpush2.msra.mxu0 0.0
    %576 = vmatprep.subr.mxu0 0.0
    %577 = vmatpush2.msra.mxu0 0.0
    %578 = vmatprep.subr.mxu0 0.0
    %579 = vmatpush2.msra.mxu0 0.0
    %580 = vmatprep.subr.mxu0 0.0
    %581 = vmatpush2.msra.mxu0 0.0
    %582 = vmatprep.subr.mxu0 0.0
    %583 = vmatpush2.msra.mxu0 0.0
    %584 = vmatprep.subr.mxu0 0.0
    %585 = vmatpush2.msra.mxu0 0.0
    %586 = vmatprep.subr.mxu0 0.0
    %587 = vmatpush2.msra.mxu0 0.0
    %588 = vmatprep.subr.mxu0 0.0
    %589 = vmatpush2.msra.mxu0 0.0
    %590 = vmatprep.subr.mxu0 0.0
    %591 = vmatpush2.msra.mxu0 0.0
    %592 = vmatprep.subr.mxu0 0.0
    %593 = vmatpush2.msra.mxu0 0.0
    %594 = vmatprep.subr.mxu0 0.0
    %595 = vmatpush2.msra.mxu0 0.0
    %596 = vmatprep.subr.mxu0 0.0
    %597 = vmatpush2.msra.mxu0 0.0
    %598 = vmatprep.subr.mxu0 0.0
    %599 = vmatpush2.msra.mxu0 0.0
    %600 = vmatprep.subr.mxu0 0.0
    %601 = vmatpush2.msra.mxu0 0.0
    %602 = vmatprep.subr.mxu0 0.0
    %603 = vmatpush2.msra.mxu0 0.0
    %604 = vmatprep.subr.mxu0 0.0
    %605 = vmatpush2.msra.mxu0 0.0
    %606 = vmatprep.mubr.f32.mxu0 0.0
    %607 = vmatmul.mubr.f32.gmra.mxu0 %v531
    %v608 = vpop.f32.mrf.mxu0
    %v609 = vadd.f32 %v512, %v608
    %v610 = vpop.f32.mrf.mxu0
    %611 = vmatprep.mubr.f32.mxu0 0.0
    %612 = vmatmul.mubr.f32.gmra.mxu0 %v534
    %v613 = vpop.f32.mrf.mxu0
    %v614 = vadd.f32 %v517, %v613
    %v615 = vpop.f32.mrf.mxu0
    %616 = vmatprep.mubr.f32.mxu0 0.0
    %617 = vmatmul.mubr.f32.gmra.mxu0 %v537
    %v618 = vpop.f32.mrf.mxu0
    %v619 = vadd.f32 %v522, %v618
    %v620 = vpop.f32.mrf.mxu0
    %621 = vmatprep.mubr.f32.mxu0 0.0
    %622 = vmatmul.mubr.f32.gmra.mxu0 %v540
    %v623 = vpop.f32.mrf.mxu0
    %v624 = vadd.f32 %v527, %v623
    %v625 = vpop.f32.mrf.mxu0
    %626 = vdwg.mxu0
    %s627 = scalar_lea.vmem %s1, 64
    %v628 = vld [vmem:[%s627] sm:$0xff]
    %v629 = vld [vmem:[%s627 + $0x8] sm:$0xff]
    %v630 = vld [vmem:[%s627 + $0x10] sm:$0xff]
    %v631 = vld [vmem:[%s627 + $0x18] sm:$0xff]
    %v633 = vsel %vm223, %v628, 0
    %v636 = vsel %vm223, %v629, 0
    %v639 = vsel %vm223, %v630, 0
    %v642 = vsel %vm223, %v631, 0
    %644 = vmatprep.subr.mxu0 0.0
    %645 = vmatpush1.msra.mxu0 0.0
    %646 = vmatprep.subr.mxu0 0.0
    %647 = vmatpush1.msra.mxu0 0.0
    %648 = vmatprep.subr.mxu0 0.0
    %649 = vmatpush1.msra.mxu0 0.0
    %650 = vmatprep.subr.mxu0 0.0
    %651 = vmatpush1.msra.mxu0 0.0
    %652 = vmatprep.subr.mxu0 0.0
    %653 = vmatpush1.msra.mxu0 0.0
    %654 = vmatprep.subr.mxu0 0.0
    %655 = vmatpush1.msra.mxu0 0.0
    %656 = vmatprep.subr.mxu0 0.0
    %657 = vmatpush1.msra.mxu0 0.0
    %658 = vmatprep.subr.mxu0 0.0
    %659 = vmatpush1.msra.mxu0 0.0
    %660 = vmatprep.subr.mxu0 0.0
    %661 = vmatpush1.msra.mxu0 %v218
    %662 = vmatprep.subr.mxu0 0.0
    %663 = vmatpush1.msra.mxu0 %v217
    %664 = vmatprep.subr.mxu0 0.0
    %665 = vmatpush1.msra.mxu0 %v216
    %666 = vmatprep.subr.mxu0 0.0
    %667 = vmatpush1.msra.mxu0 %v215
    %668 = vmatprep.subr.mxu0 0.0
    %669 = vmatpush1.msra.mxu0 %v214
    %670 = vmatprep.subr.mxu0 0.0
    %671 = vmatpush1.msra.mxu0 %v213
    %672 = vmatprep.subr.mxu0 0.0
    %673 = vmatpush1.msra.mxu0 %v212
    %674 = vmatprep.subr.mxu0 0.0
    %675 = vmatpush1.msra.mxu0 %v211
    %676 = vmatprep.subr.mxu0 0.0
    %677 = vmatpush2.msra.mxu0 0.0
    %678 = vmatprep.subr.mxu0 0.0
    %679 = vmatpush2.msra.mxu0 0.0
    %680 = vmatprep.subr.mxu0 0.0
    %681 = vmatpush2.msra.mxu0 0.0
    %682 = vmatprep.subr.mxu0 0.0
    %683 = vmatpush2.msra.mxu0 0.0
    %684 = vmatprep.subr.mxu0 0.0
    %685 = vmatpush2.msra.mxu0 0.0
    %686 = vmatprep.subr.mxu0 0.0
    %687 = vmatpush2.msra.mxu0 0.0
    %688 = vmatprep.subr.mxu0 0.0
    %689 = vmatpush2.msra.mxu0 0.0
    %690 = vmatprep.subr.mxu0 0.0
    %691 = vmatpush2.msra.mxu0 0.0
    %692 = vmatprep.subr.mxu0 0.0
    %693 = vmatpush2.msra.mxu0 0.0
    %694 = vmatprep.subr.mxu0 0.0
    %695 = vmatpush2.msra.mxu0 0.0
    %696 = vmatprep.subr.mxu0 0.0
    %697 = vmatpush2.msra.mxu0 0.0
    %698 = vmatprep.subr.mxu0 0.0
    %699 = vmatpush2.msra.mxu0 0.0
    %700 = vmatprep.subr.mxu0 0.0
    %701 = vmatpush2.msra.mxu0 0.0
    %702 = vmatprep.subr.mxu0 0.0
    %703 = vmatpush2.msra.mxu0 0.0
    %704 = vmatprep.subr.mxu0 0.0
    %705 = vmatpush2.msra.mxu0 0.0
    %706 = vmatprep.subr.mxu0 0.0
    %707 = vmatpush2.msra.mxu0 0.0
    %708 = vmatprep.mubr.f32.mxu0 0.0
    %709 = vmatmul.mubr.f32.gmra.mxu0 %v633
    %v710 = vpop.f32.mrf.mxu0
    %v711 = vadd.f32 0.0, %v710
    %v712 = vpop.f32.mrf.mxu0
    %713 = vmatprep.mubr.f32.mxu0 0.0
    %714 = vmatmul.mubr.f32.gmra.mxu0 %v636
    %v715 = vpop.f32.mrf.mxu0
    %v716 = vadd.f32 0.0, %v715
    %v717 = vpop.f32.mrf.mxu0
    %718 = vmatprep.mubr.f32.mxu0 0.0
    %719 = vmatmul.mubr.f32.gmra.mxu0 %v639
    %v720 = vpop.f32.mrf.mxu0
    %v721 = vadd.f32 0.0, %v720
    %v722 = vpop.f32.mrf.mxu0
    %723 = vmatprep.mubr.f32.mxu0 0.0
    %724 = vmatmul.mubr.f32.gmra.mxu0 %v642
    %v725 = vpop.f32.mrf.mxu0
    %v726 = vadd.f32 0.0, %v725
    %v727 = vpop.f32.mrf.mxu0
    %728 = vdwg.mxu0
    %s729 = scalar_lea.vmem [#allocation4], 64
    %v730 = vld [vmem:[%s729] sm:$0xff]
    %v731 = vld [vmem:[%s729 + $0x8] sm:$0xff]
    %v732 = vld [vmem:[%s729 + $0x10] sm:$0xff]
    %v733 = vld [vmem:[%s729 + $0x18] sm:$0xff]
    %v735 = vsel %vm432, %v711, 0
    %v738 = vsel %vm432, %v716, 0
    %v741 = vsel %vm432, %v721, 0
    %v744 = vsel %vm432, %v726, 0
    %746 = vmatprep.subr.mxu0 0.0
    %747 = vmatpush1.msra.mxu0 0.0
    %748 = vmatprep.subr.mxu0 0.0
    %749 = vmatpush1.msra.mxu0 0.0
    %750 = vmatprep.subr.mxu0 0.0
    %751 = vmatpush1.msra.mxu0 0.0
    %752 = vmatprep.subr.mxu0 0.0
    %753 = vmatpush1.msra.mxu0 0.0
    %754 = vmatprep.subr.mxu0 0.0
    %755 = vmatpush1.msra.mxu0 0.0
    %756 = vmatprep.subr.mxu0 0.0
    %757 = vmatpush1.msra.mxu0 0.0
    %758 = vmatprep.subr.mxu0 0.0
    %759 = vmatpush1.msra.mxu0 0.0
    %760 = vmatprep.subr.mxu0 0.0
    %761 = vmatpush1.msra.mxu0 0.0
    %762 = vmatprep.subr.mxu0 0.0
    %763 = vmatpush1.msra.mxu0 0.0
    %764 = vmatprep.subr.mxu0 0.0
    %765 = vmatpush1.msra.mxu0 0.0
    %766 = vmatprep.subr.mxu0 0.0
    %767 = vmatpush1.msra.mxu0 0.0
    %768 = vmatprep.subr.mxu0 0.0
    %769 = vmatpush1.msra.mxu0 0.0
    %770 = vmatprep.subr.mxu0 0.0
    %771 = vmatpush1.msra.mxu0 %v733
    %772 = vmatprep.subr.mxu0 0.0
    %773 = vmatpush1.msra.mxu0 %v732
    %774 = vmatprep.subr.mxu0 0.0
    %775 = vmatpush1.msra.mxu0 %v731
    %776 = vmatprep.subr.mxu0 0.0
    %777 = vmatpush1.msra.mxu0 %v730
    %778 = vmatprep.subr.mxu0 0.0
    %779 = vmatpush2.msra.mxu0 0.0
    %780 = vmatprep.subr.mxu0 0.0
    %781 = vmatpush2.msra.mxu0 0.0
    %782 = vmatprep.subr.mxu0 0.0
    %783 = vmatpush2.msra.mxu0 0.0
    %784 = vmatprep.subr.mxu0 0.0
    %785 = vmatpush2.msra.mxu0 0.0
    %786 = vmatprep.subr.mxu0 0.0
    %787 = vmatpush2.msra.mxu0 0.0
    %788 = vmatprep.subr.mxu0 0.0
    %789 = vmatpush2.msra.mxu0 0.0
    %790 = vmatprep.subr.mxu0 0.0
    %791 = vmatpush2.msra.mxu0 0.0
    %792 = vmatprep.subr.mxu0 0.0
    %793 = vmatpush2.msra.mxu0 0.0
    %794 = vmatprep.subr.mxu0 0.0
    %795 = vmatpush2.msra.mxu0 0.0
    %796 = vmatprep.subr.mxu0 0.0
    %797 = vmatpush2.msra.mxu0 0.0
    %798 = vmatprep.subr.mxu0 0.0
    %799 = vmatpush2.msra.mxu0 0.0
    %800 = vmatprep.subr.mxu0 0.0
    %801 = vmatpush2.msra.mxu0 0.0
    %802 = vmatprep.subr.mxu0 0.0
    %803 = vmatpush2.msra.mxu0 0.0
    %804 = vmatprep.subr.mxu0 0.0
    %805 = vmatpush2.msra.mxu0 0.0
    %806 = vmatprep.subr.mxu0 0.0
    %807 = vmatpush2.msra.mxu0 0.0
    %808 = vmatprep.subr.mxu0 0.0
    %809 = vmatpush2.msra.mxu0 0.0
    %810 = vmatprep.mubr.f32.mxu0 0.0
    %811 = vmatmul.mubr.f32.gmra.mxu0 %v735
    %v812 = vpop.f32.mrf.mxu0
    %v813 = vadd.f32 0.0, %v812
    %v814 = vpop.f32.mrf.mxu0
    %815 = vmatprep.mubr.f32.mxu0 0.0
    %816 = vmatmul.mubr.f32.gmra.mxu0 %v738
    %v817 = vpop.f32.mrf.mxu0
    %v818 = vadd.f32 0.0, %v817
    %v819 = vpop.f32.mrf.mxu0
    %820 = vmatprep.mubr.f32.mxu0 0.0
    %821 = vmatmul.mubr.f32.gmra.mxu0 %v741
    %v822 = vpop.f32.mrf.mxu0
    %v823 = vadd.f32 0.0, %v822
    %v824 = vpop.f32.mrf.mxu0
    %825 = vmatprep.mubr.f32.mxu0 0.0
    %826 = vmatmul.mubr.f32.gmra.mxu0 %v744
    %v827 = vpop.f32.mrf.mxu0
    %v828 = vadd.f32 0.0, %v827
    %v829 = vpop.f32.mrf.mxu0
    %830 = vdwg.mxu0
    %v831 = vadd.f32 %v609, %v813
    %v832 = vadd.f32 %v614, %v818
    %v833 = vadd.f32 %v619, %v823
    %v834 = vadd.f32 %v624, %v828
    %v835 = vld [vmem:[%s3] sm:$0x1]
    %v837 = vlaneseq
    %v838 = vshrl.u32 %v837, 7
    %v839 = vsub.s32 0, %v838
    %v840 = vrot.slane %v835, %v839
    %v842 = vadd.f32 %v831, %v840
    %v843 = vadd.f32 %v832, %v840
    %v844 = vadd.f32 %v833, %v840
    %v845 = vadd.f32 %v834, %v840
    %v846 = vmul.f32 %v842, 0.5
    %v847 = vmul.f32 %v843, 0.5
    %v848 = vmul.f32 %v844, 0.5
    %v849 = vmul.f32 %v845, 0.5
    %v850 = vmul.f32 %v842, 0.70710677
    %v851 = vmul.f32 %v843, 0.70710677
    %v852 = vmul.f32 %v844, 0.70710677
    %v853 = vmul.f32 %v845, 0.70710677
    %v854 = verf.f32.pop %v850
    %v855 = verf.f32.pop %v851
    %v856 = verf.f32.pop %v852
    %v857 = verf.f32.pop %v853
    %v858 = vadd.f32 %v854, 1.0
    %v859 = vadd.f32 %v855, 1.0
    %v860 = vadd.f32 %v856, 1.0
    %v861 = vadd.f32 %v857, 1.0
    %v862 = vmul.f32 %v846, %v858
    %v863 = vmul.f32 %v847, %v859
    %v864 = vmul.f32 %v848, %v860
    %v865 = vmul.f32 %v849, %v861
    %v866 = vld [vmem:[#allocation6] sm:$0xff]
    %v867 = vld [vmem:[#allocation6 + $0x8] sm:$0xff]
    %v868 = vld [vmem:[#allocation6 + $0x10] sm:$0xff]
    %v869 = vld [vmem:[#allocation6 + $0x18] sm:$0xff]
    %v871 = vsel %vm432, %v866, 0
    %v874 = vsel %vm432, %v867, 0
    %v877 = vsel %vm432, %v868, 0
    %v880 = vsel %vm432, %v869, 0
    %882 = vmatprep.subr.mxu0 0.0
    %883 = vmatpush1.msra.mxu0 0.0
    %884 = vmatprep.subr.mxu0 0.0
    %885 = vmatpush1.msra.mxu0 0.0
    %886 = vmatprep.subr.mxu0 0.0
    %887 = vmatpush1.msra.mxu0 0.0
    %888 = vmatprep.subr.mxu0 0.0
    %889 = vmatpush1.msra.mxu0 0.0
    %890 = vmatprep.subr.mxu0 0.0
    %891 = vmatpush1.msra.mxu0 0.0
    %892 = vmatprep.subr.mxu0 0.0
    %893 = vmatpush1.msra.mxu0 0.0
    %894 = vmatprep.subr.mxu0 0.0
    %895 = vmatpush1.msra.mxu0 0.0
    %896 = vmatprep.subr.mxu0 0.0
    %897 = vmatpush1.msra.mxu0 0.0
    %898 = vmatprep.subr.mxu0 0.0
    %899 = vmatpush1.msra.mxu0 0.0
    %900 = vmatprep.subr.mxu0 0.0
    %901 = vmatpush1.msra.mxu0 0.0
    %902 = vmatprep.subr.mxu0 0.0
    %903 = vmatpush1.msra.mxu0 0.0
    %904 = vmatprep.subr.mxu0 0.0
    %905 = vmatpush1.msra.mxu0 0.0
    %906 = vmatprep.subr.mxu0 0.0
    %907 = vmatpush1.msra.mxu0 %v865
    %908 = vmatprep.subr.mxu0 0.0
    %909 = vmatpush1.msra.mxu0 %v864
    %910 = vmatprep.subr.mxu0 0.0
    %911 = vmatpush1.msra.mxu0 %v863
    %912 = vmatprep.subr.mxu0 0.0
    %913 = vmatpush1.msra.mxu0 %v862
    %914 = vmatprep.subr.mxu0 0.0
    %915 = vmatpush2.msra.mxu0 0.0
    %916 = vmatprep.subr.mxu0 0.0
    %917 = vmatpush2.msra.mxu0 0.0
    %918 = vmatprep.subr.mxu0 0.0
    %919 = vmatpush2.msra.mxu0 0.0
    %920 = vmatprep.subr.mxu0 0.0
    %921 = vmatpush2.msra.mxu0 0.0
    %922 = vmatprep.subr.mxu0 0.0
    %923 = vmatpush2.msra.mxu0 0.0
    %924 = vmatprep.subr.mxu0 0.0
    %925 = vmatpush2.msra.mxu0 0.0
    %926 = vmatprep.subr.mxu0 0.0
    %927 = vmatpush2.msra.mxu0 0.0
    %928 = vmatprep.subr.mxu0 0.0
    %929 = vmatpush2.msra.mxu0 0.0
    %930 = vmatprep.subr.mxu0 0.0
    %931 = vmatpush2.msra.mxu0 0.0
    %932 = vmatprep.subr.mxu0 0.0
    %933 = vmatpush2.msra.mxu0 0.0
    %934 = vmatprep.subr.mxu0 0.0
    %935 = vmatpush2.msra.mxu0 0.0
    %936 = vmatprep.subr.mxu0 0.0
    %937 = vmatpush2.msra.mxu0 0.0
    %938 = vmatprep.subr.mxu0 0.0
    %939 = vmatpush2.msra.mxu0 0.0
    %940 = vmatprep.subr.mxu0 0.0
    %941 = vmatpush2.msra.mxu0 0.0
    %942 = vmatprep.subr.mxu0 0.0
    %943 = vmatpush2.msra.mxu0 0.0
    %944 = vmatprep.subr.mxu0 0.0
    %945 = vmatpush2.msra.mxu0 0.0
    %946 = vmatprep.mubr.f32.mxu0 0.0
    %947 = vmatmul.mubr.f32.gmra.mxu0 %v871
    %v948 = vpop.f32.mrf.mxu0
    %v949 = vadd.f32 0.0, %v948
    %v950 = vpop.f32.mrf.mxu0
    %951 = vmatprep.mubr.f32.mxu0 0.0
    %952 = vmatmul.mubr.f32.gmra.mxu0 %v874
    %v953 = vpop.f32.mrf.mxu0
    %v954 = vadd.f32 0.0, %v953
    %v955 = vpop.f32.mrf.mxu0
    %956 = vmatprep.mubr.f32.mxu0 0.0
    %957 = vmatmul.mubr.f32.gmra.mxu0 %v877
    %v958 = vpop.f32.mrf.mxu0
    %v959 = vadd.f32 0.0, %v958
    %v960 = vpop.f32.mrf.mxu0
    %961 = vmatprep.mubr.f32.mxu0 0.0
    %962 = vmatmul.mubr.f32.gmra.mxu0 %v880
    %v963 = vpop.f32.mrf.mxu0
    %v964 = vadd.f32 0.0, %v963
    %v965 = vpop.f32.mrf.mxu0
    %966 = vdwg.mxu0
    %v967 = vld [vmem:[%s5] sm:$0xff]
    %v968 = vld [vmem:[%s5 + $0x8] sm:$0xff]
    %v969 = vld [vmem:[%s5 + $0x10] sm:$0xff]
    %v970 = vld [vmem:[%s5 + $0x18] sm:$0xff]
    %v971 = vld [vmem:[%s5 + $0x20] sm:$0xff]
    %v972 = vld [vmem:[%s5 + $0x28] sm:$0xff]
    %v973 = vld [vmem:[%s5 + $0x30] sm:$0xff]
    %v974 = vld [vmem:[%s5 + $0x38] sm:$0xff]
    %v975 = vld [vmem:[%s5 + $0x40] sm:$0xff]
    %v976 = vld [vmem:[%s5 + $0x48] sm:$0xff]
    %v977 = vld [vmem:[%s5 + $0x50] sm:$0xff]
    %v978 = vld [vmem:[%s5 + $0x58] sm:$0xff]
    %v979 = vld [vmem:[%s5 + $0x60] sm:$0xff]
    %v980 = vld [vmem:[%s5 + $0x68] sm:$0xff]
    %v981 = vld [vmem:[%s5 + $0x70] sm:$0xff]
    %v982 = vld [vmem:[%s5 + $0x78] sm:$0xff]
    %s983 = scalar_lea.vmem [#allocation6], 32
    %v984 = vld [vmem:[%s983] sm:$0xff]
    %v985 = vld [vmem:[%s983 + $0x8] sm:$0xff]
    %v986 = vld [vmem:[%s983 + $0x10] sm:$0xff]
    %v987 = vld [vmem:[%s983 + $0x18] sm:$0xff]
    %v989 = vsel %vm432, %v984, 0
    %v992 = vsel %vm432, %v985, 0
    %v995 = vsel %vm432, %v986, 0
    %v998 = vsel %vm432, %v987, 0
    %1000 = vmatprep.subr.mxu0 0.0
    %1001 = vmatpush1.msra.mxu0 0.0
    %1002 = vmatprep.subr.mxu0 0.0
    %1003 = vmatpush1.msra.mxu0 0.0
    %1004 = vmatprep.subr.mxu0 0.0
    %1005 = vmatpush1.msra.mxu0 0.0
    %1006 = vmatprep.subr.mxu0 0.0
    %1007 = vmatpush1.msra.mxu0 0.0
    %1008 = vmatprep.subr.mxu0 0.0
    %1009 = vmatpush1.msra.mxu0 0.0
    %1010 = vmatprep.subr.mxu0 0.0
    %1011 = vmatpush1.msra.mxu0 0.0
    %1012 = vmatprep.subr.mxu0 0.0
    %1013 = vmatpush1.msra.mxu0 0.0
    %1014 = vmatprep.subr.mxu0 0.0
    %1015 = vmatpush1.msra.mxu0 0.0
    %1016 = vmatprep.subr.mxu0 0.0
    %1017 = vmatpush1.msra.mxu0 0.0
    %1018 = vmatprep.subr.mxu0 0.0
    %1019 = vmatpush1.msra.mxu0 0.0
    %1020 = vmatprep.subr.mxu0 0.0
    %1021 = vmatpush1.msra.mxu0 0.0
    %1022 = vmatprep.subr.mxu0 0.0
    %1023 = vmatpush1.msra.mxu0 0.0
    %1024 = vmatprep.subr.mxu0 0.0
    %1025 = vmatpush1.msra.mxu0 %v865
    %1026 = vmatprep.subr.mxu0 0.0
    %1027 = vmatpush1.msra.mxu0 %v864
    %1028 = vmatprep.subr.mxu0 0.0
    %1029 = vmatpush1.msra.mxu0 %v863
    %1030 = vmatprep.subr.mxu0 0.0
    %1031 = vmatpush1.msra.mxu0 %v862
    %1032 = vmatprep.subr.mxu0 0.0
    %1033 = vmatpush2.msra.mxu0 0.0
    %1034 = vmatprep.subr.mxu0 0.0
    %1035 = vmatpush2.msra.mxu0 0.0
    %1036 = vmatprep.subr.mxu0 0.0
    %1037 = vmatpush2.msra.mxu0 0.0
    %1038 = vmatprep.subr.mxu0 0.0
    %1039 = vmatpush2.msra.mxu0 0.0
    %1040 = vmatprep.subr.mxu0 0.0
    %1041 = vmatpush2.msra.mxu0 0.0
    %1042 = vmatprep.subr.mxu0 0.0
    %1043 = vmatpush2.msra.mxu0 0.0
    %1044 = vmatprep.subr.mxu0 0.0
    %1045 = vmatpush2.msra.mxu0 0.0
    %1046 = vmatprep.subr.mxu0 0.0
    %1047 = vmatpush2.msra.mxu0 0.0
    %1048 = vmatprep.subr.mxu0 0.0
    %1049 = vmatpush2.msra.mxu0 0.0
    %1050 = vmatprep.subr.mxu0 0.0
    %1051 = vmatpush2.msra.mxu0 0.0
    %1052 = vmatprep.subr.mxu0 0.0
    %1053 = vmatpush2.msra.mxu0 0.0
    %1054 = vmatprep.subr.mxu0 0.0
    %1055 = vmatpush2.msra.mxu0 0.0
    %1056 = vmatprep.subr.mxu0 0.0
    %1057 = vmatpush2.msra.mxu0 0.0
    %1058 = vmatprep.subr.mxu0 0.0
    %1059 = vmatpush2.msra.mxu0 0.0
    %1060 = vmatprep.subr.mxu0 0.0
    %1061 = vmatpush2.msra.mxu0 0.0
    %1062 = vmatprep.subr.mxu0 0.0
    %1063 = vmatpush2.msra.mxu0 0.0
    %1064 = vmatprep.mubr.f32.mxu0 0.0
    %1065 = vmatmul.mubr.f32.gmra.mxu0 %v989
    %v1066 = vpop.f32.mrf.mxu0
    %v1067 = vadd.f32 0.0, %v1066
    %v1068 = vpop.f32.mrf.mxu0
    %1069 = vmatprep.mubr.f32.mxu0 0.0
    %1070 = vmatmul.mubr.f32.gmra.mxu0 %v992
    %v1071 = vpop.f32.mrf.mxu0
    %v1072 = vadd.f32 0.0, %v1071
    %v1073 = vpop.f32.mrf.mxu0
    %1074 = vmatprep.mubr.f32.mxu0 0.0
    %1075 = vmatmul.mubr.f32.gmra.mxu0 %v995
    %v1076 = vpop.f32.mrf.mxu0
    %v1077 = vadd.f32 0.0, %v1076
    %v1078 = vpop.f32.mrf.mxu0
    %1079 = vmatprep.mubr.f32.mxu0 0.0
    %1080 = vmatmul.mubr.f32.gmra.mxu0 %v998
    %v1081 = vpop.f32.mrf.mxu0
    %v1082 = vadd.f32 0.0, %v1081
    %v1083 = vpop.f32.mrf.mxu0
    %1084 = vdwg.mxu0
    %s1085 = scalar_lea.vmem %s5, 128
    %v1086 = vld [vmem:[%s1085] sm:$0xff]
    %v1087 = vld [vmem:[%s1085 + $0x8] sm:$0xff]
    %v1088 = vld [vmem:[%s1085 + $0x10] sm:$0xff]
    %v1089 = vld [vmem:[%s1085 + $0x18] sm:$0xff]
    %v1090 = vld [vmem:[%s1085 + $0x20] sm:$0xff]
    %v1091 = vld [vmem:[%s1085 + $0x28] sm:$0xff]
    %v1092 = vld [vmem:[%s1085 + $0x30] sm:$0xff]
    %v1093 = vld [vmem:[%s1085 + $0x38] sm:$0xff]
    %v1094 = vld [vmem:[%s1085 + $0x40] sm:$0xff]
    %v1095 = vld [vmem:[%s1085 + $0x48] sm:$0xff]
    %v1096 = vld [vmem:[%s1085 + $0x50] sm:$0xff]
    %v1097 = vld [vmem:[%s1085 + $0x58] sm:$0xff]
    %v1098 = vld [vmem:[%s1085 + $0x60] sm:$0xff]
    %v1099 = vld [vmem:[%s1085 + $0x68] sm:$0xff]
    %v1100 = vld [vmem:[%s1085 + $0x70] sm:$0xff]
    %v1101 = vld [vmem:[%s1085 + $0x78] sm:$0xff]
    %1102 = vmatprep.subr.mxu0 0.0
    %1103 = vmatpush1.msra.mxu0 %v1101
    %1104 = vmatprep.subr.mxu0 0.0
    %1105 = vmatpush1.msra.mxu0 %v1100
    %1106 = vmatprep.subr.mxu0 0.0
    %1107 = vmatpush1.msra.mxu0 %v1099
    %1108 = vmatprep.subr.mxu0 0.0
    %1109 = vmatpush1.msra.mxu0 %v1098
    %1110 = vmatprep.subr.mxu0 0.0
    %1111 = vmatpush1.msra.mxu0 %v1097
    %1112 = vmatprep.subr.mxu0 0.0
    %1113 = vmatpush1.msra.mxu0 %v1096
    %1114 = vmatprep.subr.mxu0 0.0
    %1115 = vmatpush1.msra.mxu0 %v1095
    %1116 = vmatprep.subr.mxu0 0.0
    %1117 = vmatpush1.msra.mxu0 %v1094
    %1118 = vmatprep.subr.mxu0 0.0
    %1119 = vmatpush1.msra.mxu0 %v1093
    %1120 = vmatprep.subr.mxu0 0.0
    %1121 = vmatpush1.msra.mxu0 %v1092
    %1122 = vmatprep.subr.mxu0 0.0
    %1123 = vmatpush1.msra.mxu0 %v1091
    %1124 = vmatprep.subr.mxu0 0.0
    %1125 = vmatpush1.msra.mxu0 %v1090
    %1126 = vmatprep.subr.mxu0 0.0
    %1127 = vmatpush1.msra.mxu0 %v1089
    %1128 = vmatprep.subr.mxu0 0.0
    %1129 = vmatpush1.msra.mxu0 %v1088
    %1130 = vmatprep.subr.mxu0 0.0
    %1131 = vmatpush1.msra.mxu0 %v1087
    %1132 = vmatprep.subr.mxu0 0.0
    %1133 = vmatpush1.msra.mxu0 %v1086
    %1134 = vmatprep.subr.mxu0 0.0
    %1135 = vmatpush2.msra.mxu0 0.0
    %1136 = vmatprep.subr.mxu0 0.0
    %1137 = vmatpush2.msra.mxu0 0.0
    %1138 = vmatprep.subr.mxu0 0.0
    %1139 = vmatpush2.msra.mxu0 0.0
    %1140 = vmatprep.subr.mxu0 0.0
    %1141 = vmatpush2.msra.mxu0 0.0
    %1142 = vmatprep.subr.mxu0 0.0
    %1143 = vmatpush2.msra.mxu0 0.0
    %1144 = vmatprep.subr.mxu0 0.0
    %1145 = vmatpush2.msra.mxu0 0.0
    %1146 = vmatprep.subr.mxu0 0.0
    %1147 = vmatpush2.msra.mxu0 0.0
    %1148 = vmatprep.subr.mxu0 0.0
    %1149 = vmatpush2.msra.mxu0 0.0
    %1150 = vmatprep.subr.mxu0 0.0
    %1151 = vmatpush2.msra.mxu0 0.0
    %1152 = vmatprep.subr.mxu0 0.0
    %1153 = vmatpush2.msra.mxu0 0.0
    %1154 = vmatprep.subr.mxu0 0.0
    %1155 = vmatpush2.msra.mxu0 0.0
    %1156 = vmatprep.subr.mxu0 0.0
    %1157 = vmatpush2.msra.mxu0 0.0
    %1158 = vmatprep.subr.mxu0 0.0
    %1159 = vmatpush2.msra.mxu0 0.0
    %1160 = vmatprep.subr.mxu0 0.0
    %1161 = vmatpush2.msra.mxu0 0.0
    %1162 = vmatprep.subr.mxu0 0.0
    %1163 = vmatpush2.msra.mxu0 0.0
    %1164 = vmatprep.subr.mxu0 0.0
    %1165 = vmatpush2.msra.mxu0 0.0
    %1166 = vmatprep.mubr.f32.mxu0 0.0
    %1167 = vmatmul.mubr.f32.gmra.mxu0 %v1067
    %v1168 = vpop.f32.mrf.mxu0
    %v1169 = vadd.f32 0.0, %v1168
    %v1170 = vpop.f32.mrf.mxu0
    %1171 = vmatprep.mubr.f32.mxu0 0.0
    %1172 = vmatmul.mubr.f32.gmra.mxu0 %v1072
    %v1173 = vpop.f32.mrf.mxu0
    %v1174 = vadd.f32 0.0, %v1173
    %v1175 = vpop.f32.mrf.mxu0
    %1176 = vmatprep.mubr.f32.mxu0 0.0
    %1177 = vmatmul.mubr.f32.gmra.mxu0 %v1077
    %v1178 = vpop.f32.mrf.mxu0
    %v1179 = vadd.f32 0.0, %v1178
    %v1180 = vpop.f32.mrf.mxu0
    %1181 = vmatprep.mubr.f32.mxu0 0.0
    %1182 = vmatmul.mubr.f32.gmra.mxu0 %v1082
    %v1183 = vpop.f32.mrf.mxu0
    %v1184 = vadd.f32 0.0, %v1183
    %v1185 = vpop.f32.mrf.mxu0
    %1186 = vdwg.mxu0
    %1187 = vmatprep.subr.mxu0 0.0
    %1188 = vmatpush1.msra.mxu0 %v982
    %1189 = vmatprep.subr.mxu0 0.0
    %1190 = vmatpush1.msra.mxu0 %v981
    %1191 = vmatprep.subr.mxu0 0.0
    %1192 = vmatpush1.msra.mxu0 %v980
    %1193 = vmatprep.subr.mxu0 0.0
    %1194 = vmatpush1.msra.mxu0 %v979
    %1195 = vmatprep.subr.mxu0 0.0
    %1196 = vmatpush1.msra.mxu0 %v978
    %1197 = vmatprep.subr.mxu0 0.0
    %1198 = vmatpush1.msra.mxu0 %v977
    %1199 = vmatprep.subr.mxu0 0.0
    %1200 = vmatpush1.msra.mxu0 %v976
    %1201 = vmatprep.subr.mxu0 0.0
    %1202 = vmatpush1.msra.mxu0 %v975
    %1203 = vmatprep.subr.mxu0 0.0
    %1204 = vmatpush1.msra.mxu0 %v974
    %1205 = vmatprep.subr.mxu0 0.0
    %1206 = vmatpush1.msra.mxu0 %v973
    %1207 = vmatprep.subr.mxu0 0.0
    %1208 = vmatpush1.msra.mxu0 %v972
    %1209 = vmatprep.subr.mxu0 0.0
    %1210 = vmatpush1.msra.mxu0 %v971
    %1211 = vmatprep.subr.mxu0 0.0
    %1212 = vmatpush1.msra.mxu0 %v970
    %1213 = vmatprep.subr.mxu0 0.0
    %1214 = vmatpush1.msra.mxu0 %v969
    %1215 = vmatprep.subr.mxu0 0.0
    %1216 = vmatpush1.msra.mxu0 %v968
    %1217 = vmatprep.subr.mxu0 0.0
    %1218 = vmatpush1.msra.mxu0 %v967
    %1219 = vmatprep.subr.mxu0 0.0
    %1220 = vmatpush2.msra.mxu0 0.0
    %1221 = vmatprep.subr.mxu0 0.0
    %1222 = vmatpush2.msra.mxu0 0.0
    %1223 = vmatprep.subr.mxu0 0.0
    %1224 = vmatpush2.msra.mxu0 0.0
    %1225 = vmatprep.subr.mxu0 0.0
    %1226 = vmatpush2.msra.mxu0 0.0
    %1227 = vmatprep.subr.mxu0 0.0
    %1228 = vmatpush2.msra.mxu0 0.0
    %1229 = vmatprep.subr.mxu0 0.0
    %1230 = vmatpush2.msra.mxu0 0.0
    %1231 = vmatprep.subr.mxu0 0.0
    %1232 = vmatpush2.msra.mxu0 0.0
    %1233 = vmatprep.subr.mxu0 0.0
    %1234 = vmatpush2.msra.mxu0 0.0
    %1235 = vmatprep.subr.mxu0 0.0
    %1236 = vmatpush2.msra.mxu0 0.0
    %1237 = vmatprep.subr.mxu0 0.0
    %1238 = vmatpush2.msra.mxu0 0.0
    %1239 = vmatprep.subr.mxu0 0.0
    %1240 = vmatpush2.msra.mxu0 0.0
    %1241 = vmatprep.subr.mxu0 0.0
    %1242 = vmatpush2.msra.mxu0 0.0
    %1243 = vmatprep.subr.mxu0 0.0
    %1244 = vmatpush2.msra.mxu0 0.0
    %1245 = vmatprep.subr.mxu0 0.0
    %1246 = vmatpush2.msra.mxu0 0.0
    %1247 = vmatprep.subr.mxu0 0.0
    %1248 = vmatpush2.msra.mxu0 0.0
    %1249 = vmatprep.subr.mxu0 0.0
    %1250 = vmatpush2.msra.mxu0 0.0
    %1251 = vmatprep.mubr.f32.mxu0 0.0
    %1252 = vmatmul.mubr.f32.gmra.mxu0 %v949
    %v1253 = vpop.f32.mrf.mxu0
    %v1254 = vadd.f32 %v1169, %v1253
    %v1255 = vpop.f32.mrf.mxu0
    %1256 = vmatprep.mubr.f32.mxu0 0.0
    %1257 = vmatmul.mubr.f32.gmra.mxu0 %v954
    %v1258 = vpop.f32.mrf.mxu0
    %v1259 = vadd.f32 %v1174, %v1258
    %v1260 = vpop.f32.mrf.mxu0
    %1261 = vmatprep.mubr.f32.mxu0 0.0
    %1262 = vmatmul.mubr.f32.gmra.mxu0 %v959
    %v1263 = vpop.f32.mrf.mxu0
    %v1264 = vadd.f32 %v1179, %v1263
    %v1265 = vpop.f32.mrf.mxu0
    %1266 = vmatprep.mubr.f32.mxu0 0.0
    %1267 = vmatmul.mubr.f32.gmra.mxu0 %v964
    %v1268 = vpop.f32.mrf.mxu0
    %v1269 = vadd.f32 %v1184, %v1268
    %v1270 = vpop.f32.mrf.mxu0
    %1271 = vdwg.mxu0
    %s1272 = scalar_lea.vmem [#allocation6], 64
    %v1273 = vld [vmem:[%s1272] sm:$0xff]
    %v1274 = vld [vmem:[%s1272 + $0x8] sm:$0xff]
    %v1275 = vld [vmem:[%s1272 + $0x10] sm:$0xff]
    %v1276 = vld [vmem:[%s1272 + $0x18] sm:$0xff]
    %v1278 = vsel %vm432, %v1273, 0
    %v1281 = vsel %vm432, %v1274, 0
    %v1284 = vsel %vm432, %v1275, 0
    %v1287 = vsel %vm432, %v1276, 0
    %1289 = vmatprep.subr.mxu0 0.0
    %1290 = vmatpush1.msra.mxu0 0.0
    %1291 = vmatprep.subr.mxu0 0.0
    %1292 = vmatpush1.msra.mxu0 0.0
    %1293 = vmatprep.subr.mxu0 0.0
    %1294 = vmatpush1.msra.mxu0 0.0
    %1295 = vmatprep.subr.mxu0 0.0
    %1296 = vmatpush1.msra.mxu0 0.0
    %1297 = vmatprep.subr.mxu0 0.0
    %1298 = vmatpush1.msra.mxu0 0.0
    %1299 = vmatprep.subr.mxu0 0.0
    %1300 = vmatpush1.msra.mxu0 0.0
    %1301 = vmatprep.subr.mxu0 0.0
    %1302 = vmatpush1.msra.mxu0 0.0
    %1303 = vmatprep.subr.mxu0 0.0
    %1304 = vmatpush1.msra.mxu0 0.0
    %1305 = vmatprep.subr.mxu0 0.0
    %1306 = vmatpush1.msra.mxu0 0.0
    %1307 = vmatprep.subr.mxu0 0.0
    %1308 = vmatpush1.msra.mxu0 0.0
    %1309 = vmatprep.subr.mxu0 0.0
    %1310 = vmatpush1.msra.mxu0 0.0
    %1311 = vmatprep.subr.mxu0 0.0
    %1312 = vmatpush1.msra.mxu0 0.0
    %1313 = vmatprep.subr.mxu0 0.0
    %1314 = vmatpush1.msra.mxu0 %v865
    %1315 = vmatprep.subr.mxu0 0.0
    %1316 = vmatpush1.msra.mxu0 %v864
    %1317 = vmatprep.subr.mxu0 0.0
    %1318 = vmatpush1.msra.mxu0 %v863
    %1319 = vmatprep.subr.mxu0 0.0
    %1320 = vmatpush1.msra.mxu0 %v862
    %1321 = vmatprep.subr.mxu0 0.0
    %1322 = vmatpush2.msra.mxu0 0.0
    %1323 = vmatprep.subr.mxu0 0.0
    %1324 = vmatpush2.msra.mxu0 0.0
    %1325 = vmatprep.subr.mxu0 0.0
    %1326 = vmatpush2.msra.mxu0 0.0
    %1327 = vmatprep.subr.mxu0 0.0
    %1328 = vmatpush2.msra.mxu0 0.0
    %1329 = vmatprep.subr.mxu0 0.0
    %1330 = vmatpush2.msra.mxu0 0.0
    %1331 = vmatprep.subr.mxu0 0.0
    %1332 = vmatpush2.msra.mxu0 0.0
    %1333 = vmatprep.subr.mxu0 0.0
    %1334 = vmatpush2.msra.mxu0 0.0
    %1335 = vmatprep.subr.mxu0 0.0
    %1336 = vmatpush2.msra.mxu0 0.0
    %1337 = vmatprep.subr.mxu0 0.0
    %1338 = vmatpush2.msra.mxu0 0.0
    %1339 = vmatprep.subr.mxu0 0.0
    %1340 = vmatpush2.msra.mxu0 0.0
    %1341 = vmatprep.subr.mxu0 0.0
    %1342 = vmatpush2.msra.mxu0 0.0
    %1343 = vmatprep.subr.mxu0 0.0
    %1344 = vmatpush2.msra.mxu0 0.0
    %1345 = vmatprep.subr.mxu0 0.0
    %1346 = vmatpush2.msra.mxu0 0.0
    %1347 = vmatprep.subr.mxu0 0.0
    %1348 = vmatpush2.msra.mxu0 0.0
    %1349 = vmatprep.subr.mxu0 0.0
    %1350 = vmatpush2.msra.mxu0 0.0
    %1351 = vmatprep.subr.mxu0 0.0
    %1352 = vmatpush2.msra.mxu0 0.0
    %1353 = vmatprep.mubr.f32.mxu0 0.0
    %1354 = vmatmul.mubr.f32.gmra.mxu0 %v1278
    %v1355 = vpop.f32.mrf.mxu0
    %v1356 = vadd.f32 0.0, %v1355
    %v1357 = vpop.f32.mrf.mxu0
    %1358 = vmatprep.mubr.f32.mxu0 0.0
    %1359 = vmatmul.mubr.f32.gmra.mxu0 %v1281
    %v1360 = vpop.f32.mrf.mxu0
    %v1361 = vadd.f32 0.0, %v1360
    %v1362 = vpop.f32.mrf.mxu0
    %1363 = vmatprep.mubr.f32.mxu0 0.0
    %1364 = vmatmul.mubr.f32.gmra.mxu0 %v1284
    %v1365 = vpop.f32.mrf.mxu0
    %v1366 = vadd.f32 0.0, %v1365
    %v1367 = vpop.f32.mrf.mxu0
    %1368 = vmatprep.mubr.f32.mxu0 0.0
    %1369 = vmatmul.mubr.f32.gmra.mxu0 %v1287
    %v1370 = vpop.f32.mrf.mxu0
    %v1371 = vadd.f32 0.0, %v1370
    %v1372 = vpop.f32.mrf.mxu0
    %1373 = vdwg.mxu0
    %s1374 = scalar_lea.vmem %s5, 256
    %v1375 = vld [vmem:[%s1374] sm:$0xff]
    %v1376 = vld [vmem:[%s1374 + $0x8] sm:$0xff]
    %v1377 = vld [vmem:[%s1374 + $0x10] sm:$0xff]
    %v1378 = vld [vmem:[%s1374 + $0x18] sm:$0xff]
    %v1379 = vld [vmem:[%s1374 + $0x20] sm:$0xff]
    %v1380 = vld [vmem:[%s1374 + $0x28] sm:$0xff]
    %v1381 = vld [vmem:[%s1374 + $0x30] sm:$0xff]
    %v1382 = vld [vmem:[%s1374 + $0x38] sm:$0xff]
    %v1383 = vld [vmem:[%s1374 + $0x40] sm:$0xff]
    %v1384 = vld [vmem:[%s1374 + $0x48] sm:$0xff]
    %v1385 = vld [vmem:[%s1374 + $0x50] sm:$0xff]
    %v1386 = vld [vmem:[%s1374 + $0x58] sm:$0xff]
    %v1387 = vld [vmem:[%s1374 + $0x60] sm:$0xff]
    %v1388 = vld [vmem:[%s1374 + $0x68] sm:$0xff]
    %v1389 = vld [vmem:[%s1374 + $0x70] sm:$0xff]
    %v1390 = vld [vmem:[%s1374 + $0x78] sm:$0xff]
    %1391 = vmatprep.subr.mxu0 0.0
    %1392 = vmatpush1.msra.mxu0 %v1390
    %1393 = vmatprep.subr.mxu0 0.0
    %1394 = vmatpush1.msra.mxu0 %v1389
    %1395 = vmatprep.subr.mxu0 0.0
    %1396 = vmatpush1.msra.mxu0 %v1388
    %1397 = vmatprep.subr.mxu0 0.0
    %1398 = vmatpush1.msra.mxu0 %v1387
    %1399 = vmatprep.subr.mxu0 0.0
    %1400 = vmatpush1.msra.mxu0 %v1386
    %1401 = vmatprep.subr.mxu0 0.0
    %1402 = vmatpush1.msra.mxu0 %v1385
    %1403 = vmatprep.subr.mxu0 0.0
    %1404 = vmatpush1.msra.mxu0 %v1384
    %1405 = vmatprep.subr.mxu0 0.0
    %1406 = vmatpush1.msra.mxu0 %v1383
    %1407 = vmatprep.subr.mxu0 0.0
    %1408 = vmatpush1.msra.mxu0 %v1382
    %1409 = vmatprep.subr.mxu0 0.0
    %1410 = vmatpush1.msra.mxu0 %v1381
    %1411 = vmatprep.subr.mxu0 0.0
    %1412 = vmatpush1.msra.mxu0 %v1380
    %1413 = vmatprep.subr.mxu0 0.0
    %1414 = vmatpush1.msra.mxu0 %v1379
    %1415 = vmatprep.subr.mxu0 0.0
    %1416 = vmatpush1.msra.mxu0 %v1378
    %1417 = vmatprep.subr.mxu0 0.0
    %1418 = vmatpush1.msra.mxu0 %v1377
    %1419 = vmatprep.subr.mxu0 0.0
    %1420 = vmatpush1.msra.mxu0 %v1376
    %1421 = vmatprep.subr.mxu0 0.0
    %1422 = vmatpush1.msra.mxu0 %v1375
    %1423 = vmatprep.subr.mxu0 0.0
    %1424 = vmatpush2.msra.mxu0 0.0
    %1425 = vmatprep.subr.mxu0 0.0
    %1426 = vmatpush2.msra.mxu0 0.0
    %1427 = vmatprep.subr.mxu0 0.0
    %1428 = vmatpush2.msra.mxu0 0.0
    %1429 = vmatprep.subr.mxu0 0.0
    %1430 = vmatpush2.msra.mxu0 0.0
    %1431 = vmatprep.subr.mxu0 0.0
    %1432 = vmatpush2.msra.mxu0 0.0
    %1433 = vmatprep.subr.mxu0 0.0
    %1434 = vmatpush2.msra.mxu0 0.0
    %1435 = vmatprep.subr.mxu0 0.0
    %1436 = vmatpush2.msra.mxu0 0.0
    %1437 = vmatprep.subr.mxu0 0.0
    %1438 = vmatpush2.msra.mxu0 0.0
    %1439 = vmatprep.subr.mxu0 0.0
    %1440 = vmatpush2.msra.mxu0 0.0
    %1441 = vmatprep.subr.mxu0 0.0
    %1442 = vmatpush2.msra.mxu0 0.0
    %1443 = vmatprep.subr.mxu0 0.0
    %1444 = vmatpush2.msra.mxu0 0.0
    %1445 = vmatprep.subr.mxu0 0.0
    %1446 = vmatpush2.msra.mxu0 0.0
    %1447 = vmatprep.subr.mxu0 0.0
    %1448 = vmatpush2.msra.mxu0 0.0
    %1449 = vmatprep.subr.mxu0 0.0
    %1450 = vmatpush2.msra.mxu0 0.0
    %1451 = vmatprep.subr.mxu0 0.0
    %1452 = vmatpush2.msra.mxu0 0.0
    %1453 = vmatprep.subr.mxu0 0.0
    %1454 = vmatpush2.msra.mxu0 0.0
    %1455 = vmatprep.mubr.f32.mxu0 0.0
    %1456 = vmatmul.mubr.f32.gmra.mxu0 %v1356
    %v1457 = vpop.f32.mrf.mxu0
    %v1458 = vadd.f32 0.0, %v1457
    %v1459 = vpop.f32.mrf.mxu0
    %1460 = vmatprep.mubr.f32.mxu0 0.0
    %1461 = vmatmul.mubr.f32.gmra.mxu0 %v1361
    %v1462 = vpop.f32.mrf.mxu0
    %v1463 = vadd.f32 0.0, %v1462
    %v1464 = vpop.f32.mrf.mxu0
    %1465 = vmatprep.mubr.f32.mxu0 0.0
    %1466 = vmatmul.mubr.f32.gmra.mxu0 %v1366
    %v1467 = vpop.f32.mrf.mxu0
    %v1468 = vadd.f32 0.0, %v1467
    %v1469 = vpop.f32.mrf.mxu0
    %1470 = vmatprep.mubr.f32.mxu0 0.0
    %1471 = vmatmul.mubr.f32.gmra.mxu0 %v1371
    %v1472 = vpop.f32.mrf.mxu0
    %v1473 = vadd.f32 0.0, %v1472
    %v1474 = vpop.f32.mrf.mxu0
    %1475 = vdwg.mxu0
    %v1476 = vadd.f32 %v1254, %v1458
    %v1477 = vadd.f32 %v1259, %v1463
    %v1478 = vadd.f32 %v1264, %v1468
    %v1479 = vadd.f32 %v1269, %v1473
    %v1480 = vld [vmem:[%s6] sm:$0x1]
    %v1482 = vlaneseq
    %v1483 = vshrl.u32 %v1482, 7
    %v1484 = vsub.s32 0, %v1483
    %v1485 = vrot.slane %v1480, %v1484
    %v1487 = vadd.f32 %v1476, %v1485
    %v1488 = vadd.f32 %v1477, %v1485
    %v1489 = vadd.f32 %v1478, %v1485
    %v1490 = vadd.f32 %v1479, %v1485
    %v1491 = vmul.f32 %v1487, 0.5
    %v1492 = vmul.f32 %v1488, 0.5
    %v1493 = vmul.f32 %v1489, 0.5
    %v1494 = vmul.f32 %v1490, 0.5
    %v1495 = vmul.f32 %v1487, 0.70710677
    %v1496 = vmul.f32 %v1488, 0.70710677
    %v1497 = vmul.f32 %v1489, 0.70710677
    %v1498 = vmul.f32 %v1490, 0.70710677
    %v1499 = verf.f32.pop %v1495
    %v1500 = verf.f32.pop %v1496
    %v1501 = verf.f32.pop %v1497
    %v1502 = verf.f32.pop %v1498
    %v1503 = vadd.f32 %v1499, 1.0
    %v1504 = vadd.f32 %v1500, 1.0
    %v1505 = vadd.f32 %v1501, 1.0
    %v1506 = vadd.f32 %v1502, 1.0
    %v1507 = vmul.f32 %v1491, %v1503
    %v1508 = vmul.f32 %v1492, %v1504
    %v1509 = vmul.f32 %v1493, %v1505
    %v1510 = vmul.f32 %v1494, %v1506
    %v1511 = vld [vmem:[#allocation7] sm:$0xff]
    %v1512 = vld [vmem:[#allocation7 + $0x8] sm:$0xff]
    %v1514 = vsel %vm432, %v1511, 0
    %v1517 = vsel %vm432, %v1512, 0
    %1519 = vmatprep.subr.mxu0 0.0
    %1520 = vmatpush1.msra.mxu0 0.0
    %1521 = vmatprep.subr.mxu0 0.0
    %1522 = vmatpush1.msra.mxu0 0.0
    %1523 = vmatprep.subr.mxu0 0.0
    %1524 = vmatpush1.msra.mxu0 0.0
    %1525 = vmatprep.subr.mxu0 0.0
    %1526 = vmatpush1.msra.mxu0 0.0
    %1527 = vmatprep.subr.mxu0 0.0
    %1528 = vmatpush1.msra.mxu0 0.0
    %1529 = vmatprep.subr.mxu0 0.0
    %1530 = vmatpush1.msra.mxu0 0.0
    %1531 = vmatprep.subr.mxu0 0.0
    %1532 = vmatpush1.msra.mxu0 0.0
    %1533 = vmatprep.subr.mxu0 0.0
    %1534 = vmatpush1.msra.mxu0 0.0
    %1535 = vmatprep.subr.mxu0 0.0
    %1536 = vmatpush1.msra.mxu0 0.0
    %1537 = vmatprep.subr.mxu0 0.0
    %1538 = vmatpush1.msra.mxu0 0.0
    %1539 = vmatprep.subr.mxu0 0.0
    %1540 = vmatpush1.msra.mxu0 0.0
    %1541 = vmatprep.subr.mxu0 0.0
    %1542 = vmatpush1.msra.mxu0 0.0
    %1543 = vmatprep.subr.mxu0 0.0
    %1544 = vmatpush1.msra.mxu0 %v1510
    %1545 = vmatprep.subr.mxu0 0.0
    %1546 = vmatpush1.msra.mxu0 %v1509
    %1547 = vmatprep.subr.mxu0 0.0
    %1548 = vmatpush1.msra.mxu0 %v1508
    %1549 = vmatprep.subr.mxu0 0.0
    %1550 = vmatpush1.msra.mxu0 %v1507
    %1551 = vmatprep.subr.mxu0 0.0
    %1552 = vmatpush2.msra.mxu0 0.0
    %1553 = vmatprep.subr.mxu0 0.0
    %1554 = vmatpush2.msra.mxu0 0.0
    %1555 = vmatprep.subr.mxu0 0.0
    %1556 = vmatpush2.msra.mxu0 0.0
    %1557 = vmatprep.subr.mxu0 0.0
    %1558 = vmatpush2.msra.mxu0 0.0
    %1559 = vmatprep.subr.mxu0 0.0
    %1560 = vmatpush2.msra.mxu0 0.0
    %1561 = vmatprep.subr.mxu0 0.0
    %1562 = vmatpush2.msra.mxu0 0.0
    %1563 = vmatprep.subr.mxu0 0.0
    %1564 = vmatpush2.msra.mxu0 0.0
    %1565 = vmatprep.subr.mxu0 0.0
    %1566 = vmatpush2.msra.mxu0 0.0
    %1567 = vmatprep.subr.mxu0 0.0
    %1568 = vmatpush2.msra.mxu0 0.0
    %1569 = vmatprep.subr.mxu0 0.0
    %1570 = vmatpush2.msra.mxu0 0.0
    %1571 = vmatprep.subr.mxu0 0.0
    %1572 = vmatpush2.msra.mxu0 0.0
    %1573 = vmatprep.subr.mxu0 0.0
    %1574 = vmatpush2.msra.mxu0 0.0
    %1575 = vmatprep.subr.mxu0 0.0
    %1576 = vmatpush2.msra.mxu0 0.0
    %1577 = vmatprep.subr.mxu0 0.0
    %1578 = vmatpush2.msra.mxu0 0.0
    %1579 = vmatprep.subr.mxu0 0.0
    %1580 = vmatpush2.msra.mxu0 0.0
    %1581 = vmatprep.subr.mxu0 0.0
    %1582 = vmatpush2.msra.mxu0 0.0
    %1583 = vmatprep.mubr.f32.mxu0 0.0
    %1584 = vmatmul.mubr.f32.gmra.mxu0 %v1514
    %v1585 = vpop.f32.mrf.mxu0
    %v1586 = vadd.f32 0.0, %v1585
    %v1587 = vpop.f32.mrf.mxu0
    %1588 = vmatprep.mubr.f32.mxu0 0.0
    %1589 = vmatmul.mubr.f32.gmra.mxu0 %v1517
    %v1590 = vpop.f32.mrf.mxu0
    %v1591 = vadd.f32 0.0, %v1590
    %v1592 = vpop.f32.mrf.mxu0
    %1593 = vdwg.mxu0
    %v1594 = vld [vmem:[%s8] sm:$0xff]
    %v1595 = vld [vmem:[%s8 + $0x8] sm:$0xff]
    %v1596 = vld [vmem:[%s8 + $0x10] sm:$0xff]
    %v1597 = vld [vmem:[%s8 + $0x18] sm:$0xff]
    %v1598 = vld [vmem:[%s8 + $0x20] sm:$0xff]
    %v1599 = vld [vmem:[%s8 + $0x28] sm:$0xff]
    %v1600 = vld [vmem:[%s8 + $0x30] sm:$0xff]
    %v1601 = vld [vmem:[%s8 + $0x38] sm:$0xff]
    %v1602 = vld [vmem:[%s8 + $0x40] sm:$0xff]
    %v1603 = vld [vmem:[%s8 + $0x48] sm:$0xff]
    %v1604 = vld [vmem:[%s8 + $0x50] sm:$0xff]
    %v1605 = vld [vmem:[%s8 + $0x58] sm:$0xff]
    %v1606 = vld [vmem:[%s8 + $0x60] sm:$0xff]
    %v1607 = vld [vmem:[%s8 + $0x68] sm:$0xff]
    %v1608 = vld [vmem:[%s8 + $0x70] sm:$0xff]
    %v1609 = vld [vmem:[%s8 + $0x78] sm:$0xff]
    %s1610 = scalar_lea.vmem [#allocation7], 16
    %v1611 = vld [vmem:[%s1610] sm:$0xff]
    %v1612 = vld [vmem:[%s1610 + $0x8] sm:$0xff]
    %v1614 = vsel %vm432, %v1611, 0
    %v1617 = vsel %vm432, %v1612, 0
    %1619 = vmatprep.subr.mxu0 0.0
    %1620 = vmatpush1.msra.mxu0 0.0
    %1621 = vmatprep.subr.mxu0 0.0
    %1622 = vmatpush1.msra.mxu0 0.0
    %1623 = vmatprep.subr.mxu0 0.0
    %1624 = vmatpush1.msra.mxu0 0.0
    %1625 = vmatprep.subr.mxu0 0.0
    %1626 = vmatpush1.msra.mxu0 0.0
    %1627 = vmatprep.subr.mxu0 0.0
    %1628 = vmatpush1.msra.mxu0 0.0
    %1629 = vmatprep.subr.mxu0 0.0
    %1630 = vmatpush1.msra.mxu0 0.0
    %1631 = vmatprep.subr.mxu0 0.0
    %1632 = vmatpush1.msra.mxu0 0.0
    %1633 = vmatprep.subr.mxu0 0.0
    %1634 = vmatpush1.msra.mxu0 0.0
    %1635 = vmatprep.subr.mxu0 0.0
    %1636 = vmatpush1.msra.mxu0 0.0
    %1637 = vmatprep.subr.mxu0 0.0
    %1638 = vmatpush1.msra.mxu0 0.0
    %1639 = vmatprep.subr.mxu0 0.0
    %1640 = vmatpush1.msra.mxu0 0.0
    %1641 = vmatprep.subr.mxu0 0.0
    %1642 = vmatpush1.msra.mxu0 0.0
    %1643 = vmatprep.subr.mxu0 0.0
    %1644 = vmatpush1.msra.mxu0 %v1510
    %1645 = vmatprep.subr.mxu0 0.0
    %1646 = vmatpush1.msra.mxu0 %v1509
    %1647 = vmatprep.subr.mxu0 0.0
    %1648 = vmatpush1.msra.mxu0 %v1508
    %1649 = vmatprep.subr.mxu0 0.0
    %1650 = vmatpush1.msra.mxu0 %v1507
    %1651 = vmatprep.subr.mxu0 0.0
    %1652 = vmatpush2.msra.mxu0 0.0
    %1653 = vmatprep.subr.mxu0 0.0
    %1654 = vmatpush2.msra.mxu0 0.0
    %1655 = vmatprep.subr.mxu0 0.0
    %1656 = vmatpush2.msra.mxu0 0.0
    %1657 = vmatprep.subr.mxu0 0.0
    %1658 = vmatpush2.msra.mxu0 0.0
    %1659 = vmatprep.subr.mxu0 0.0
    %1660 = vmatpush2.msra.mxu0 0.0
    %1661 = vmatprep.subr.mxu0 0.0
    %1662 = vmatpush2.msra.mxu0 0.0
    %1663 = vmatprep.subr.mxu0 0.0
    %1664 = vmatpush2.msra.mxu0 0.0
    %1665 = vmatprep.subr.mxu0 0.0
    %1666 = vmatpush2.msra.mxu0 0.0
    %1667 = vmatprep.subr.mxu0 0.0
    %1668 = vmatpush2.msra.mxu0 0.0
    %1669 = vmatprep.subr.mxu0 0.0
    %1670 = vmatpush2.msra.mxu0 0.0
    %1671 = vmatprep.subr.mxu0 0.0
    %1672 = vmatpush2.msra.mxu0 0.0
    %1673 = vmatprep.subr.mxu0 0.0
    %1674 = vmatpush2.msra.mxu0 0.0
    %1675 = vmatprep.subr.mxu0 0.0
    %1676 = vmatpush2.msra.mxu0 0.0
    %1677 = vmatprep.subr.mxu0 0.0
    %1678 = vmatpush2.msra.mxu0 0.0
    %1679 = vmatprep.subr.mxu0 0.0
    %1680 = vmatpush2.msra.mxu0 0.0
    %1681 = vmatprep.subr.mxu0 0.0
    %1682 = vmatpush2.msra.mxu0 0.0
    %1683 = vmatprep.mubr.f32.mxu0 0.0
    %1684 = vmatmul.mubr.f32.gmra.mxu0 %v1614
    %v1685 = vpop.f32.mrf.mxu0
    %v1686 = vadd.f32 0.0, %v1685
    %v1687 = vpop.f32.mrf.mxu0
    %1688 = vmatprep.mubr.f32.mxu0 0.0
    %1689 = vmatmul.mubr.f32.gmra.mxu0 %v1617
    %v1690 = vpop.f32.mrf.mxu0
    %v1691 = vadd.f32 0.0, %v1690
    %v1692 = vpop.f32.mrf.mxu0
    %1693 = vdwg.mxu0
    %s1694 = scalar_lea.vmem %s8, 128
    %v1695 = vld [vmem:[%s1694] sm:$0xff]
    %v1696 = vld [vmem:[%s1694 + $0x8] sm:$0xff]
    %v1697 = vld [vmem:[%s1694 + $0x10] sm:$0xff]
    %v1698 = vld [vmem:[%s1694 + $0x18] sm:$0xff]
    %v1699 = vld [vmem:[%s1694 + $0x20] sm:$0xff]
    %v1700 = vld [vmem:[%s1694 + $0x28] sm:$0xff]
    %v1701 = vld [vmem:[%s1694 + $0x30] sm:$0xff]
    %v1702 = vld [vmem:[%s1694 + $0x38] sm:$0xff]
    %v1703 = vld [vmem:[%s1694 + $0x40] sm:$0xff]
    %v1704 = vld [vmem:[%s1694 + $0x48] sm:$0xff]
    %v1705 = vld [vmem:[%s1694 + $0x50] sm:$0xff]
    %v1706 = vld [vmem:[%s1694 + $0x58] sm:$0xff]
    %v1707 = vld [vmem:[%s1694 + $0x60] sm:$0xff]
    %v1708 = vld [vmem:[%s1694 + $0x68] sm:$0xff]
    %v1709 = vld [vmem:[%s1694 + $0x70] sm:$0xff]
    %v1710 = vld [vmem:[%s1694 + $0x78] sm:$0xff]
    %1711 = vmatprep.subr.mxu0 0.0
    %1712 = vmatpush1.msra.mxu0 %v1710
    %1713 = vmatprep.subr.mxu0 0.0
    %1714 = vmatpush1.msra.mxu0 %v1709
    %1715 = vmatprep.subr.mxu0 0.0
    %1716 = vmatpush1.msra.mxu0 %v1708
    %1717 = vmatprep.subr.mxu0 0.0
    %1718 = vmatpush1.msra.mxu0 %v1707
    %1719 = vmatprep.subr.mxu0 0.0
    %1720 = vmatpush1.msra.mxu0 %v1706
    %1721 = vmatprep.subr.mxu0 0.0
    %1722 = vmatpush1.msra.mxu0 %v1705
    %1723 = vmatprep.subr.mxu0 0.0
    %1724 = vmatpush1.msra.mxu0 %v1704
    %1725 = vmatprep.subr.mxu0 0.0
    %1726 = vmatpush1.msra.mxu0 %v1703
    %1727 = vmatprep.subr.mxu0 0.0
    %1728 = vmatpush1.msra.mxu0 %v1702
    %1729 = vmatprep.subr.mxu0 0.0
    %1730 = vmatpush1.msra.mxu0 %v1701
    %1731 = vmatprep.subr.mxu0 0.0
    %1732 = vmatpush1.msra.mxu0 %v1700
    %1733 = vmatprep.subr.mxu0 0.0
    %1734 = vmatpush1.msra.mxu0 %v1699
    %1735 = vmatprep.subr.mxu0 0.0
    %1736 = vmatpush1.msra.mxu0 %v1698
    %1737 = vmatprep.subr.mxu0 0.0
    %1738 = vmatpush1.msra.mxu0 %v1697
    %1739 = vmatprep.subr.mxu0 0.0
    %1740 = vmatpush1.msra.mxu0 %v1696
    %1741 = vmatprep.subr.mxu0 0.0
    %1742 = vmatpush1.msra.mxu0 %v1695
    %1743 = vmatprep.subr.mxu0 0.0
    %1744 = vmatpush2.msra.mxu0 0.0
    %1745 = vmatprep.subr.mxu0 0.0
    %1746 = vmatpush2.msra.mxu0 0.0
    %1747 = vmatprep.subr.mxu0 0.0
    %1748 = vmatpush2.msra.mxu0 0.0
    %1749 = vmatprep.subr.mxu0 0.0
    %1750 = vmatpush2.msra.mxu0 0.0
    %1751 = vmatprep.subr.mxu0 0.0
    %1752 = vmatpush2.msra.mxu0 0.0
    %1753 = vmatprep.subr.mxu0 0.0
    %1754 = vmatpush2.msra.mxu0 0.0
    %1755 = vmatprep.subr.mxu0 0.0
    %1756 = vmatpush2.msra.mxu0 0.0
    %1757 = vmatprep.subr.mxu0 0.0
    %1758 = vmatpush2.msra.mxu0 0.0
    %1759 = vmatprep.subr.mxu0 0.0
    %1760 = vmatpush2.msra.mxu0 0.0
    %1761 = vmatprep.subr.mxu0 0.0
    %1762 = vmatpush2.msra.mxu0 0.0
    %1763 = vmatprep.subr.mxu0 0.0
    %1764 = vmatpush2.msra.mxu0 0.0
    %1765 = vmatprep.subr.mxu0 0.0
    %1766 = vmatpush2.msra.mxu0 0.0
    %1767 = vmatprep.subr.mxu0 0.0
    %1768 = vmatpush2.msra.mxu0 0.0
    %1769 = vmatprep.subr.mxu0 0.0
    %1770 = vmatpush2.msra.mxu0 0.0
    %1771 = vmatprep.subr.mxu0 0.0
    %1772 = vmatpush2.msra.mxu0 0.0
    %1773 = vmatprep.subr.mxu0 0.0
    %1774 = vmatpush2.msra.mxu0 0.0
    %1775 = vmatprep.mubr.f32.mxu0 0.0
    %1776 = vmatmul.mubr.f32.gmra.mxu0 %v1686
    %v1777 = vpop.f32.mrf.mxu0
    %v1778 = vadd.f32 0.0, %v1777
    %v1779 = vpop.f32.mrf.mxu0
    %1780 = vmatprep.mubr.f32.mxu0 0.0
    %1781 = vmatmul.mubr.f32.gmra.mxu0 %v1691
    %v1782 = vpop.f32.mrf.mxu0
    %v1783 = vadd.f32 0.0, %v1782
    %v1784 = vpop.f32.mrf.mxu0
    %1785 = vdwg.mxu0
    %1786 = vmatprep.subr.mxu0 0.0
    %1787 = vmatpush1.msra.mxu0 %v1609
    %1788 = vmatprep.subr.mxu0 0.0
    %1789 = vmatpush1.msra.mxu0 %v1608
    %1790 = vmatprep.subr.mxu0 0.0
    %1791 = vmatpush1.msra.mxu0 %v1607
    %1792 = vmatprep.subr.mxu0 0.0
    %1793 = vmatpush1.msra.mxu0 %v1606
    %1794 = vmatprep.subr.mxu0 0.0
    %1795 = vmatpush1.msra.mxu0 %v1605
    %1796 = vmatprep.subr.mxu0 0.0
    %1797 = vmatpush1.msra.mxu0 %v1604
    %1798 = vmatprep.subr.mxu0 0.0
    %1799 = vmatpush1.msra.mxu0 %v1603
    %1800 = vmatprep.subr.mxu0 0.0
    %1801 = vmatpush1.msra.mxu0 %v1602
    %1802 = vmatprep.subr.mxu0 0.0
    %1803 = vmatpush1.msra.mxu0 %v1601
    %1804 = vmatprep.subr.mxu0 0.0
    %1805 = vmatpush1.msra.mxu0 %v1600
    %1806 = vmatprep.subr.mxu0 0.0
    %1807 = vmatpush1.msra.mxu0 %v1599
    %1808 = vmatprep.subr.mxu0 0.0
    %1809 = vmatpush1.msra.mxu0 %v1598
    %1810 = vmatprep.subr.mxu0 0.0
    %1811 = vmatpush1.msra.mxu0 %v1597
    %1812 = vmatprep.subr.mxu0 0.0
    %1813 = vmatpush1.msra.mxu0 %v1596
    %1814 = vmatprep.subr.mxu0 0.0
    %1815 = vmatpush1.msra.mxu0 %v1595
    %1816 = vmatprep.subr.mxu0 0.0
    %1817 = vmatpush1.msra.mxu0 %v1594
    %1818 = vmatprep.subr.mxu0 0.0
    %1819 = vmatpush2.msra.mxu0 0.0
    %1820 = vmatprep.subr.mxu0 0.0
    %1821 = vmatpush2.msra.mxu0 0.0
    %1822 = vmatprep.subr.mxu0 0.0
    %1823 = vmatpush2.msra.mxu0 0.0
    %1824 = vmatprep.subr.mxu0 0.0
    %1825 = vmatpush2.msra.mxu0 0.0
    %1826 = vmatprep.subr.mxu0 0.0
    %1827 = vmatpush2.msra.mxu0 0.0
    %1828 = vmatprep.subr.mxu0 0.0
    %1829 = vmatpush2.msra.mxu0 0.0
    %1830 = vmatprep.subr.mxu0 0.0
    %1831 = vmatpush2.msra.mxu0 0.0
    %1832 = vmatprep.subr.mxu0 0.0
    %1833 = vmatpush2.msra.mxu0 0.0
    %1834 = vmatprep.subr.mxu0 0.0
    %1835 = vmatpush2.msra.mxu0 0.0
    %1836 = vmatprep.subr.mxu0 0.0
    %1837 = vmatpush2.msra.mxu0 0.0
    %1838 = vmatprep.subr.mxu0 0.0
    %1839 = vmatpush2.msra.mxu0 0.0
    %1840 = vmatprep.subr.mxu0 0.0
    %1841 = vmatpush2.msra.mxu0 0.0
    %1842 = vmatprep.subr.mxu0 0.0
    %1843 = vmatpush2.msra.mxu0 0.0
    %1844 = vmatprep.subr.mxu0 0.0
    %1845 = vmatpush2.msra.mxu0 0.0
    %1846 = vmatprep.subr.mxu0 0.0
    %1847 = vmatpush2.msra.mxu0 0.0
    %1848 = vmatprep.subr.mxu0 0.0
    %1849 = vmatpush2.msra.mxu0 0.0
    %1850 = vmatprep.mubr.f32.mxu0 0.0
    %1851 = vmatmul.mubr.f32.gmra.mxu0 %v1586
    %v1852 = vpop.f32.mrf.mxu0
    %v1853 = vadd.f32 %v1778, %v1852
    %v1854 = vpop.f32.mrf.mxu0
    %1855 = vmatprep.mubr.f32.mxu0 0.0
    %1856 = vmatmul.mubr.f32.gmra.mxu0 %v1591
    %v1857 = vpop.f32.mrf.mxu0
    %v1858 = vadd.f32 %v1783, %v1857
    %v1859 = vpop.f32.mrf.mxu0
    %1860 = vdwg.mxu0
    %s1861 = scalar_lea.vmem [#allocation7], 32
    %v1862 = vld [vmem:[%s1861] sm:$0xff]
    %v1863 = vld [vmem:[%s1861 + $0x8] sm:$0xff]
    %v1865 = vsel %vm432, %v1862, 0
    %v1868 = vsel %vm432, %v1863, 0
    %1870 = vmatprep.subr.mxu0 0.0
    %1871 = vmatpush1.msra.mxu0 0.0
    %1872 = vmatprep.subr.mxu0 0.0
    %1873 = vmatpush1.msra.mxu0 0.0
    %1874 = vmatprep.subr.mxu0 0.0
    %1875 = vmatpush1.msra.mxu0 0.0
    %1876 = vmatprep.subr.mxu0 0.0
    %1877 = vmatpush1.msra.mxu0 0.0
    %1878 = vmatprep.subr.mxu0 0.0
    %1879 = vmatpush1.msra.mxu0 0.0
    %1880 = vmatprep.subr.mxu0 0.0
    %1881 = vmatpush1.msra.mxu0 0.0
    %1882 = vmatprep.subr.mxu0 0.0
    %1883 = vmatpush1.msra.mxu0 0.0
    %1884 = vmatprep.subr.mxu0 0.0
    %1885 = vmatpush1.msra.mxu0 0.0
    %1886 = vmatprep.subr.mxu0 0.0
    %1887 = vmatpush1.msra.mxu0 0.0
    %1888 = vmatprep.subr.mxu0 0.0
    %1889 = vmatpush1.msra.mxu0 0.0
    %1890 = vmatprep.subr.mxu0 0.0
    %1891 = vmatpush1.msra.mxu0 0.0
    %1892 = vmatprep.subr.mxu0 0.0
    %1893 = vmatpush1.msra.mxu0 0.0
    %1894 = vmatprep.subr.mxu0 0.0
    %1895 = vmatpush1.msra.mxu0 %v1510
    %1896 = vmatprep.subr.mxu0 0.0
    %1897 = vmatpush1.msra.mxu0 %v1509
    %1898 = vmatprep.subr.mxu0 0.0
    %1899 = vmatpush1.msra.mxu0 %v1508
    %1900 = vmatprep.subr.mxu0 0.0
    %1901 = vmatpush1.msra.mxu0 %v1507
    %1902 = vmatprep.subr.mxu0 0.0
    %1903 = vmatpush2.msra.mxu0 0.0
    %1904 = vmatprep.subr.mxu0 0.0
    %1905 = vmatpush2.msra.mxu0 0.0
    %1906 = vmatprep.subr.mxu0 0.0
    %1907 = vmatpush2.msra.mxu0 0.0
    %1908 = vmatprep.subr.mxu0 0.0
    %1909 = vmatpush2.msra.mxu0 0.0
    %1910 = vmatprep.subr.mxu0 0.0
    %1911 = vmatpush2.msra.mxu0 0.0
    %1912 = vmatprep.subr.mxu0 0.0
    %1913 = vmatpush2.msra.mxu0 0.0
    %1914 = vmatprep.subr.mxu0 0.0
    %1915 = vmatpush2.msra.mxu0 0.0
    %1916 = vmatprep.subr.mxu0 0.0
    %1917 = vmatpush2.msra.mxu0 0.0
    %1918 = vmatprep.subr.mxu0 0.0
    %1919 = vmatpush2.msra.mxu0 0.0
    %1920 = vmatprep.subr.mxu0 0.0
    %1921 = vmatpush2.msra.mxu0 0.0
    %1922 = vmatprep.subr.mxu0 0.0
    %1923 = vmatpush2.msra.mxu0 0.0
    %1924 = vmatprep.subr.mxu0 0.0
    %1925 = vmatpush2.msra.mxu0 0.0
    %1926 = vmatprep.subr.mxu0 0.0
    %1927 = vmatpush2.msra.mxu0 0.0
    %1928 = vmatprep.subr.mxu0 0.0
    %1929 = vmatpush2.msra.mxu0 0.0
    %1930 = vmatprep.subr.mxu0 0.0
    %1931 = vmatpush2.msra.mxu0 0.0
    %1932 = vmatprep.subr.mxu0 0.0
    %1933 = vmatpush2.msra.mxu0 0.0
    %1934 = vmatprep.mubr.f32.mxu0 0.0
    %1935 = vmatmul.mubr.f32.gmra.mxu0 %v1865
    %v1936 = vpop.f32.mrf.mxu0
    %v1937 = vadd.f32 0.0, %v1936
    %v1938 = vpop.f32.mrf.mxu0
    %1939 = vmatprep.mubr.f32.mxu0 0.0
    %1940 = vmatmul.mubr.f32.gmra.mxu0 %v1868
    %v1941 = vpop.f32.mrf.mxu0
    %v1942 = vadd.f32 0.0, %v1941
    %v1943 = vpop.f32.mrf.mxu0
    %1944 = vdwg.mxu0
    %s1945 = scalar_lea.vmem %s8, 256
    %v1946 = vld [vmem:[%s1945] sm:$0xff]
    %v1947 = vld [vmem:[%s1945 + $0x8] sm:$0xff]
    %v1948 = vld [vmem:[%s1945 + $0x10] sm:$0xff]
    %v1949 = vld [vmem:[%s1945 + $0x18] sm:$0xff]
    %v1950 = vld [vmem:[%s1945 + $0x20] sm:$0xff]
    %v1951 = vld [vmem:[%s1945 + $0x28] sm:$0xff]
    %v1952 = vld [vmem:[%s1945 + $0x30] sm:$0xff]
    %v1953 = vld [vmem:[%s1945 + $0x38] sm:$0xff]
    %v1954 = vld [vmem:[%s1945 + $0x40] sm:$0xff]
    %v1955 = vld [vmem:[%s1945 + $0x48] sm:$0xff]
    %v1956 = vld [vmem:[%s1945 + $0x50] sm:$0xff]
    %v1957 = vld [vmem:[%s1945 + $0x58] sm:$0xff]
    %v1958 = vld [vmem:[%s1945 + $0x60] sm:$0xff]
    %v1959 = vld [vmem:[%s1945 + $0x68] sm:$0xff]
    %v1960 = vld [vmem:[%s1945 + $0x70] sm:$0xff]
    %v1961 = vld [vmem:[%s1945 + $0x78] sm:$0xff]
    %1962 = vmatprep.subr.mxu0 0.0
    %1963 = vmatpush1.msra.mxu0 %v1961
    %1964 = vmatprep.subr.mxu0 0.0
    %1965 = vmatpush1.msra.mxu0 %v1960
    %1966 = vmatprep.subr.mxu0 0.0
    %1967 = vmatpush1.msra.mxu0 %v1959
    %1968 = vmatprep.subr.mxu0 0.0
    %1969 = vmatpush1.msra.mxu0 %v1958
    %1970 = vmatprep.subr.mxu0 0.0
    %1971 = vmatpush1.msra.mxu0 %v1957
    %1972 = vmatprep.subr.mxu0 0.0
    %1973 = vmatpush1.msra.mxu0 %v1956
    %1974 = vmatprep.subr.mxu0 0.0
    %1975 = vmatpush1.msra.mxu0 %v1955
    %1976 = vmatprep.subr.mxu0 0.0
    %1977 = vmatpush1.msra.mxu0 %v1954
    %1978 = vmatprep.subr.mxu0 0.0
    %1979 = vmatpush1.msra.mxu0 %v1953
    %1980 = vmatprep.subr.mxu0 0.0
    %1981 = vmatpush1.msra.mxu0 %v1952
    %1982 = vmatprep.subr.mxu0 0.0
    %1983 = vmatpush1.msra.mxu0 %v1951
    %1984 = vmatprep.subr.mxu0 0.0
    %1985 = vmatpush1.msra.mxu0 %v1950
    %1986 = vmatprep.subr.mxu0 0.0
    %1987 = vmatpush1.msra.mxu0 %v1949
    %1988 = vmatprep.subr.mxu0 0.0
    %1989 = vmatpush1.msra.mxu0 %v1948
    %1990 = vmatprep.subr.mxu0 0.0
    %1991 = vmatpush1.msra.mxu0 %v1947
    %1992 = vmatprep.subr.mxu0 0.0
    %1993 = vmatpush1.msra.mxu0 %v1946
    %1994 = vmatprep.subr.mxu0 0.0
    %1995 = vmatpush2.msra.mxu0 0.0
    %1996 = vmatprep.subr.mxu0 0.0
    %1997 = vmatpush2.msra.mxu0 0.0
    %1998 = vmatprep.subr.mxu0 0.0
    %1999 = vmatpush2.msra.mxu0 0.0
    %2000 = vmatprep.subr.mxu0 0.0
    %2001 = vmatpush2.msra.mxu0 0.0
    %2002 = vmatprep.subr.mxu0 0.0
    %2003 = vmatpush2.msra.mxu0 0.0
    %2004 = vmatprep.subr.mxu0 0.0
    %2005 = vmatpush2.msra.mxu0 0.0
    %2006 = vmatprep.subr.mxu0 0.0
    %2007 = vmatpush2.msra.mxu0 0.0
    %2008 = vmatprep.subr.mxu0 0.0
    %2009 = vmatpush2.msra.mxu0 0.0
    %2010 = vmatprep.subr.mxu0 0.0
    %2011 = vmatpush2.msra.mxu0 0.0
    %2012 = vmatprep.subr.mxu0 0.0
    %2013 = vmatpush2.msra.mxu0 0.0
    %2014 = vmatprep.subr.mxu0 0.0
    %2015 = vmatpush2.msra.mxu0 0.0
    %2016 = vmatprep.subr.mxu0 0.0
    %2017 = vmatpush2.msra.mxu0 0.0
    %2018 = vmatprep.subr.mxu0 0.0
    %2019 = vmatpush2.msra.mxu0 0.0
    %2020 = vmatprep.subr.mxu0 0.0
    %2021 = vmatpush2.msra.mxu0 0.0
    %2022 = vmatprep.subr.mxu0 0.0
    %2023 = vmatpush2.msra.mxu0 0.0
    %2024 = vmatprep.subr.mxu0 0.0
    %2025 = vmatpush2.msra.mxu0 0.0
    %2026 = vmatprep.mubr.f32.mxu0 0.0
    %2027 = vmatmul.mubr.f32.gmra.mxu0 %v1937
    %v2028 = vpop.f32.mrf.mxu0
    %v2029 = vadd.f32 0.0, %v2028
    %v2030 = vpop.f32.mrf.mxu0
    %2031 = vmatprep.mubr.f32.mxu0 0.0
    %2032 = vmatmul.mubr.f32.gmra.mxu0 %v1942
    %v2033 = vpop.f32.mrf.mxu0
    %v2034 = vadd.f32 0.0, %v2033
    %v2035 = vpop.f32.mrf.mxu0
    %2036 = vdwg.mxu0
    %v2037 = vadd.f32 %v1853, %v2029
    %v2038 = vadd.f32 %v1858, %v2034
    %v2039 = vld [vmem:[#allocation9] sm:$0x1]
    %v2041 = vlaneseq
    %v2042 = vshrl.u32 %v2041, 7
    %v2043 = vsub.s32 0, %v2042
    %v2044 = vrot.slane %v2039, %v2043
    %v2046 = vadd.f32 %v2037, %v2044
    %v2047 = vadd.f32 %v2038, %v2044
    %v2048 = vmul.f32 %v2046, 0.5
    %v2049 = vmul.f32 %v2047, 0.5
    %v2050 = vmul.f32 %v2046, 0.70710677
    %v2051 = vmul.f32 %v2047, 0.70710677
    %v2052 = verf.f32.pop %v2050
    %v2053 = verf.f32.pop %v2051
    %v2054 = vadd.f32 %v2052, 1.0
    %v2055 = vadd.f32 %v2053, 1.0
    %v2056 = vmul.f32 %v2048, %v2054
    %v2057 = vmul.f32 %v2049, %v2055
    %v2058 = vld [vmem:[#allocation10] sm:$0xff]
    %v2059 = vld [vmem:[#allocation10 + $0x8] sm:$0xff]
    %vm2060 = vcmask 130048
    %v2062 = vsel %vm2060, %v2058, 0
    %v2065 = vsel %vm2060, %v2059, 0
    %2067 = vmatprep.subr.mxu0 0.0
    %2068 = vmatpush1.msra.mxu0 0.0
    %2069 = vmatprep.subr.mxu0 0.0
    %2070 = vmatpush1.msra.mxu0 0.0
    %2071 = vmatprep.subr.mxu0 0.0
    %2072 = vmatpush1.msra.mxu0 0.0
    %2073 = vmatprep.subr.mxu0 0.0
    %2074 = vmatpush1.msra.mxu0 0.0
    %2075 = vmatprep.subr.mxu0 0.0
    %2076 = vmatpush1.msra.mxu0 0.0
    %2077 = vmatprep.subr.mxu0 0.0
    %2078 = vmatpush1.msra.mxu0 0.0
    %2079 = vmatprep.subr.mxu0 0.0
    %2080 = vmatpush1.msra.mxu0 0.0
    %2081 = vmatprep.subr.mxu0 0.0
    %2082 = vmatpush1.msra.mxu0 0.0
    %2083 = vmatprep.subr.mxu0 0.0
    %2084 = vmatpush1.msra.mxu0 0.0
    %2085 = vmatprep.subr.mxu0 0.0
    %2086 = vmatpush1.msra.mxu0 0.0
    %2087 = vmatprep.subr.mxu0 0.0
    %2088 = vmatpush1.msra.mxu0 0.0
    %2089 = vmatprep.subr.mxu0 0.0
    %2090 = vmatpush1.msra.mxu0 0.0
    %2091 = vmatprep.subr.mxu0 0.0
    %2092 = vmatpush1.msra.mxu0 0.0
    %2093 = vmatprep.subr.mxu0 0.0
    %2094 = vmatpush1.msra.mxu0 0.0
    %2095 = vmatprep.subr.mxu0 0.0
    %2096 = vmatpush1.msra.mxu0 %v2057
    %2097 = vmatprep.subr.mxu0 0.0
    %2098 = vmatpush1.msra.mxu0 %v2056
    %2099 = vmatprep.subr.mxu0 0.0
    %2100 = vmatpush2.msra.mxu0 0.0
    %2101 = vmatprep.subr.mxu0 0.0
    %2102 = vmatpush2.msra.mxu0 0.0
    %2103 = vmatprep.subr.mxu0 0.0
    %2104 = vmatpush2.msra.mxu0 0.0
    %2105 = vmatprep.subr.mxu0 0.0
    %2106 = vmatpush2.msra.mxu0 0.0
    %2107 = vmatprep.subr.mxu0 0.0
    %2108 = vmatpush2.msra.mxu0 0.0
    %2109 = vmatprep.subr.mxu0 0.0
    %2110 = vmatpush2.msra.mxu0 0.0
    %2111 = vmatprep.subr.mxu0 0.0
    %2112 = vmatpush2.msra.mxu0 0.0
    %2113 = vmatprep.subr.mxu0 0.0
    %2114 = vmatpush2.msra.mxu0 0.0
    %2115 = vmatprep.subr.mxu0 0.0
    %2116 = vmatpush2.msra.mxu0 0.0
    %2117 = vmatprep.subr.mxu0 0.0
    %2118 = vmatpush2.msra.mxu0 0.0
    %2119 = vmatprep.subr.mxu0 0.0
    %2120 = vmatpush2.msra.mxu0 0.0
    %2121 = vmatprep.subr.mxu0 0.0
    %2122 = vmatpush2.msra.mxu0 0.0
    %2123 = vmatprep.subr.mxu0 0.0
    %2124 = vmatpush2.msra.mxu0 0.0
    %2125 = vmatprep.subr.mxu0 0.0
    %2126 = vmatpush2.msra.mxu0 0.0
    %2127 = vmatprep.subr.mxu0 0.0
    %2128 = vmatpush2.msra.mxu0 0.0
    %2129 = vmatprep.subr.mxu0 0.0
    %2130 = vmatpush2.msra.mxu0 0.0
    %2131 = vmatprep.mubr.f32.mxu0 0.0
    %2132 = vmatmul.mubr.f32.gmra.mxu0 %v2062
    %v2133 = vpop.f32.mrf.mxu0
    %v2134 = vadd.f32 0.0, %v2133
    %v2135 = vpop.f32.mrf.mxu0
    %2136 = vmatprep.mubr.f32.mxu0 0.0
    %2137 = vmatmul.mubr.f32.gmra.mxu0 %v2065
    %v2138 = vpop.f32.mrf.mxu0
    %v2139 = vadd.f32 0.0, %v2138
    %v2140 = vpop.f32.mrf.mxu0
    %2141 = vdwg.mxu0
    %v2142 = vld [vmem:[#allocation12] sm:$0xff]
    %v2143 = vld [vmem:[#allocation12 + $0x8] sm:$0xff]
    %v2144 = vld [vmem:[#allocation12 + $0x10] sm:$0xff]
    %v2145 = vld [vmem:[#allocation12 + $0x18] sm:$0xff]
    %v2146 = vld [vmem:[#allocation12 + $0x20] sm:$0xff]
    %v2147 = vld [vmem:[#allocation12 + $0x28] sm:$0xff]
    %v2148 = vld [vmem:[#allocation12 + $0x30] sm:$0xff]
    %v2149 = vld [vmem:[#allocation12 + $0x38] sm:$0xff]
    %v2150 = vld [vmem:[#allocation12 + $0x40] sm:$0xff]
    %v2151 = vld [vmem:[#allocation12 + $0x48] sm:$0xff]
    %v2152 = vld [vmem:[#allocation12 + $0x50] sm:$0xff]
    %v2153 = vld [vmem:[#allocation12 + $0x58] sm:$0xff]
    %v2154 = vld [vmem:[#allocation12 + $0x60] sm:$0xff]
    %v2155 = vld [vmem:[#allocation12 + $0x68] sm:$0xff]
    %v2156 = vld [vmem:[#allocation12 + $0x70] sm:$0xff]
    %v2157 = vld [vmem:[#allocation12 + $0x78] sm:$0xff]
    %s2158 = scalar_lea.vmem [#allocation10], 16
    %v2159 = vld [vmem:[%s2158] sm:$0xff]
    %v2160 = vld [vmem:[%s2158 + $0x8] sm:$0xff]
    %v2162 = vsel %vm2060, %v2159, 0
    %v2165 = vsel %vm2060, %v2160, 0
    %2167 = vmatprep.subr.mxu0 0.0
    %2168 = vmatpush1.msra.mxu0 0.0
    %2169 = vmatprep.subr.mxu0 0.0
    %2170 = vmatpush1.msra.mxu0 0.0
    %2171 = vmatprep.subr.mxu0 0.0
    %2172 = vmatpush1.msra.mxu0 0.0
    %2173 = vmatprep.subr.mxu0 0.0
    %2174 = vmatpush1.msra.mxu0 0.0
    %2175 = vmatprep.subr.mxu0 0.0
    %2176 = vmatpush1.msra.mxu0 0.0
    %2177 = vmatprep.subr.mxu0 0.0
    %2178 = vmatpush1.msra.mxu0 0.0
    %2179 = vmatprep.subr.mxu0 0.0
    %2180 = vmatpush1.msra.mxu0 0.0
    %2181 = vmatprep.subr.mxu0 0.0
    %2182 = vmatpush1.msra.mxu0 0.0
    %2183 = vmatprep.subr.mxu0 0.0
    %2184 = vmatpush1.msra.mxu0 0.0
    %2185 = vmatprep.subr.mxu0 0.0
    %2186 = vmatpush1.msra.mxu0 0.0
    %2187 = vmatprep.subr.mxu0 0.0
    %2188 = vmatpush1.msra.mxu0 0.0
    %2189 = vmatprep.subr.mxu0 0.0
    %2190 = vmatpush1.msra.mxu0 0.0
    %2191 = vmatprep.subr.mxu0 0.0
    %2192 = vmatpush1.msra.mxu0 0.0
    %2193 = vmatprep.subr.mxu0 0.0
    %2194 = vmatpush1.msra.mxu0 0.0
    %2195 = vmatprep.subr.mxu0 0.0
    %2196 = vmatpush1.msra.mxu0 %v2057
    %2197 = vmatprep.subr.mxu0 0.0
    %2198 = vmatpush1.msra.mxu0 %v2056
    %2199 = vmatprep.subr.mxu0 0.0
    %2200 = vmatpush2.msra.mxu0 0.0
    %2201 = vmatprep.subr.mxu0 0.0
    %2202 = vmatpush2.msra.mxu0 0.0
    %2203 = vmatprep.subr.mxu0 0.0
    %2204 = vmatpush2.msra.mxu0 0.0
    %2205 = vmatprep.subr.mxu0 0.0
    %2206 = vmatpush2.msra.mxu0 0.0
    %2207 = vmatprep.subr.mxu0 0.0
    %2208 = vmatpush2.msra.mxu0 0.0
    %2209 = vmatprep.subr.mxu0 0.0
    %2210 = vmatpush2.msra.mxu0 0.0
    %2211 = vmatprep.subr.mxu0 0.0
    %2212 = vmatpush2.msra.mxu0 0.0
    %2213 = vmatprep.subr.mxu0 0.0
    %2214 = vmatpush2.msra.mxu0 0.0
    %2215 = vmatprep.subr.mxu0 0.0
    %2216 = vmatpush2.msra.mxu0 0.0
    %2217 = vmatprep.subr.mxu0 0.0
    %2218 = vmatpush2.msra.mxu0 0.0
    %2219 = vmatprep.subr.mxu0 0.0
    %2220 = vmatpush2.msra.mxu0 0.0
    %2221 = vmatprep.subr.mxu0 0.0
    %2222 = vmatpush2.msra.mxu0 0.0
    %2223 = vmatprep.subr.mxu0 0.0
    %2224 = vmatpush2.msra.mxu0 0.0
    %2225 = vmatprep.subr.mxu0 0.0
    %2226 = vmatpush2.msra.mxu0 0.0
    %2227 = vmatprep.subr.mxu0 0.0
    %2228 = vmatpush2.msra.mxu0 0.0
    %2229 = vmatprep.subr.mxu0 0.0
    %2230 = vmatpush2.msra.mxu0 0.0
    %2231 = vmatprep.mubr.f32.mxu0 0.0
    %2232 = vmatmul.mubr.f32.gmra.mxu0 %v2162
    %v2233 = vpop.f32.mrf.mxu0
    %v2234 = vadd.f32 0.0, %v2233
    %v2235 = vpop.f32.mrf.mxu0
    %2236 = vmatprep.mubr.f32.mxu0 0.0
    %2237 = vmatmul.mubr.f32.gmra.mxu0 %v2165
    %v2238 = vpop.f32.mrf.mxu0
    %v2239 = vadd.f32 0.0, %v2238
    %v2240 = vpop.f32.mrf.mxu0
    %2241 = vdwg.mxu0
    %s2242 = scalar_lea.vmem [#allocation12], 128
    %v2243 = vld [vmem:[%s2242] sm:$0xff]
    %v2244 = vld [vmem:[%s2242 + $0x8] sm:$0xff]
    %v2245 = vld [vmem:[%s2242 + $0x10] sm:$0xff]
    %v2246 = vld [vmem:[%s2242 + $0x18] sm:$0xff]
    %v2247 = vld [vmem:[%s2242 + $0x20] sm:$0xff]
    %v2248 = vld [vmem:[%s2242 + $0x28] sm:$0xff]
    %v2249 = vld [vmem:[%s2242 + $0x30] sm:$0xff]
    %v2250 = vld [vmem:[%s2242 + $0x38] sm:$0xff]
    %v2251 = vld [vmem:[%s2242 + $0x40] sm:$0xff]
    %v2252 = vld [vmem:[%s2242 + $0x48] sm:$0xff]
    %v2253 = vld [vmem:[%s2242 + $0x50] sm:$0xff]
    %v2254 = vld [vmem:[%s2242 + $0x58] sm:$0xff]
    %v2255 = vld [vmem:[%s2242 + $0x60] sm:$0xff]
    %v2256 = vld [vmem:[%s2242 + $0x68] sm:$0xff]
    %v2257 = vld [vmem:[%s2242 + $0x70] sm:$0xff]
    %v2258 = vld [vmem:[%s2242 + $0x78] sm:$0xff]
    %2259 = vmatprep.subr.mxu0 0.0
    %2260 = vmatpush1.msra.mxu0 %v2258
    %2261 = vmatprep.subr.mxu0 0.0
    %2262 = vmatpush1.msra.mxu0 %v2257
    %2263 = vmatprep.subr.mxu0 0.0
    %2264 = vmatpush1.msra.mxu0 %v2256
    %2265 = vmatprep.subr.mxu0 0.0
    %2266 = vmatpush1.msra.mxu0 %v2255
    %2267 = vmatprep.subr.mxu0 0.0
    %2268 = vmatpush1.msra.mxu0 %v2254
    %2269 = vmatprep.subr.mxu0 0.0
    %2270 = vmatpush1.msra.mxu0 %v2253
    %2271 = vmatprep.subr.mxu0 0.0
    %2272 = vmatpush1.msra.mxu0 %v2252
    %2273 = vmatprep.subr.mxu0 0.0
    %2274 = vmatpush1.msra.mxu0 %v2251
    %2275 = vmatprep.subr.mxu0 0.0
    %2276 = vmatpush1.msra.mxu0 %v2250
    %2277 = vmatprep.subr.mxu0 0.0
    %2278 = vmatpush1.msra.mxu0 %v2249
    %2279 = vmatprep.subr.mxu0 0.0
    %2280 = vmatpush1.msra.mxu0 %v2248
    %2281 = vmatprep.subr.mxu0 0.0
    %2282 = vmatpush1.msra.mxu0 %v2247
    %2283 = vmatprep.subr.mxu0 0.0
    %2284 = vmatpush1.msra.mxu0 %v2246
    %2285 = vmatprep.subr.mxu0 0.0
    %2286 = vmatpush1.msra.mxu0 %v2245
    %2287 = vmatprep.subr.mxu0 0.0
    %2288 = vmatpush1.msra.mxu0 %v2244
    %2289 = vmatprep.subr.mxu0 0.0
    %2290 = vmatpush1.msra.mxu0 %v2243
    %2291 = vmatprep.subr.mxu0 0.0
    %2292 = vmatpush2.msra.mxu0 0.0
    %2293 = vmatprep.subr.mxu0 0.0
    %2294 = vmatpush2.msra.mxu0 0.0
    %2295 = vmatprep.subr.mxu0 0.0
    %2296 = vmatpush2.msra.mxu0 0.0
    %2297 = vmatprep.subr.mxu0 0.0
    %2298 = vmatpush2.msra.mxu0 0.0
    %2299 = vmatprep.subr.mxu0 0.0
    %2300 = vmatpush2.msra.mxu0 0.0
    %2301 = vmatprep.subr.mxu0 0.0
    %2302 = vmatpush2.msra.mxu0 0.0
    %2303 = vmatprep.subr.mxu0 0.0
    %2304 = vmatpush2.msra.mxu0 0.0
    %2305 = vmatprep.subr.mxu0 0.0
    %2306 = vmatpush2.msra.mxu0 0.0
    %2307 = vmatprep.subr.mxu0 0.0
    %2308 = vmatpush2.msra.mxu0 0.0
    %2309 = vmatprep.subr.mxu0 0.0
    %2310 = vmatpush2.msra.mxu0 0.0
    %2311 = vmatprep.subr.mxu0 0.0
    %2312 = vmatpush2.msra.mxu0 0.0
    %2313 = vmatprep.subr.mxu0 0.0
    %2314 = vmatpush2.msra.mxu0 0.0
    %2315 = vmatprep.subr.mxu0 0.0
    %2316 = vmatpush2.msra.mxu0 0.0
    %2317 = vmatprep.subr.mxu0 0.0
    %2318 = vmatpush2.msra.mxu0 0.0
    %2319 = vmatprep.subr.mxu0 0.0
    %2320 = vmatpush2.msra.mxu0 0.0
    %2321 = vmatprep.subr.mxu0 0.0
    %2322 = vmatpush2.msra.mxu0 0.0
    %2323 = vmatprep.mubr.f32.mxu0 0.0
    %2324 = vmatmul.mubr.f32.gmra.mxu0 %v2234
    %v2325 = vpop.f32.mrf.mxu0
    %v2326 = vadd.f32 0.0, %v2325
    %v2327 = vpop.f32.mrf.mxu0
    %2328 = vmatprep.mubr.f32.mxu0 0.0
    %2329 = vmatmul.mubr.f32.gmra.mxu0 %v2239
    %v2330 = vpop.f32.mrf.mxu0
    %v2331 = vadd.f32 0.0, %v2330
    %v2332 = vpop.f32.mrf.mxu0
    %2333 = vdwg.mxu0
    %2334 = vmatprep.subr.mxu0 0.0
    %2335 = vmatpush1.msra.mxu0 %v2157
    %2336 = vmatprep.subr.mxu0 0.0
    %2337 = vmatpush1.msra.mxu0 %v2156
    %2338 = vmatprep.subr.mxu0 0.0
    %2339 = vmatpush1.msra.mxu0 %v2155
    %2340 = vmatprep.subr.mxu0 0.0
    %2341 = vmatpush1.msra.mxu0 %v2154
    %2342 = vmatprep.subr.mxu0 0.0
    %2343 = vmatpush1.msra.mxu0 %v2153
    %2344 = vmatprep.subr.mxu0 0.0
    %2345 = vmatpush1.msra.mxu0 %v2152
    %2346 = vmatprep.subr.mxu0 0.0
    %2347 = vmatpush1.msra.mxu0 %v2151
    %2348 = vmatprep.subr.mxu0 0.0
    %2349 = vmatpush1.msra.mxu0 %v2150
    %2350 = vmatprep.subr.mxu0 0.0
    %2351 = vmatpush1.msra.mxu0 %v2149
    %2352 = vmatprep.subr.mxu0 0.0
    %2353 = vmatpush1.msra.mxu0 %v2148
    %2354 = vmatprep.subr.mxu0 0.0
    %2355 = vmatpush1.msra.mxu0 %v2147
    %2356 = vmatprep.subr.mxu0 0.0
    %2357 = vmatpush1.msra.mxu0 %v2146
    %2358 = vmatprep.subr.mxu0 0.0
    %2359 = vmatpush1.msra.mxu0 %v2145
    %2360 = vmatprep.subr.mxu0 0.0
    %2361 = vmatpush1.msra.mxu0 %v2144
    %2362 = vmatprep.subr.mxu0 0.0
    %2363 = vmatpush1.msra.mxu0 %v2143
    %2364 = vmatprep.subr.mxu0 0.0
    %2365 = vmatpush1.msra.mxu0 %v2142
    %2366 = vmatprep.subr.mxu0 0.0
    %2367 = vmatpush2.msra.mxu0 0.0
    %2368 = vmatprep.subr.mxu0 0.0
    %2369 = vmatpush2.msra.mxu0 0.0
    %2370 = vmatprep.subr.mxu0 0.0
    %2371 = vmatpush2.msra.mxu0 0.0
    %2372 = vmatprep.subr.mxu0 0.0
    %2373 = vmatpush2.msra.mxu0 0.0
    %2374 = vmatprep.subr.mxu0 0.0
    %2375 = vmatpush2.msra.mxu0 0.0
    %2376 = vmatprep.subr.mxu0 0.0
    %2377 = vmatpush2.msra.mxu0 0.0
    %2378 = vmatprep.subr.mxu0 0.0
    %2379 = vmatpush2.msra.mxu0 0.0
    %2380 = vmatprep.subr.mxu0 0.0
    %2381 = vmatpush2.msra.mxu0 0.0
    %2382 = vmatprep.subr.mxu0 0.0
    %2383 = vmatpush2.msra.mxu0 0.0
    %2384 = vmatprep.subr.mxu0 0.0
    %2385 = vmatpush2.msra.mxu0 0.0
    %2386 = vmatprep.subr.mxu0 0.0
    %2387 = vmatpush2.msra.mxu0 0.0
    %2388 = vmatprep.subr.mxu0 0.0
    %2389 = vmatpush2.msra.mxu0 0.0
    %2390 = vmatprep.subr.mxu0 0.0
    %2391 = vmatpush2.msra.mxu0 0.0
    %2392 = vmatprep.subr.mxu0 0.0
    %2393 = vmatpush2.msra.mxu0 0.0
    %2394 = vmatprep.subr.mxu0 0.0
    %2395 = vmatpush2.msra.mxu0 0.0
    %2396 = vmatprep.subr.mxu0 0.0
    %2397 = vmatpush2.msra.mxu0 0.0
    %2398 = vmatprep.mubr.f32.mxu0 0.0
    %2399 = vmatmul.mubr.f32.gmra.mxu0 %v2134
    %v2400 = vpop.f32.mrf.mxu0
    %v2401 = vadd.f32 %v2326, %v2400
    %v2402 = vpop.f32.mrf.mxu0
    %2403 = vmatprep.mubr.f32.mxu0 0.0
    %2404 = vmatmul.mubr.f32.gmra.mxu0 %v2139
    %v2405 = vpop.f32.mrf.mxu0
    %v2406 = vadd.f32 %v2331, %v2405
    %v2407 = vpop.f32.mrf.mxu0
    %2408 = vdwg.mxu0
    %s2409 = scalar_lea.vmem [#allocation10], 32
    %v2410 = vld [vmem:[%s2409] sm:$0xff]
    %v2411 = vld [vmem:[%s2409 + $0x8] sm:$0xff]
    %v2413 = vsel %vm2060, %v2410, 0
    %v2416 = vsel %vm2060, %v2411, 0
    %2418 = vmatprep.subr.mxu0 0.0
    %2419 = vmatpush1.msra.mxu0 0.0
    %2420 = vmatprep.subr.mxu0 0.0
    %2421 = vmatpush1.msra.mxu0 0.0
    %2422 = vmatprep.subr.mxu0 0.0
    %2423 = vmatpush1.msra.mxu0 0.0
    %2424 = vmatprep.subr.mxu0 0.0
    %2425 = vmatpush1.msra.mxu0 0.0
    %2426 = vmatprep.subr.mxu0 0.0
    %2427 = vmatpush1.msra.mxu0 0.0
    %2428 = vmatprep.subr.mxu0 0.0
    %2429 = vmatpush1.msra.mxu0 0.0
    %2430 = vmatprep.subr.mxu0 0.0
    %2431 = vmatpush1.msra.mxu0 0.0
    %2432 = vmatprep.subr.mxu0 0.0
    %2433 = vmatpush1.msra.mxu0 0.0
    %2434 = vmatprep.subr.mxu0 0.0
    %2435 = vmatpush1.msra.mxu0 0.0
    %2436 = vmatprep.subr.mxu0 0.0
    %2437 = vmatpush1.msra.mxu0 0.0
    %2438 = vmatprep.subr.mxu0 0.0
    %2439 = vmatpush1.msra.mxu0 0.0
    %2440 = vmatprep.subr.mxu0 0.0
    %2441 = vmatpush1.msra.mxu0 0.0
    %2442 = vmatprep.subr.mxu0 0.0
    %2443 = vmatpush1.msra.mxu0 0.0
    %2444 = vmatprep.subr.mxu0 0.0
    %2445 = vmatpush1.msra.mxu0 0.0
    %2446 = vmatprep.subr.mxu0 0.0
    %2447 = vmatpush1.msra.mxu0 %v2057
    %2448 = vmatprep.subr.mxu0 0.0
    %2449 = vmatpush1.msra.mxu0 %v2056
    %2450 = vmatprep.subr.mxu0 0.0
    %2451 = vmatpush2.msra.mxu0 0.0
    %2452 = vmatprep.subr.mxu0 0.0
    %2453 = vmatpush2.msra.mxu0 0.0
    %2454 = vmatprep.subr.mxu0 0.0
    %2455 = vmatpush2.msra.mxu0 0.0
    %2456 = vmatprep.subr.mxu0 0.0
    %2457 = vmatpush2.msra.mxu0 0.0
    %2458 = vmatprep.subr.mxu0 0.0
    %2459 = vmatpush2.msra.mxu0 0.0
    %2460 = vmatprep.subr.mxu0 0.0
    %2461 = vmatpush2.msra.mxu0 0.0
    %2462 = vmatprep.subr.mxu0 0.0
    %2463 = vmatpush2.msra.mxu0 0.0
    %2464 = vmatprep.subr.mxu0 0.0
    %2465 = vmatpush2.msra.mxu0 0.0
    %2466 = vmatprep.subr.mxu0 0.0
    %2467 = vmatpush2.msra.mxu0 0.0
    %2468 = vmatprep.subr.mxu0 0.0
    %2469 = vmatpush2.msra.mxu0 0.0
    %2470 = vmatprep.subr.mxu0 0.0
    %2471 = vmatpush2.msra.mxu0 0.0
    %2472 = vmatprep.subr.mxu0 0.0
    %2473 = vmatpush2.msra.mxu0 0.0
    %2474 = vmatprep.subr.mxu0 0.0
    %2475 = vmatpush2.msra.mxu0 0.0
    %2476 = vmatprep.subr.mxu0 0.0
    %2477 = vmatpush2.msra.mxu0 0.0
    %2478 = vmatprep.subr.mxu0 0.0
    %2479 = vmatpush2.msra.mxu0 0.0
    %2480 = vmatprep.subr.mxu0 0.0
    %2481 = vmatpush2.msra.mxu0 0.0
    %2482 = vmatprep.mubr.f32.mxu0 0.0
    %2483 = vmatmul.mubr.f32.gmra.mxu0 %v2413
    %v2484 = vpop.f32.mrf.mxu0
    %v2485 = vadd.f32 0.0, %v2484
    %v2486 = vpop.f32.mrf.mxu0
    %2487 = vmatprep.mubr.f32.mxu0 0.0
    %2488 = vmatmul.mubr.f32.gmra.mxu0 %v2416
    %v2489 = vpop.f32.mrf.mxu0
    %v2490 = vadd.f32 0.0, %v2489
    %v2491 = vpop.f32.mrf.mxu0
    %2492 = vdwg.mxu0
    %s2493 = scalar_lea.vmem [#allocation12], 256
    %v2494 = vld [vmem:[%s2493] sm:$0xff]
    %v2495 = vld [vmem:[%s2493 + $0x8] sm:$0xff]
    %v2496 = vld [vmem:[%s2493 + $0x10] sm:$0xff]
    %v2497 = vld [vmem:[%s2493 + $0x18] sm:$0xff]
    %v2498 = vld [vmem:[%s2493 + $0x20] sm:$0xff]
    %v2499 = vld [vmem:[%s2493 + $0x28] sm:$0xff]
    %v2500 = vld [vmem:[%s2493 + $0x30] sm:$0xff]
    %v2501 = vld [vmem:[%s2493 + $0x38] sm:$0xff]
    %v2502 = vld [vmem:[%s2493 + $0x40] sm:$0xff]
    %v2503 = vld [vmem:[%s2493 + $0x48] sm:$0xff]
    %v2504 = vld [vmem:[%s2493 + $0x50] sm:$0xff]
    %v2505 = vld [vmem:[%s2493 + $0x58] sm:$0xff]
    %v2506 = vld [vmem:[%s2493 + $0x60] sm:$0xff]
    %v2507 = vld [vmem:[%s2493 + $0x68] sm:$0xff]
    %v2508 = vld [vmem:[%s2493 + $0x70] sm:$0xff]
    %v2509 = vld [vmem:[%s2493 + $0x78] sm:$0xff]
    %2510 = vmatprep.subr.mxu0 0.0
    %2511 = vmatpush1.msra.mxu0 %v2509
    %2512 = vmatprep.subr.mxu0 0.0
    %2513 = vmatpush1.msra.mxu0 %v2508
    %2514 = vmatprep.subr.mxu0 0.0
    %2515 = vmatpush1.msra.mxu0 %v2507
    %2516 = vmatprep.subr.mxu0 0.0
    %2517 = vmatpush1.msra.mxu0 %v2506
    %2518 = vmatprep.subr.mxu0 0.0
    %2519 = vmatpush1.msra.mxu0 %v2505
    %2520 = vmatprep.subr.mxu0 0.0
    %2521 = vmatpush1.msra.mxu0 %v2504
    %2522 = vmatprep.subr.mxu0 0.0
    %2523 = vmatpush1.msra.mxu0 %v2503
    %2524 = vmatprep.subr.mxu0 0.0
    %2525 = vmatpush1.msra.mxu0 %v2502
    %2526 = vmatprep.subr.mxu0 0.0
    %2527 = vmatpush1.msra.mxu0 %v2501
    %2528 = vmatprep.subr.mxu0 0.0
    %2529 = vmatpush1.msra.mxu0 %v2500
    %2530 = vmatprep.subr.mxu0 0.0
    %2531 = vmatpush1.msra.mxu0 %v2499
    %2532 = vmatprep.subr.mxu0 0.0
    %2533 = vmatpush1.msra.mxu0 %v2498
    %2534 = vmatprep.subr.mxu0 0.0
    %2535 = vmatpush1.msra.mxu0 %v2497
    %2536 = vmatprep.subr.mxu0 0.0
    %2537 = vmatpush1.msra.mxu0 %v2496
    %2538 = vmatprep.subr.mxu0 0.0
    %2539 = vmatpush1.msra.mxu0 %v2495
    %2540 = vmatprep.subr.mxu0 0.0
    %2541 = vmatpush1.msra.mxu0 %v2494
    %2542 = vmatprep.subr.mxu0 0.0
    %2543 = vmatpush2.msra.mxu0 0.0
    %2544 = vmatprep.subr.mxu0 0.0
    %2545 = vmatpush2.msra.mxu0 0.0
    %2546 = vmatprep.subr.mxu0 0.0
    %2547 = vmatpush2.msra.mxu0 0.0
    %2548 = vmatprep.subr.mxu0 0.0
    %2549 = vmatpush2.msra.mxu0 0.0
    %2550 = vmatprep.subr.mxu0 0.0
    %2551 = vmatpush2.msra.mxu0 0.0
    %2552 = vmatprep.subr.mxu0 0.0
    %2553 = vmatpush2.msra.mxu0 0.0
    %2554 = vmatprep.subr.mxu0 0.0
    %2555 = vmatpush2.msra.mxu0 0.0
    %2556 = vmatprep.subr.mxu0 0.0
    %2557 = vmatpush2.msra.mxu0 0.0
    %2558 = vmatprep.subr.mxu0 0.0
    %2559 = vmatpush2.msra.mxu0 0.0
    %2560 = vmatprep.subr.mxu0 0.0
    %2561 = vmatpush2.msra.mxu0 0.0
    %2562 = vmatprep.subr.mxu0 0.0
    %2563 = vmatpush2.msra.mxu0 0.0
    %2564 = vmatprep.subr.mxu0 0.0
    %2565 = vmatpush2.msra.mxu0 0.0
    %2566 = vmatprep.subr.mxu0 0.0
    %2567 = vmatpush2.msra.mxu0 0.0
    %2568 = vmatprep.subr.mxu0 0.0
    %2569 = vmatpush2.msra.mxu0 0.0
    %2570 = vmatprep.subr.mxu0 0.0
    %2571 = vmatpush2.msra.mxu0 0.0
    %2572 = vmatprep.subr.mxu0 0.0
    %2573 = vmatpush2.msra.mxu0 0.0
    %2574 = vmatprep.mubr.f32.mxu0 0.0
    %2575 = vmatmul.mubr.f32.gmra.mxu0 %v2485
    %v2576 = vpop.f32.mrf.mxu0
    %v2577 = vadd.f32 0.0, %v2576
    %v2578 = vpop.f32.mrf.mxu0
    %2579 = vmatprep.mubr.f32.mxu0 0.0
    %2580 = vmatmul.mubr.f32.gmra.mxu0 %v2490
    %v2581 = vpop.f32.mrf.mxu0
    %v2582 = vadd.f32 0.0, %v2581
    %v2583 = vpop.f32.mrf.mxu0
    %2584 = vdwg.mxu0
    %v2585 = vadd.f32 %v2401, %v2577
    %v2586 = vadd.f32 %v2406, %v2582
    %v2587 = vld [vmem:[#allocation13] sm:$0x1]
    %v2589 = vlaneseq
    %v2590 = vshrl.u32 %v2589, 7
    %v2591 = vsub.s32 0, %v2590
    %v2592 = vrot.slane %v2587, %v2591
    %v2594 = vadd.f32 %v2585, %v2592
    %v2595 = vadd.f32 %v2586, %v2592
    %v2596 = vmul.f32 %v2594, 0.5
    %v2597 = vmul.f32 %v2595, 0.5
    %v2598 = vmul.f32 %v2594, 0.70710677
    %v2599 = vmul.f32 %v2595, 0.70710677
    %v2600 = verf.f32.pop %v2598
    %v2601 = verf.f32.pop %v2599
    %v2602 = vadd.f32 %v2600, 1.0
    %v2603 = vadd.f32 %v2601, 1.0
    %v2604 = vmul.f32 %v2596, %v2602
    %v2605 = vmul.f32 %v2597, %v2603
    %v2606 = vld [vmem:[%s13] sm:$0xff]
    %v2608 = vsel %vm2060, %v2606, 0
    %2610 = vmatprep.subr.mxu0 0.0
    %2611 = vmatpush1.msra.mxu0 0.0
    %2612 = vmatprep.subr.mxu0 0.0
    %2613 = vmatpush1.msra.mxu0 0.0
    %2614 = vmatprep.subr.mxu0 0.0
    %2615 = vmatpush1.msra.mxu0 0.0
    %2616 = vmatprep.subr.mxu0 0.0
    %2617 = vmatpush1.msra.mxu0 0.0
    %2618 = vmatprep.subr.mxu0 0.0
    %2619 = vmatpush1.msra.mxu0 0.0
    %2620 = vmatprep.subr.mxu0 0.0
    %2621 = vmatpush1.msra.mxu0 0.0
    %2622 = vmatprep.subr.mxu0 0.0
    %2623 = vmatpush1.msra.mxu0 0.0
    %2624 = vmatprep.subr.mxu0 0.0
    %2625 = vmatpush1.msra.mxu0 0.0
    %2626 = vmatprep.subr.mxu0 0.0
    %2627 = vmatpush1.msra.mxu0 0.0
    %2628 = vmatprep.subr.mxu0 0.0
    %2629 = vmatpush1.msra.mxu0 0.0
    %2630 = vmatprep.subr.mxu0 0.0
    %2631 = vmatpush1.msra.mxu0 0.0
    %2632 = vmatprep.subr.mxu0 0.0
    %2633 = vmatpush1.msra.mxu0 0.0
    %2634 = vmatprep.subr.mxu0 0.0
    %2635 = vmatpush1.msra.mxu0 0.0
    %2636 = vmatprep.subr.mxu0 0.0
    %2637 = vmatpush1.msra.mxu0 0.0
    %2638 = vmatprep.subr.mxu0 0.0
    %2639 = vmatpush1.msra.mxu0 %v2605
    %2640 = vmatprep.subr.mxu0 0.0
    %2641 = vmatpush1.msra.mxu0 %v2604
    %2642 = vmatprep.subr.mxu0 0.0
    %2643 = vmatpush2.msra.mxu0 0.0
    %2644 = vmatprep.subr.mxu0 0.0
    %2645 = vmatpush2.msra.mxu0 0.0
    %2646 = vmatprep.subr.mxu0 0.0
    %2647 = vmatpush2.msra.mxu0 0.0
    %2648 = vmatprep.subr.mxu0 0.0
    %2649 = vmatpush2.msra.mxu0 0.0
    %2650 = vmatprep.subr.mxu0 0.0
    %2651 = vmatpush2.msra.mxu0 0.0
    %2652 = vmatprep.subr.mxu0 0.0
    %2653 = vmatpush2.msra.mxu0 0.0
    %2654 = vmatprep.subr.mxu0 0.0
    %2655 = vmatpush2.msra.mxu0 0.0
    %2656 = vmatprep.subr.mxu0 0.0
    %2657 = vmatpush2.msra.mxu0 0.0
    %2658 = vmatprep.subr.mxu0 0.0
    %2659 = vmatpush2.msra.mxu0 0.0
    %2660 = vmatprep.subr.mxu0 0.0
    %2661 = vmatpush2.msra.mxu0 0.0
    %2662 = vmatprep.subr.mxu0 0.0
    %2663 = vmatpush2.msra.mxu0 0.0
    %2664 = vmatprep.subr.mxu0 0.0
    %2665 = vmatpush2.msra.mxu0 0.0
    %2666 = vmatprep.subr.mxu0 0.0
    %2667 = vmatpush2.msra.mxu0 0.0
    %2668 = vmatprep.subr.mxu0 0.0
    %2669 = vmatpush2.msra.mxu0 0.0
    %2670 = vmatprep.subr.mxu0 0.0
    %2671 = vmatpush2.msra.mxu0 0.0
    %2672 = vmatprep.subr.mxu0 0.0
    %2673 = vmatpush2.msra.mxu0 0.0
    %2674 = vmatprep.mubr.f32.mxu0 0.0
    %2675 = vmatmul.mubr.f32.gmra.mxu0 %v2608
    %v2676 = vpop.f32.mrf.mxu0
    %v2677 = vadd.f32 0.0, %v2676
    %v2678 = vpop.f32.mrf.mxu0
    %2679 = vdwg.mxu0
    %v2680 = vld [vmem:[%s14] sm:$0xff]
    %v2681 = vld [vmem:[%s14 + $0x8] sm:$0xff]
    %v2682 = vld [vmem:[%s14 + $0x10] sm:$0xff]
    %v2683 = vld [vmem:[%s14 + $0x18] sm:$0xff]
    %v2684 = vld [vmem:[%s14 + $0x20] sm:$0xff]
    %v2685 = vld [vmem:[%s14 + $0x28] sm:$0xff]
    %v2686 = vld [vmem:[%s14 + $0x30] sm:$0xff]
    %v2687 = vld [vmem:[%s14 + $0x38] sm:$0xff]
    %v2688 = vld [vmem:[%s14 + $0x40] sm:$0xff]
    %v2689 = vld [vmem:[%s14 + $0x48] sm:$0xff]
    %v2690 = vld [vmem:[%s14 + $0x50] sm:$0xff]
    %v2691 = vld [vmem:[%s14 + $0x58] sm:$0xff]
    %v2692 = vld [vmem:[%s14 + $0x60] sm:$0xff]
    %v2693 = vld [vmem:[%s14 + $0x68] sm:$0xff]
    %v2694 = vld [vmem:[%s14 + $0x70] sm:$0xff]
    %v2695 = vld [vmem:[%s14 + $0x78] sm:$0xff]
    %s2696 = scalar_lea.vmem %s13, 8
    %v2697 = vld [vmem:[%s2696] sm:$0xff]
    %v2699 = vsel %vm2060, %v2697, 0
    %2701 = vmatprep.subr.mxu0 0.0
    %2702 = vmatpush1.msra.mxu0 0.0
    %2703 = vmatprep.subr.mxu0 0.0
    %2704 = vmatpush1.msra.mxu0 0.0
    %2705 = vmatprep.subr.mxu0 0.0
    %2706 = vmatpush1.msra.mxu0 0.0
    %2707 = vmatprep.subr.mxu0 0.0
    %2708 = vmatpush1.msra.mxu0 0.0
    %2709 = vmatprep.subr.mxu0 0.0
    %2710 = vmatpush1.msra.mxu0 0.0
    %2711 = vmatprep.subr.mxu0 0.0
    %2712 = vmatpush1.msra.mxu0 0.0
    %2713 = vmatprep.subr.mxu0 0.0
    %2714 = vmatpush1.msra.mxu0 0.0
    %2715 = vmatprep.subr.mxu0 0.0
    %2716 = vmatpush1.msra.mxu0 0.0
    %2717 = vmatprep.subr.mxu0 0.0
    %2718 = vmatpush1.msra.mxu0 0.0
    %2719 = vmatprep.subr.mxu0 0.0
    %2720 = vmatpush1.msra.mxu0 0.0
    %2721 = vmatprep.subr.mxu0 0.0
    %2722 = vmatpush1.msra.mxu0 0.0
    %2723 = vmatprep.subr.mxu0 0.0
    %2724 = vmatpush1.msra.mxu0 0.0
    %2725 = vmatprep.subr.mxu0 0.0
    %2726 = vmatpush1.msra.mxu0 0.0
    %2727 = vmatprep.subr.mxu0 0.0
    %2728 = vmatpush1.msra.mxu0 0.0
    %2729 = vmatprep.subr.mxu0 0.0
    %2730 = vmatpush1.msra.mxu0 %v2605
    %2731 = vmatprep.subr.mxu0 0.0
    %2732 = vmatpush1.msra.mxu0 %v2604
    %2733 = vmatprep.subr.mxu0 0.0
    %2734 = vmatpush2.msra.mxu0 0.0
    %2735 = vmatprep.subr.mxu0 0.0
    %2736 = vmatpush2.msra.mxu0 0.0
    %2737 = vmatprep.subr.mxu0 0.0
    %2738 = vmatpush2.msra.mxu0 0.0
    %2739 = vmatprep.subr.mxu0 0.0
    %2740 = vmatpush2.msra.mxu0 0.0
    %2741 = vmatprep.subr.mxu0 0.0
    %2742 = vmatpush2.msra.mxu0 0.0
    %2743 = vmatprep.subr.mxu0 0.0
    %2744 = vmatpush2.msra.mxu0 0.0
    %2745 = vmatprep.subr.mxu0 0.0
    %2746 = vmatpush2.msra.mxu0 0.0
    %2747 = vmatprep.subr.mxu0 0.0
    %2748 = vmatpush2.msra.mxu0 0.0
    %2749 = vmatprep.subr.mxu0 0.0
    %2750 = vmatpush2.msra.mxu0 0.0
    %2751 = vmatprep.subr.mxu0 0.0
    %2752 = vmatpush2.msra.mxu0 0.0
    %2753 = vmatprep.subr.mxu0 0.0
    %2754 = vmatpush2.msra.mxu0 0.0
    %2755 = vmatprep.subr.mxu0 0.0
    %2756 = vmatpush2.msra.mxu0 0.0
    %2757 = vmatprep.subr.mxu0 0.0
    %2758 = vmatpush2.msra.mxu0 0.0
    %2759 = vmatprep.subr.mxu0 0.0
    %2760 = vmatpush2.msra.mxu0 0.0
    %2761 = vmatprep.subr.mxu0 0.0
    %2762 = vmatpush2.msra.mxu0 0.0
    %2763 = vmatprep.subr.mxu0 0.0
    %2764 = vmatpush2.msra.mxu0 0.0
    %2765 = vmatprep.mubr.f32.mxu0 0.0
    %2766 = vmatmul.mubr.f32.gmra.mxu0 %v2699
    %v2767 = vpop.f32.mrf.mxu0
    %v2768 = vadd.f32 0.0, %v2767
    %v2769 = vpop.f32.mrf.mxu0
    %2770 = vdwg.mxu0
    %s2771 = scalar_lea.vmem %s14, 128
    %v2772 = vld [vmem:[%s2771] sm:$0xff]
    %v2773 = vld [vmem:[%s2771 + $0x8] sm:$0xff]
    %v2774 = vld [vmem:[%s2771 + $0x10] sm:$0xff]
    %v2775 = vld [vmem:[%s2771 + $0x18] sm:$0xff]
    %v2776 = vld [vmem:[%s2771 + $0x20] sm:$0xff]
    %v2777 = vld [vmem:[%s2771 + $0x28] sm:$0xff]
    %v2778 = vld [vmem:[%s2771 + $0x30] sm:$0xff]
    %v2779 = vld [vmem:[%s2771 + $0x38] sm:$0xff]
    %v2780 = vld [vmem:[%s2771 + $0x40] sm:$0xff]
    %v2781 = vld [vmem:[%s2771 + $0x48] sm:$0xff]
    %v2782 = vld [vmem:[%s2771 + $0x50] sm:$0xff]
    %v2783 = vld [vmem:[%s2771 + $0x58] sm:$0xff]
    %v2784 = vld [vmem:[%s2771 + $0x60] sm:$0xff]
    %v2785 = vld [vmem:[%s2771 + $0x68] sm:$0xff]
    %v2786 = vld [vmem:[%s2771 + $0x70] sm:$0xff]
    %v2787 = vld [vmem:[%s2771 + $0x78] sm:$0xff]
    %2788 = vmatprep.subr.mxu0 0.0
    %2789 = vmatpush1.msra.mxu0 %v2787
    %2790 = vmatprep.subr.mxu0 0.0
    %2791 = vmatpush1.msra.mxu0 %v2786
    %2792 = vmatprep.subr.mxu0 0.0
    %2793 = vmatpush1.msra.mxu0 %v2785
    %2794 = vmatprep.subr.mxu0 0.0
    %2795 = vmatpush1.msra.mxu0 %v2784
    %2796 = vmatprep.subr.mxu0 0.0
    %2797 = vmatpush1.msra.mxu0 %v2783
    %2798 = vmatprep.subr.mxu0 0.0
    %2799 = vmatpush1.msra.mxu0 %v2782
    %2800 = vmatprep.subr.mxu0 0.0
    %2801 = vmatpush1.msra.mxu0 %v2781
    %2802 = vmatprep.subr.mxu0 0.0
    %2803 = vmatpush1.msra.mxu0 %v2780
    %2804 = vmatprep.subr.mxu0 0.0
    %2805 = vmatpush1.msra.mxu0 %v2779
    %2806 = vmatprep.subr.mxu0 0.0
    %2807 = vmatpush1.msra.mxu0 %v2778
    %2808 = vmatprep.subr.mxu0 0.0
    %2809 = vmatpush1.msra.mxu0 %v2777
    %2810 = vmatprep.subr.mxu0 0.0
    %2811 = vmatpush1.msra.mxu0 %v2776
    %2812 = vmatprep.subr.mxu0 0.0
    %2813 = vmatpush1.msra.mxu0 %v2775
    %2814 = vmatprep.subr.mxu0 0.0
    %2815 = vmatpush1.msra.mxu0 %v2774
    %2816 = vmatprep.subr.mxu0 0.0
    %2817 = vmatpush1.msra.mxu0 %v2773
    %2818 = vmatprep.subr.mxu0 0.0
    %2819 = vmatpush1.msra.mxu0 %v2772
    %2820 = vmatprep.subr.mxu0 0.0
    %2821 = vmatpush2.msra.mxu0 0.0
    %2822 = vmatprep.subr.mxu0 0.0
    %2823 = vmatpush2.msra.mxu0 0.0
    %2824 = vmatprep.subr.mxu0 0.0
    %2825 = vmatpush2.msra.mxu0 0.0
    %2826 = vmatprep.subr.mxu0 0.0
    %2827 = vmatpush2.msra.mxu0 0.0
    %2828 = vmatprep.subr.mxu0 0.0
    %2829 = vmatpush2.msra.mxu0 0.0
    %2830 = vmatprep.subr.mxu0 0.0
    %2831 = vmatpush2.msra.mxu0 0.0
    %2832 = vmatprep.subr.mxu0 0.0
    %2833 = vmatpush2.msra.mxu0 0.0
    %2834 = vmatprep.subr.mxu0 0.0
    %2835 = vmatpush2.msra.mxu0 0.0
    %2836 = vmatprep.subr.mxu0 0.0
    %2837 = vmatpush2.msra.mxu0 0.0
    %2838 = vmatprep.subr.mxu0 0.0
    %2839 = vmatpush2.msra.mxu0 0.0
    %2840 = vmatprep.subr.mxu0 0.0
    %2841 = vmatpush2.msra.mxu0 0.0
    %2842 = vmatprep.subr.mxu0 0.0
    %2843 = vmatpush2.msra.mxu0 0.0
    %2844 = vmatprep.subr.mxu0 0.0
    %2845 = vmatpush2.msra.mxu0 0.0
    %2846 = vmatprep.subr.mxu0 0.0
    %2847 = vmatpush2.msra.mxu0 0.0
    %2848 = vmatprep.subr.mxu0 0.0
    %2849 = vmatpush2.msra.mxu0 0.0
    %2850 = vmatprep.subr.mxu0 0.0
    %2851 = vmatpush2.msra.mxu0 0.0
    %2852 = vmatprep.mubr.f32.mxu0 0.0
    %2853 = vmatmul.mubr.f32.gmra.mxu0 %v2768
    %v2854 = vpop.f32.mrf.mxu0
    %v2855 = vadd.f32 0.0, %v2854
    %v2856 = vpop.f32.mrf.mxu0
    %2857 = vdwg.mxu0
    %2858 = vmatprep.subr.mxu0 0.0
    %2859 = vmatpush1.msra.mxu0 %v2695
    %2860 = vmatprep.subr.mxu0 0.0
    %2861 = vmatpush1.msra.mxu0 %v2694
    %2862 = vmatprep.subr.mxu0 0.0
    %2863 = vmatpush1.msra.mxu0 %v2693
    %2864 = vmatprep.subr.mxu0 0.0
    %2865 = vmatpush1.msra.mxu0 %v2692
    %2866 = vmatprep.subr.mxu0 0.0
    %2867 = vmatpush1.msra.mxu0 %v2691
    %2868 = vmatprep.subr.mxu0 0.0
    %2869 = vmatpush1.msra.mxu0 %v2690
    %2870 = vmatprep.subr.mxu0 0.0
    %2871 = vmatpush1.msra.mxu0 %v2689
    %2872 = vmatprep.subr.mxu0 0.0
    %2873 = vmatpush1.msra.mxu0 %v2688
    %2874 = vmatprep.subr.mxu0 0.0
    %2875 = vmatpush1.msra.mxu0 %v2687
    %2876 = vmatprep.subr.mxu0 0.0
    %2877 = vmatpush1.msra.mxu0 %v2686
    %2878 = vmatprep.subr.mxu0 0.0
    %2879 = vmatpush1.msra.mxu0 %v2685
    %2880 = vmatprep.subr.mxu0 0.0
    %2881 = vmatpush1.msra.mxu0 %v2684
    %2882 = vmatprep.subr.mxu0 0.0
    %2883 = vmatpush1.msra.mxu0 %v2683
    %2884 = vmatprep.subr.mxu0 0.0
    %2885 = vmatpush1.msra.mxu0 %v2682
    %2886 = vmatprep.subr.mxu0 0.0
    %2887 = vmatpush1.msra.mxu0 %v2681
    %2888 = vmatprep.subr.mxu0 0.0
    %2889 = vmatpush1.msra.mxu0 %v2680
    %2890 = vmatprep.subr.mxu0 0.0
    %2891 = vmatpush2.msra.mxu0 0.0
    %2892 = vmatprep.subr.mxu0 0.0
    %2893 = vmatpush2.msra.mxu0 0.0
    %2894 = vmatprep.subr.mxu0 0.0
    %2895 = vmatpush2.msra.mxu0 0.0
    %2896 = vmatprep.subr.mxu0 0.0
    %2897 = vmatpush2.msra.mxu0 0.0
    %2898 = vmatprep.subr.mxu0 0.0
    %2899 = vmatpush2.msra.mxu0 0.0
    %2900 = vmatprep.subr.mxu0 0.0
    %2901 = vmatpush2.msra.mxu0 0.0
    %2902 = vmatprep.subr.mxu0 0.0
    %2903 = vmatpush2.msra.mxu0 0.0
    %2904 = vmatprep.subr.mxu0 0.0
    %2905 = vmatpush2.msra.mxu0 0.0
    %2906 = vmatprep.subr.mxu0 0.0
    %2907 = vmatpush2.msra.mxu0 0.0
    %2908 = vmatprep.subr.mxu0 0.0
    %2909 = vmatpush2.msra.mxu0 0.0
    %2910 = vmatprep.subr.mxu0 0.0
    %2911 = vmatpush2.msra.mxu0 0.0
    %2912 = vmatprep.subr.mxu0 0.0
    %2913 = vmatpush2.msra.mxu0 0.0
    %2914 = vmatprep.subr.mxu0 0.0
    %2915 = vmatpush2.msra.mxu0 0.0
    %2916 = vmatprep.subr.mxu0 0.0
    %2917 = vmatpush2.msra.mxu0 0.0
    %2918 = vmatprep.subr.mxu0 0.0
    %2919 = vmatpush2.msra.mxu0 0.0
    %2920 = vmatprep.subr.mxu0 0.0
    %2921 = vmatpush2.msra.mxu0 0.0
    %2922 = vmatprep.mubr.f32.mxu0 0.0
    %2923 = vmatmul.mubr.f32.gmra.mxu0 %v2677
    %v2924 = vpop.f32.mrf.mxu0
    %v2925 = vadd.f32 %v2855, %v2924
    %v2926 = vpop.f32.mrf.mxu0
    %2927 = vdwg.mxu0
    %s2928 = scalar_lea.vmem %s13, 16
    %v2929 = vld [vmem:[%s2928] sm:$0xff]
    %v2931 = vsel %vm2060, %v2929, 0
    %2933 = vmatprep.subr.mxu0 0.0
    %2934 = vmatpush1.msra.mxu0 0.0
    %2935 = vmatprep.subr.mxu0 0.0
    %2936 = vmatpush1.msra.mxu0 0.0
    %2937 = vmatprep.subr.mxu0 0.0
    %2938 = vmatpush1.msra.mxu0 0.0
    %2939 = vmatprep.subr.mxu0 0.0
    %2940 = vmatpush1.msra.mxu0 0.0
    %2941 = vmatprep.subr.mxu0 0.0
    %2942 = vmatpush1.msra.mxu0 0.0
    %2943 = vmatprep.subr.mxu0 0.0
    %2944 = vmatpush1.msra.mxu0 0.0
    %2945 = vmatprep.subr.mxu0 0.0
    %2946 = vmatpush1.msra.mxu0 0.0
    %2947 = vmatprep.subr.mxu0 0.0
    %2948 = vmatpush1.msra.mxu0 0.0
    %2949 = vmatprep.subr.mxu0 0.0
    %2950 = vmatpush1.msra.mxu0 0.0
    %2951 = vmatprep.subr.mxu0 0.0
    %2952 = vmatpush1.msra.mxu0 0.0
    %2953 = vmatprep.subr.mxu0 0.0
    %2954 = vmatpush1.msra.mxu0 0.0
    %2955 = vmatprep.subr.mxu0 0.0
    %2956 = vmatpush1.msra.mxu0 0.0
    %2957 = vmatprep.subr.mxu0 0.0
    %2958 = vmatpush1.msra.mxu0 0.0
    %2959 = vmatprep.subr.mxu0 0.0
    %2960 = vmatpush1.msra.mxu0 0.0
    %2961 = vmatprep.subr.mxu0 0.0
    %2962 = vmatpush1.msra.mxu0 %v2605
    %2963 = vmatprep.subr.mxu0 0.0
    %2964 = vmatpush1.msra.mxu0 %v2604
    %2965 = vmatprep.subr.mxu0 0.0
    %2966 = vmatpush2.msra.mxu0 0.0
    %2967 = vmatprep.subr.mxu0 0.0
    %2968 = vmatpush2.msra.mxu0 0.0
    %2969 = vmatprep.subr.mxu0 0.0
    %2970 = vmatpush2.msra.mxu0 0.0
    %2971 = vmatprep.subr.mxu0 0.0
    %2972 = vmatpush2.msra.mxu0 0.0
    %2973 = vmatprep.subr.mxu0 0.0
    %2974 = vmatpush2.msra.mxu0 0.0
    %2975 = vmatprep.subr.mxu0 0.0
    %2976 = vmatpush2.msra.mxu0 0.0
    %2977 = vmatprep.subr.mxu0 0.0
    %2978 = vmatpush2.msra.mxu0 0.0
    %2979 = vmatprep.subr.mxu0 0.0
    %2980 = vmatpush2.msra.mxu0 0.0
    %2981 = vmatprep.subr.mxu0 0.0
    %2982 = vmatpush2.msra.mxu0 0.0
    %2983 = vmatprep.subr.mxu0 0.0
    %2984 = vmatpush2.msra.mxu0 0.0
    %2985 = vmatprep.subr.mxu0 0.0
    %2986 = vmatpush2.msra.mxu0 0.0
    %2987 = vmatprep.subr.mxu0 0.0
    %2988 = vmatpush2.msra.mxu0 0.0
    %2989 = vmatprep.subr.mxu0 0.0
    %2990 = vmatpush2.msra.mxu0 0.0
    %2991 = vmatprep.subr.mxu0 0.0
    %2992 = vmatpush2.msra.mxu0 0.0
    %2993 = vmatprep.subr.mxu0 0.0
    %2994 = vmatpush2.msra.mxu0 0.0
    %2995 = vmatprep.subr.mxu0 0.0
    %2996 = vmatpush2.msra.mxu0 0.0
    %2997 = vmatprep.mubr.f32.mxu0 0.0
    %2998 = vmatmul.mubr.f32.gmra.mxu0 %v2931
    %v2999 = vpop.f32.mrf.mxu0
    %v3000 = vadd.f32 0.0, %v2999
    %v3001 = vpop.f32.mrf.mxu0
    %3002 = vdwg.mxu0
    %s3003 = scalar_lea.vmem %s14, 256
    %v3004 = vld [vmem:[%s3003] sm:$0xff]
    %v3005 = vld [vmem:[%s3003 + $0x8] sm:$0xff]
    %v3006 = vld [vmem:[%s3003 + $0x10] sm:$0xff]
    %v3007 = vld [vmem:[%s3003 + $0x18] sm:$0xff]
    %v3008 = vld [vmem:[%s3003 + $0x20] sm:$0xff]
    %v3009 = vld [vmem:[%s3003 + $0x28] sm:$0xff]
    %v3010 = vld [vmem:[%s3003 + $0x30] sm:$0xff]
    %v3011 = vld [vmem:[%s3003 + $0x38] sm:$0xff]
    %v3012 = vld [vmem:[%s3003 + $0x40] sm:$0xff]
    %v3013 = vld [vmem:[%s3003 + $0x48] sm:$0xff]
    %v3014 = vld [vmem:[%s3003 + $0x50] sm:$0xff]
    %v3015 = vld [vmem:[%s3003 + $0x58] sm:$0xff]
    %v3016 = vld [vmem:[%s3003 + $0x60] sm:$0xff]
    %v3017 = vld [vmem:[%s3003 + $0x68] sm:$0xff]
    %v3018 = vld [vmem:[%s3003 + $0x70] sm:$0xff]
    %v3019 = vld [vmem:[%s3003 + $0x78] sm:$0xff]
    %3020 = vmatprep.subr.mxu0 0.0
    %3021 = vmatpush1.msra.mxu0 %v3019
    %3022 = vmatprep.subr.mxu0 0.0
    %3023 = vmatpush1.msra.mxu0 %v3018
    %3024 = vmatprep.subr.mxu0 0.0
    %3025 = vmatpush1.msra.mxu0 %v3017
    %3026 = vmatprep.subr.mxu0 0.0
    %3027 = vmatpush1.msra.mxu0 %v3016
    %3028 = vmatprep.subr.mxu0 0.0
    %3029 = vmatpush1.msra.mxu0 %v3015
    %3030 = vmatprep.subr.mxu0 0.0
    %3031 = vmatpush1.msra.mxu0 %v3014
    %3032 = vmatprep.subr.mxu0 0.0
    %3033 = vmatpush1.msra.mxu0 %v3013
    %3034 = vmatprep.subr.mxu0 0.0
    %3035 = vmatpush1.msra.mxu0 %v3012
    %3036 = vmatprep.subr.mxu0 0.0
    %3037 = vmatpush1.msra.mxu0 %v3011
    %3038 = vmatprep.subr.mxu0 0.0
    %3039 = vmatpush1.msra.mxu0 %v3010
    %3040 = vmatprep.subr.mxu0 0.0
    %3041 = vmatpush1.msra.mxu0 %v3009
    %3042 = vmatprep.subr.mxu0 0.0
    %3043 = vmatpush1.msra.mxu0 %v3008
    %3044 = vmatprep.subr.mxu0 0.0
    %3045 = vmatpush1.msra.mxu0 %v3007
    %3046 = vmatprep.subr.mxu0 0.0
    %3047 = vmatpush1.msra.mxu0 %v3006
    %3048 = vmatprep.subr.mxu0 0.0
    %3049 = vmatpush1.msra.mxu0 %v3005
    %3050 = vmatprep.subr.mxu0 0.0
    %3051 = vmatpush1.msra.mxu0 %v3004
    %3052 = vmatprep.subr.mxu0 0.0
    %3053 = vmatpush2.msra.mxu0 0.0
    %3054 = vmatprep.subr.mxu0 0.0
    %3055 = vmatpush2.msra.mxu0 0.0
    %3056 = vmatprep.subr.mxu0 0.0
    %3057 = vmatpush2.msra.mxu0 0.0
    %3058 = vmatprep.subr.mxu0 0.0
    %3059 = vmatpush2.msra.mxu0 0.0
    %3060 = vmatprep.subr.mxu0 0.0
    %3061 = vmatpush2.msra.mxu0 0.0
    %3062 = vmatprep.subr.mxu0 0.0
    %3063 = vmatpush2.msra.mxu0 0.0
    %3064 = vmatprep.subr.mxu0 0.0
    %3065 = vmatpush2.msra.mxu0 0.0
    %3066 = vmatprep.subr.mxu0 0.0
    %3067 = vmatpush2.msra.mxu0 0.0
    %3068 = vmatprep.subr.mxu0 0.0
    %3069 = vmatpush2.msra.mxu0 0.0
    %3070 = vmatprep.subr.mxu0 0.0
    %3071 = vmatpush2.msra.mxu0 0.0
    %3072 = vmatprep.subr.mxu0 0.0
    %3073 = vmatpush2.msra.mxu0 0.0
    %3074 = vmatprep.subr.mxu0 0.0
    %3075 = vmatpush2.msra.mxu0 0.0
    %3076 = vmatprep.subr.mxu0 0.0
    %3077 = vmatpush2.msra.mxu0 0.0
    %3078 = vmatprep.subr.mxu0 0.0
    %3079 = vmatpush2.msra.mxu0 0.0
    %3080 = vmatprep.subr.mxu0 0.0
    %3081 = vmatpush2.msra.mxu0 0.0
    %3082 = vmatprep.subr.mxu0 0.0
    %3083 = vmatpush2.msra.mxu0 0.0
    %3084 = vmatprep.mubr.f32.mxu0 0.0
    %3085 = vmatmul.mubr.f32.gmra.mxu0 %v3000
    %v3086 = vpop.f32.mrf.mxu0
    %v3087 = vadd.f32 0.0, %v3086
    %v3088 = vpop.f32.mrf.mxu0
    %3089 = vdwg.mxu0
    %v3090 = vadd.f32 %v2925, %v3087
    %v3091 = vld [vmem:[%s15] sm:$0x1]
    %v3093 = vlaneseq
    %v3094 = vshrl.u32 %v3093, 7
    %v3095 = vsub.s32 0, %v3094
    %v3096 = vrot.slane %v3091, %v3095
    %v3098 = vadd.f32 %v3090, %v3096
    %v3099 = vmul.f32 %v3098, 0.5
    %v3100 = vmul.f32 %v3098, 0.70710677
    %v3101 = verf.f32.pop %v3100
    %v3102 = vadd.f32 %v3101, 1.0
    %v3103 = vmul.f32 %v3099, %v3102
    %v3104 = vld [vmem:[%s16] sm:$0x3]
    %vm3105 = vcmask 64512
    %v3107 = vsel %vm3105, %v3104, 0
    %3109 = vmatprep.subr.mxu0 0.0
    %3110 = vmatpush1.msra.mxu0 0.0
    %3111 = vmatprep.subr.mxu0 0.0
    %3112 = vmatpush1.msra.mxu0 0.0
    %3113 = vmatprep.subr.mxu0 0.0
    %3114 = vmatpush1.msra.mxu0 0.0
    %3115 = vmatprep.subr.mxu0 0.0
    %3116 = vmatpush1.msra.mxu0 0.0
    %3117 = vmatprep.subr.mxu0 0.0
    %3118 = vmatpush1.msra.mxu0 0.0
    %3119 = vmatprep.subr.mxu0 0.0
    %3120 = vmatpush1.msra.mxu0 0.0
    %3121 = vmatprep.subr.mxu0 0.0
    %3122 = vmatpush1.msra.mxu0 0.0
    %3123 = vmatprep.subr.mxu0 0.0
    %3124 = vmatpush1.msra.mxu0 0.0
    %3125 = vmatprep.subr.mxu0 0.0
    %3126 = vmatpush1.msra.mxu0 0.0
    %3127 = vmatprep.subr.mxu0 0.0
    %3128 = vmatpush1.msra.mxu0 0.0
    %3129 = vmatprep.subr.mxu0 0.0
    %3130 = vmatpush1.msra.mxu0 0.0
    %3131 = vmatprep.subr.mxu0 0.0
    %3132 = vmatpush1.msra.mxu0 0.0
    %3133 = vmatprep.subr.mxu0 0.0
    %3134 = vmatpush1.msra.mxu0 0.0
    %3135 = vmatprep.subr.mxu0 0.0
    %3136 = vmatpush1.msra.mxu0 0.0
    %3137 = vmatprep.subr.mxu0 0.0
    %3138 = vmatpush1.msra.mxu0 0.0
    %3139 = vmatprep.subr.mxu0 0.0
    %3140 = vmatpush1.msra.mxu0 %v3103
    %3141 = vmatprep.subr.mxu0 0.0
    %3142 = vmatpush2.msra.mxu0 0.0
    %3143 = vmatprep.subr.mxu0 0.0
    %3144 = vmatpush2.msra.mxu0 0.0
    %3145 = vmatprep.subr.mxu0 0.0
    %3146 = vmatpush2.msra.mxu0 0.0
    %3147 = vmatprep.subr.mxu0 0.0
    %3148 = vmatpush2.msra.mxu0 0.0
    %3149 = vmatprep.subr.mxu0 0.0
    %3150 = vmatpush2.msra.mxu0 0.0
    %3151 = vmatprep.subr.mxu0 0.0
    %3152 = vmatpush2.msra.mxu0 0.0
    %3153 = vmatprep.subr.mxu0 0.0
    %3154 = vmatpush2.msra.mxu0 0.0
    %3155 = vmatprep.subr.mxu0 0.0
    %3156 = vmatpush2.msra.mxu0 0.0
    %3157 = vmatprep.subr.mxu0 0.0
    %3158 = vmatpush2.msra.mxu0 0.0
    %3159 = vmatprep.subr.mxu0 0.0
    %3160 = vmatpush2.msra.mxu0 0.0
    %3161 = vmatprep.subr.mxu0 0.0
    %3162 = vmatpush2.msra.mxu0 0.0
    %3163 = vmatprep.subr.mxu0 0.0
    %3164 = vmatpush2.msra.mxu0 0.0
    %3165 = vmatprep.subr.mxu0 0.0
    %3166 = vmatpush2.msra.mxu0 0.0
    %3167 = vmatprep.subr.mxu0 0.0
    %3168 = vmatpush2.msra.mxu0 0.0
    %3169 = vmatprep.subr.mxu0 0.0
    %3170 = vmatpush2.msra.mxu0 0.0
    %3171 = vmatprep.subr.mxu0 0.0
    %3172 = vmatpush2.msra.mxu0 0.0
    %3173 = vmatprep.mubr.f32.mxu0 0.0
    %3174 = vmatmul.mubr.f32.gmra.mxu0 %v3107
    %v3175 = vpop.f32.mrf.mxu0
    %v3176 = vadd.f32 0.0, %v3175
    %v3177 = vpop.f32.mrf.mxu0
    %3178 = vdwg.mxu0
    %v3179 = vld [vmem:[%s17] sm:$0xff]
    %v3180 = vld [vmem:[%s17 + $0x8] sm:$0xff]
    %v3181 = vld [vmem:[%s17 + $0x10] sm:$0xff]
    %v3182 = vld [vmem:[%s17 + $0x18] sm:$0xff]
    %v3183 = vld [vmem:[%s17 + $0x20] sm:$0xff]
    %v3184 = vld [vmem:[%s17 + $0x28] sm:$0xff]
    %v3185 = vld [vmem:[%s17 + $0x30] sm:$0xff]
    %v3186 = vld [vmem:[%s17 + $0x38] sm:$0xff]
    %s3187 = scalar_lea.vmem %s16, 2
    %v3188 = vld [vmem:[%s3187] sm:$0x3]
    %v3190 = vsel %vm3105, %v3188, 0
    %3192 = vmatprep.subr.mxu0 0.0
    %3193 = vmatpush1.msra.mxu0 0.0
    %3194 = vmatprep.subr.mxu0 0.0
    %3195 = vmatpush1.msra.mxu0 0.0
    %3196 = vmatprep.subr.mxu0 0.0
    %3197 = vmatpush1.msra.mxu0 0.0
    %3198 = vmatprep.subr.mxu0 0.0
    %3199 = vmatpush1.msra.mxu0 0.0
    %3200 = vmatprep.subr.mxu0 0.0
    %3201 = vmatpush1.msra.mxu0 0.0
    %3202 = vmatprep.subr.mxu0 0.0
    %3203 = vmatpush1.msra.mxu0 0.0
    %3204 = vmatprep.subr.mxu0 0.0
    %3205 = vmatpush1.msra.mxu0 0.0
    %3206 = vmatprep.subr.mxu0 0.0
    %3207 = vmatpush1.msra.mxu0 0.0
    %3208 = vmatprep.subr.mxu0 0.0
    %3209 = vmatpush1.msra.mxu0 0.0
    %3210 = vmatprep.subr.mxu0 0.0
    %3211 = vmatpush1.msra.mxu0 0.0
    %3212 = vmatprep.subr.mxu0 0.0
    %3213 = vmatpush1.msra.mxu0 0.0
    %3214 = vmatprep.subr.mxu0 0.0
    %3215 = vmatpush1.msra.mxu0 0.0
    %3216 = vmatprep.subr.mxu0 0.0
    %3217 = vmatpush1.msra.mxu0 0.0
    %3218 = vmatprep.subr.mxu0 0.0
    %3219 = vmatpush1.msra.mxu0 0.0
    %3220 = vmatprep.subr.mxu0 0.0
    %3221 = vmatpush1.msra.mxu0 0.0
    %3222 = vmatprep.subr.mxu0 0.0
    %3223 = vmatpush1.msra.mxu0 %v3103
    %3224 = vmatprep.subr.mxu0 0.0
    %3225 = vmatpush2.msra.mxu0 0.0
    %3226 = vmatprep.subr.mxu0 0.0
    %3227 = vmatpush2.msra.mxu0 0.0
    %3228 = vmatprep.subr.mxu0 0.0
    %3229 = vmatpush2.msra.mxu0 0.0
    %3230 = vmatprep.subr.mxu0 0.0
    %3231 = vmatpush2.msra.mxu0 0.0
    %3232 = vmatprep.subr.mxu0 0.0
    %3233 = vmatpush2.msra.mxu0 0.0
    %3234 = vmatprep.subr.mxu0 0.0
    %3235 = vmatpush2.msra.mxu0 0.0
    %3236 = vmatprep.subr.mxu0 0.0
    %3237 = vmatpush2.msra.mxu0 0.0
    %3238 = vmatprep.subr.mxu0 0.0
    %3239 = vmatpush2.msra.mxu0 0.0
    %3240 = vmatprep.subr.mxu0 0.0
    %3241 = vmatpush2.msra.mxu0 0.0
    %3242 = vmatprep.subr.mxu0 0.0
    %3243 = vmatpush2.msra.mxu0 0.0
    %3244 = vmatprep.subr.mxu0 0.0
    %3245 = vmatpush2.msra.mxu0 0.0
    %3246 = vmatprep.subr.mxu0 0.0
    %3247 = vmatpush2.msra.mxu0 0.0
    %3248 = vmatprep.subr.mxu0 0.0
    %3249 = vmatpush2.msra.mxu0 0.0
    %3250 = vmatprep.subr.mxu0 0.0
    %3251 = vmatpush2.msra.mxu0 0.0
    %3252 = vmatprep.subr.mxu0 0.0
    %3253 = vmatpush2.msra.mxu0 0.0
    %3254 = vmatprep.subr.mxu0 0.0
    %3255 = vmatpush2.msra.mxu0 0.0
    %3256 = vmatprep.mubr.f32.mxu0 0.0
    %3257 = vmatmul.mubr.f32.gmra.mxu0 %v3190
    %v3258 = vpop.f32.mrf.mxu0
    %v3259 = vadd.f32 0.0, %v3258
    %v3260 = vpop.f32.mrf.mxu0
    %3261 = vdwg.mxu0
    %s3262 = scalar_lea.vmem %s17, 64
    %v3263 = vld [vmem:[%s3262] sm:$0xff]
    %v3264 = vld [vmem:[%s3262 + $0x8] sm:$0xff]
    %v3265 = vld [vmem:[%s3262 + $0x10] sm:$0xff]
    %v3266 = vld [vmem:[%s3262 + $0x18] sm:$0xff]
    %v3267 = vld [vmem:[%s3262 + $0x20] sm:$0xff]
    %v3268 = vld [vmem:[%s3262 + $0x28] sm:$0xff]
    %v3269 = vld [vmem:[%s3262 + $0x30] sm:$0xff]
    %v3270 = vld [vmem:[%s3262 + $0x38] sm:$0xff]
    %v3272 = vsel %vm223, %v3259, 0
    %3274 = vmatprep.subr.mxu0 0.0
    %3275 = vmatpush1.msra.mxu0 0.0
    %3276 = vmatprep.subr.mxu0 0.0
    %3277 = vmatpush1.msra.mxu0 0.0
    %3278 = vmatprep.subr.mxu0 0.0
    %3279 = vmatpush1.msra.mxu0 0.0
    %3280 = vmatprep.subr.mxu0 0.0
    %3281 = vmatpush1.msra.mxu0 0.0
    %3282 = vmatprep.subr.mxu0 0.0
    %3283 = vmatpush1.msra.mxu0 0.0
    %3284 = vmatprep.subr.mxu0 0.0
    %3285 = vmatpush1.msra.mxu0 0.0
    %3286 = vmatprep.subr.mxu0 0.0
    %3287 = vmatpush1.msra.mxu0 0.0
    %3288 = vmatprep.subr.mxu0 0.0
    %3289 = vmatpush1.msra.mxu0 0.0
    %3290 = vmatprep.subr.mxu0 0.0
    %3291 = vmatpush1.msra.mxu0 %v3270
    %3292 = vmatprep.subr.mxu0 0.0
    %3293 = vmatpush1.msra.mxu0 %v3269
    %3294 = vmatprep.subr.mxu0 0.0
    %3295 = vmatpush1.msra.mxu0 %v3268
    %3296 = vmatprep.subr.mxu0 0.0
    %3297 = vmatpush1.msra.mxu0 %v3267
    %3298 = vmatprep.subr.mxu0 0.0
    %3299 = vmatpush1.msra.mxu0 %v3266
    %3300 = vmatprep.subr.mxu0 0.0
    %3301 = vmatpush1.msra.mxu0 %v3265
    %3302 = vmatprep.subr.mxu0 0.0
    %3303 = vmatpush1.msra.mxu0 %v3264
    %3304 = vmatprep.subr.mxu0 0.0
    %3305 = vmatpush1.msra.mxu0 %v3263
    %3306 = vmatprep.subr.mxu0 0.0
    %3307 = vmatpush2.msra.mxu0 0.0
    %3308 = vmatprep.subr.mxu0 0.0
    %3309 = vmatpush2.msra.mxu0 0.0
    %3310 = vmatprep.subr.mxu0 0.0
    %3311 = vmatpush2.msra.mxu0 0.0
    %3312 = vmatprep.subr.mxu0 0.0
    %3313 = vmatpush2.msra.mxu0 0.0
    %3314 = vmatprep.subr.mxu0 0.0
    %3315 = vmatpush2.msra.mxu0 0.0
    %3316 = vmatprep.subr.mxu0 0.0
    %3317 = vmatpush2.msra.mxu0 0.0
    %3318 = vmatprep.subr.mxu0 0.0
    %3319 = vmatpush2.msra.mxu0 0.0
    %3320 = vmatprep.subr.mxu0 0.0
    %3321 = vmatpush2.msra.mxu0 0.0
    %3322 = vmatprep.subr.mxu0 0.0
    %3323 = vmatpush2.msra.mxu0 0.0
    %3324 = vmatprep.subr.mxu0 0.0
    %3325 = vmatpush2.msra.mxu0 0.0
    %3326 = vmatprep.subr.mxu0 0.0
    %3327 = vmatpush2.msra.mxu0 0.0
    %3328 = vmatprep.subr.mxu0 0.0
    %3329 = vmatpush2.msra.mxu0 0.0
    %3330 = vmatprep.subr.mxu0 0.0
    %3331 = vmatpush2.msra.mxu0 0.0
    %3332 = vmatprep.subr.mxu0 0.0
    %3333 = vmatpush2.msra.mxu0 0.0
    %3334 = vmatprep.subr.mxu0 0.0
    %3335 = vmatpush2.msra.mxu0 0.0
    %3336 = vmatprep.subr.mxu0 0.0
    %3337 = vmatpush2.msra.mxu0 0.0
    %3338 = vmatprep.mubr.f32.mxu0 0.0
    %3339 = vmatmul.mubr.f32.gmra.mxu0 %v3272
    %v3340 = vpop.f32.mrf.mxu0
    %v3341 = vadd.f32 0.0, %v3340
    %v3342 = vpop.f32.mrf.mxu0
    %3343 = vdwg.mxu0
    %v3345 = vsel %vm223, %v3176, 0
    %3347 = vmatprep.subr.mxu0 0.0
    %3348 = vmatpush1.msra.mxu0 0.0
    %3349 = vmatprep.subr.mxu0 0.0
    %3350 = vmatpush1.msra.mxu0 0.0
    %3351 = vmatprep.subr.mxu0 0.0
    %3352 = vmatpush1.msra.mxu0 0.0
    %3353 = vmatprep.subr.mxu0 0.0
    %3354 = vmatpush1.msra.mxu0 0.0
    %3355 = vmatprep.subr.mxu0 0.0
    %3356 = vmatpush1.msra.mxu0 0.0
    %3357 = vmatprep.subr.mxu0 0.0
    %3358 = vmatpush1.msra.mxu0 0.0
    %3359 = vmatprep.subr.mxu0 0.0
    %3360 = vmatpush1.msra.mxu0 0.0
    %3361 = vmatprep.subr.mxu0 0.0
    %3362 = vmatpush1.msra.mxu0 0.0
    %3363 = vmatprep.subr.mxu0 0.0
    %3364 = vmatpush1.msra.mxu0 %v3186
    %3365 = vmatprep.subr.mxu0 0.0
    %3366 = vmatpush1.msra.mxu0 %v3185
    %3367 = vmatprep.subr.mxu0 0.0
    %3368 = vmatpush1.msra.mxu0 %v3184
    %3369 = vmatprep.subr.mxu0 0.0
    %3370 = vmatpush1.msra.mxu0 %v3183
    %3371 = vmatprep.subr.mxu0 0.0
    %3372 = vmatpush1.msra.mxu0 %v3182
    %3373 = vmatprep.subr.mxu0 0.0
    %3374 = vmatpush1.msra.mxu0 %v3181
    %3375 = vmatprep.subr.mxu0 0.0
    %3376 = vmatpush1.msra.mxu0 %v3180
    %3377 = vmatprep.subr.mxu0 0.0
    %3378 = vmatpush1.msra.mxu0 %v3179
    %3379 = vmatprep.subr.mxu0 0.0
    %3380 = vmatpush2.msra.mxu0 0.0
    %3381 = vmatprep.subr.mxu0 0.0
    %3382 = vmatpush2.msra.mxu0 0.0
    %3383 = vmatprep.subr.mxu0 0.0
    %3384 = vmatpush2.msra.mxu0 0.0
    %3385 = vmatprep.subr.mxu0 0.0
    %3386 = vmatpush2.msra.mxu0 0.0
    %3387 = vmatprep.subr.mxu0 0.0
    %3388 = vmatpush2.msra.mxu0 0.0
    %3389 = vmatprep.subr.mxu0 0.0
    %3390 = vmatpush2.msra.mxu0 0.0
    %3391 = vmatprep.subr.mxu0 0.0
    %3392 = vmatpush2.msra.mxu0 0.0
    %3393 = vmatprep.subr.mxu0 0.0
    %3394 = vmatpush2.msra.mxu0 0.0
    %3395 = vmatprep.subr.mxu0 0.0
    %3396 = vmatpush2.msra.mxu0 0.0
    %3397 = vmatprep.subr.mxu0 0.0
    %3398 = vmatpush2.msra.mxu0 0.0
    %3399 = vmatprep.subr.mxu0 0.0
    %3400 = vmatpush2.msra.mxu0 0.0
    %3401 = vmatprep.subr.mxu0 0.0
    %3402 = vmatpush2.msra.mxu0 0.0
    %3403 = vmatprep.subr.mxu0 0.0
    %3404 = vmatpush2.msra.mxu0 0.0
    %3405 = vmatprep.subr.mxu0 0.0
    %3406 = vmatpush2.msra.mxu0 0.0
    %3407 = vmatprep.subr.mxu0 0.0
    %3408 = vmatpush2.msra.mxu0 0.0
    %3409 = vmatprep.subr.mxu0 0.0
    %3410 = vmatpush2.msra.mxu0 0.0
    %3411 = vmatprep.mubr.f32.mxu0 0.0
    %3412 = vmatmul.mubr.f32.gmra.mxu0 %v3345
    %v3413 = vpop.f32.mrf.mxu0
    %v3414 = vadd.f32 %v3341, %v3413
    %v3415 = vpop.f32.mrf.mxu0
    %3416 = vdwg.mxu0
    %s3417 = scalar_lea.vmem %s16, 4
    %v3418 = vld [vmem:[%s3417] sm:$0x3]
    %v3420 = vsel %vm3105, %v3418, 0
    %3422 = vmatprep.subr.mxu0 0.0
    %3423 = vmatpush1.msra.mxu0 0.0
    %3424 = vmatprep.subr.mxu0 0.0
    %3425 = vmatpush1.msra.mxu0 0.0
    %3426 = vmatprep.subr.mxu0 0.0
    %3427 = vmatpush1.msra.mxu0 0.0
    %3428 = vmatprep.subr.mxu0 0.0
    %3429 = vmatpush1.msra.mxu0 0.0
    %3430 = vmatprep.subr.mxu0 0.0
    %3431 = vmatpush1.msra.mxu0 0.0
    %3432 = vmatprep.subr.mxu0 0.0
    %3433 = vmatpush1.msra.mxu0 0.0
    %3434 = vmatprep.subr.mxu0 0.0
    %3435 = vmatpush1.msra.mxu0 0.0
    %3436 = vmatprep.subr.mxu0 0.0
    %3437 = vmatpush1.msra.mxu0 0.0
    %3438 = vmatprep.subr.mxu0 0.0
    %3439 = vmatpush1.msra.mxu0 0.0
    %3440 = vmatprep.subr.mxu0 0.0
    %3441 = vmatpush1.msra.mxu0 0.0
    %3442 = vmatprep.subr.mxu0 0.0
    %3443 = vmatpush1.msra.mxu0 0.0
    %3444 = vmatprep.subr.mxu0 0.0
    %3445 = vmatpush1.msra.mxu0 0.0
    %3446 = vmatprep.subr.mxu0 0.0
    %3447 = vmatpush1.msra.mxu0 0.0
    %3448 = vmatprep.subr.mxu0 0.0
    %3449 = vmatpush1.msra.mxu0 0.0
    %3450 = vmatprep.subr.mxu0 0.0
    %3451 = vmatpush1.msra.mxu0 0.0
    %3452 = vmatprep.subr.mxu0 0.0
    %3453 = vmatpush1.msra.mxu0 %v3103
    %3454 = vmatprep.subr.mxu0 0.0
    %3455 = vmatpush2.msra.mxu0 0.0
    %3456 = vmatprep.subr.mxu0 0.0
    %3457 = vmatpush2.msra.mxu0 0.0
    %3458 = vmatprep.subr.mxu0 0.0
    %3459 = vmatpush2.msra.mxu0 0.0
    %3460 = vmatprep.subr.mxu0 0.0
    %3461 = vmatpush2.msra.mxu0 0.0
    %3462 = vmatprep.subr.mxu0 0.0
    %3463 = vmatpush2.msra.mxu0 0.0
    %3464 = vmatprep.subr.mxu0 0.0
    %3465 = vmatpush2.msra.mxu0 0.0
    %3466 = vmatprep.subr.mxu0 0.0
    %3467 = vmatpush2.msra.mxu0 0.0
    %3468 = vmatprep.subr.mxu0 0.0
    %3469 = vmatpush2.msra.mxu0 0.0
    %3470 = vmatprep.subr.mxu0 0.0
    %3471 = vmatpush2.msra.mxu0 0.0
    %3472 = vmatprep.subr.mxu0 0.0
    %3473 = vmatpush2.msra.mxu0 0.0
    %3474 = vmatprep.subr.mxu0 0.0
    %3475 = vmatpush2.msra.mxu0 0.0
    %3476 = vmatprep.subr.mxu0 0.0
    %3477 = vmatpush2.msra.mxu0 0.0
    %3478 = vmatprep.subr.mxu0 0.0
    %3479 = vmatpush2.msra.mxu0 0.0
    %3480 = vmatprep.subr.mxu0 0.0
    %3481 = vmatpush2.msra.mxu0 0.0
    %3482 = vmatprep.subr.mxu0 0.0
    %3483 = vmatpush2.msra.mxu0 0.0
    %3484 = vmatprep.subr.mxu0 0.0
    %3485 = vmatpush2.msra.mxu0 0.0
    %3486 = vmatprep.mubr.f32.mxu0 0.0
    %3487 = vmatmul.mubr.f32.gmra.mxu0 %v3420
    %v3488 = vpop.f32.mrf.mxu0
    %v3489 = vadd.f32 0.0, %v3488
    %v3490 = vpop.f32.mrf.mxu0
    %3491 = vdwg.mxu0
    %s3492 = scalar_lea.vmem %s17, 128
    %v3493 = vld [vmem:[%s3492] sm:$0xff]
    %v3494 = vld [vmem:[%s3492 + $0x8] sm:$0xff]
    %v3495 = vld [vmem:[%s3492 + $0x10] sm:$0xff]
    %v3496 = vld [vmem:[%s3492 + $0x18] sm:$0xff]
    %v3497 = vld [vmem:[%s3492 + $0x20] sm:$0xff]
    %v3498 = vld [vmem:[%s3492 + $0x28] sm:$0xff]
    %v3499 = vld [vmem:[%s3492 + $0x30] sm:$0xff]
    %v3500 = vld [vmem:[%s3492 + $0x38] sm:$0xff]
    %v3502 = vsel %vm223, %v3489, 0
    %3504 = vmatprep.subr.mxu0 0.0
    %3505 = vmatpush1.msra.mxu0 0.0
    %3506 = vmatprep.subr.mxu0 0.0
    %3507 = vmatpush1.msra.mxu0 0.0
    %3508 = vmatprep.subr.mxu0 0.0
    %3509 = vmatpush1.msra.mxu0 0.0
    %3510 = vmatprep.subr.mxu0 0.0
    %3511 = vmatpush1.msra.mxu0 0.0
    %3512 = vmatprep.subr.mxu0 0.0
    %3513 = vmatpush1.msra.mxu0 0.0
    %3514 = vmatprep.subr.mxu0 0.0
    %3515 = vmatpush1.msra.mxu0 0.0
    %3516 = vmatprep.subr.mxu0 0.0
    %3517 = vmatpush1.msra.mxu0 0.0
    %3518 = vmatprep.subr.mxu0 0.0
    %3519 = vmatpush1.msra.mxu0 0.0
    %3520 = vmatprep.subr.mxu0 0.0
    %3521 = vmatpush1.msra.mxu0 %v3500
    %3522 = vmatprep.subr.mxu0 0.0
    %3523 = vmatpush1.msra.mxu0 %v3499
    %3524 = vmatprep.subr.mxu0 0.0
    %3525 = vmatpush1.msra.mxu0 %v3498
    %3526 = vmatprep.subr.mxu0 0.0
    %3527 = vmatpush1.msra.mxu0 %v3497
    %3528 = vmatprep.subr.mxu0 0.0
    %3529 = vmatpush1.msra.mxu0 %v3496
    %3530 = vmatprep.subr.mxu0 0.0
    %3531 = vmatpush1.msra.mxu0 %v3495
    %3532 = vmatprep.subr.mxu0 0.0
    %3533 = vmatpush1.msra.mxu0 %v3494
    %3534 = vmatprep.subr.mxu0 0.0
    %3535 = vmatpush1.msra.mxu0 %v3493
    %3536 = vmatprep.subr.mxu0 0.0
    %3537 = vmatpush2.msra.mxu0 0.0
    %3538 = vmatprep.subr.mxu0 0.0
    %3539 = vmatpush2.msra.mxu0 0.0
    %3540 = vmatprep.subr.mxu0 0.0
    %3541 = vmatpush2.msra.mxu0 0.0
    %3542 = vmatprep.subr.mxu0 0.0
    %3543 = vmatpush2.msra.mxu0 0.0
    %3544 = vmatprep.subr.mxu0 0.0
    %3545 = vmatpush2.msra.mxu0 0.0
    %3546 = vmatprep.subr.mxu0 0.0
    %3547 = vmatpush2.msra.mxu0 0.0
    %3548 = vmatprep.subr.mxu0 0.0
    %3549 = vmatpush2.msra.mxu0 0.0
    %3550 = vmatprep.subr.mxu0 0.0
    %3551 = vmatpush2.msra.mxu0 0.0
    %3552 = vmatprep.subr.mxu0 0.0
    %3553 = vmatpush2.msra.mxu0 0.0
    %3554 = vmatprep.subr.mxu0 0.0
    %3555 = vmatpush2.msra.mxu0 0.0
    %3556 = vmatprep.subr.mxu0 0.0
    %3557 = vmatpush2.msra.mxu0 0.0
    %3558 = vmatprep.subr.mxu0 0.0
    %3559 = vmatpush2.msra.mxu0 0.0
    %3560 = vmatprep.subr.mxu0 0.0
    %3561 = vmatpush2.msra.mxu0 0.0
    %3562 = vmatprep.subr.mxu0 0.0
    %3563 = vmatpush2.msra.mxu0 0.0
    %3564 = vmatprep.subr.mxu0 0.0
    %3565 = vmatpush2.msra.mxu0 0.0
    %3566 = vmatprep.subr.mxu0 0.0
    %3567 = vmatpush2.msra.mxu0 0.0
    %3568 = vmatprep.mubr.f32.mxu0 0.0
    %3569 = vmatmul.mubr.f32.gmra.mxu0 %v3502
    %v3570 = vpop.f32.mrf.mxu0
    %v3571 = vadd.f32 0.0, %v3570
    %v3572 = vpop.f32.mrf.mxu0
    %3573 = vdwg.mxu0
    %v3574 = vadd.f32 %v3414, %v3571
    %s3575 = scalar_lea.vmem %s16, 6
    %v3576 = vld [vmem:[%s3575] sm:$0x3]
    %v3578 = vsel %vm3105, %v3576, 0
    %3580 = vmatprep.subr.mxu0 0.0
    %3581 = vmatpush1.msra.mxu0 0.0
    %3582 = vmatprep.subr.mxu0 0.0
    %3583 = vmatpush1.msra.mxu0 0.0
    %3584 = vmatprep.subr.mxu0 0.0
    %3585 = vmatpush1.msra.mxu0 0.0
    %3586 = vmatprep.subr.mxu0 0.0
    %3587 = vmatpush1.msra.mxu0 0.0
    %3588 = vmatprep.subr.mxu0 0.0
    %3589 = vmatpush1.msra.mxu0 0.0
    %3590 = vmatprep.subr.mxu0 0.0
    %3591 = vmatpush1.msra.mxu0 0.0
    %3592 = vmatprep.subr.mxu0 0.0
    %3593 = vmatpush1.msra.mxu0 0.0
    %3594 = vmatprep.subr.mxu0 0.0
    %3595 = vmatpush1.msra.mxu0 0.0
    %3596 = vmatprep.subr.mxu0 0.0
    %3597 = vmatpush1.msra.mxu0 0.0
    %3598 = vmatprep.subr.mxu0 0.0
    %3599 = vmatpush1.msra.mxu0 0.0
    %3600 = vmatprep.subr.mxu0 0.0
    %3601 = vmatpush1.msra.mxu0 0.0
    %3602 = vmatprep.subr.mxu0 0.0
    %3603 = vmatpush1.msra.mxu0 0.0
    %3604 = vmatprep.subr.mxu0 0.0
    %3605 = vmatpush1.msra.mxu0 0.0
    %3606 = vmatprep.subr.mxu0 0.0
    %3607 = vmatpush1.msra.mxu0 0.0
    %3608 = vmatprep.subr.mxu0 0.0
    %3609 = vmatpush1.msra.mxu0 0.0
    %3610 = vmatprep.subr.mxu0 0.0
    %3611 = vmatpush1.msra.mxu0 %v3103
    %3612 = vmatprep.subr.mxu0 0.0
    %3613 = vmatpush2.msra.mxu0 0.0
    %3614 = vmatprep.subr.mxu0 0.0
    %3615 = vmatpush2.msra.mxu0 0.0
    %3616 = vmatprep.subr.mxu0 0.0
    %3617 = vmatpush2.msra.mxu0 0.0
    %3618 = vmatprep.subr.mxu0 0.0
    %3619 = vmatpush2.msra.mxu0 0.0
    %3620 = vmatprep.subr.mxu0 0.0
    %3621 = vmatpush2.msra.mxu0 0.0
    %3622 = vmatprep.subr.mxu0 0.0
    %3623 = vmatpush2.msra.mxu0 0.0
    %3624 = vmatprep.subr.mxu0 0.0
    %3625 = vmatpush2.msra.mxu0 0.0
    %3626 = vmatprep.subr.mxu0 0.0
    %3627 = vmatpush2.msra.mxu0 0.0
    %3628 = vmatprep.subr.mxu0 0.0
    %3629 = vmatpush2.msra.mxu0 0.0
    %3630 = vmatprep.subr.mxu0 0.0
    %3631 = vmatpush2.msra.mxu0 0.0
    %3632 = vmatprep.subr.mxu0 0.0
    %3633 = vmatpush2.msra.mxu0 0.0
    %3634 = vmatprep.subr.mxu0 0.0
    %3635 = vmatpush2.msra.mxu0 0.0
    %3636 = vmatprep.subr.mxu0 0.0
    %3637 = vmatpush2.msra.mxu0 0.0
    %3638 = vmatprep.subr.mxu0 0.0
    %3639 = vmatpush2.msra.mxu0 0.0
    %3640 = vmatprep.subr.mxu0 0.0
    %3641 = vmatpush2.msra.mxu0 0.0
    %3642 = vmatprep.subr.mxu0 0.0
    %3643 = vmatpush2.msra.mxu0 0.0
    %3644 = vmatprep.mubr.f32.mxu0 0.0
    %3645 = vmatmul.mubr.f32.gmra.mxu0 %v3578
    %v3646 = vpop.f32.mrf.mxu0
    %v3647 = vadd.f32 0.0, %v3646
    %v3648 = vpop.f32.mrf.mxu0
    %3649 = vdwg.mxu0
    %s3650 = scalar_lea.vmem %s17, 192
    %v3651 = vld [vmem:[%s3650] sm:$0xff]
    %v3652 = vld [vmem:[%s3650 + $0x8] sm:$0xff]
    %v3653 = vld [vmem:[%s3650 + $0x10] sm:$0xff]
    %v3654 = vld [vmem:[%s3650 + $0x18] sm:$0xff]
    %v3655 = vld [vmem:[%s3650 + $0x20] sm:$0xff]
    %v3656 = vld [vmem:[%s3650 + $0x28] sm:$0xff]
    %v3657 = vld [vmem:[%s3650 + $0x30] sm:$0xff]
    %v3658 = vld [vmem:[%s3650 + $0x38] sm:$0xff]
    %v3660 = vsel %vm223, %v3647, 0
    %3662 = vmatprep.subr.mxu0 0.0
    %3663 = vmatpush1.msra.mxu0 0.0
    %3664 = vmatprep.subr.mxu0 0.0
    %3665 = vmatpush1.msra.mxu0 0.0
    %3666 = vmatprep.subr.mxu0 0.0
    %3667 = vmatpush1.msra.mxu0 0.0
    %3668 = vmatprep.subr.mxu0 0.0
    %3669 = vmatpush1.msra.mxu0 0.0
    %3670 = vmatprep.subr.mxu0 0.0
    %3671 = vmatpush1.msra.mxu0 0.0
    %3672 = vmatprep.subr.mxu0 0.0
    %3673 = vmatpush1.msra.mxu0 0.0
    %3674 = vmatprep.subr.mxu0 0.0
    %3675 = vmatpush1.msra.mxu0 0.0
    %3676 = vmatprep.subr.mxu0 0.0
    %3677 = vmatpush1.msra.mxu0 0.0
    %3678 = vmatprep.subr.mxu0 0.0
    %3679 = vmatpush1.msra.mxu0 %v3658
    %3680 = vmatprep.subr.mxu0 0.0
    %3681 = vmatpush1.msra.mxu0 %v3657
    %3682 = vmatprep.subr.mxu0 0.0
    %3683 = vmatpush1.msra.mxu0 %v3656
    %3684 = vmatprep.subr.mxu0 0.0
    %3685 = vmatpush1.msra.mxu0 %v3655
    %3686 = vmatprep.subr.mxu0 0.0
    %3687 = vmatpush1.msra.mxu0 %v3654
    %3688 = vmatprep.subr.mxu0 0.0
    %3689 = vmatpush1.msra.mxu0 %v3653
    %3690 = vmatprep.subr.mxu0 0.0
    %3691 = vmatpush1.msra.mxu0 %v3652
    %3692 = vmatprep.subr.mxu0 0.0
    %3693 = vmatpush1.msra.mxu0 %v3651
    %3694 = vmatprep.subr.mxu0 0.0
    %3695 = vmatpush2.msra.mxu0 0.0
    %3696 = vmatprep.subr.mxu0 0.0
    %3697 = vmatpush2.msra.mxu0 0.0
    %3698 = vmatprep.subr.mxu0 0.0
    %3699 = vmatpush2.msra.mxu0 0.0
    %3700 = vmatprep.subr.mxu0 0.0
    %3701 = vmatpush2.msra.mxu0 0.0
    %3702 = vmatprep.subr.mxu0 0.0
    %3703 = vmatpush2.msra.mxu0 0.0
    %3704 = vmatprep.subr.mxu0 0.0
    %3705 = vmatpush2.msra.mxu0 0.0
    %3706 = vmatprep.subr.mxu0 0.0
    %3707 = vmatpush2.msra.mxu0 0.0
    %3708 = vmatprep.subr.mxu0 0.0
    %3709 = vmatpush2.msra.mxu0 0.0
    %3710 = vmatprep.subr.mxu0 0.0
    %3711 = vmatpush2.msra.mxu0 0.0
    %3712 = vmatprep.subr.mxu0 0.0
    %3713 = vmatpush2.msra.mxu0 0.0
    %3714 = vmatprep.subr.mxu0 0.0
    %3715 = vmatpush2.msra.mxu0 0.0
    %3716 = vmatprep.subr.mxu0 0.0
    %3717 = vmatpush2.msra.mxu0 0.0
    %3718 = vmatprep.subr.mxu0 0.0
    %3719 = vmatpush2.msra.mxu0 0.0
    %3720 = vmatprep.subr.mxu0 0.0
    %3721 = vmatpush2.msra.mxu0 0.0
    %3722 = vmatprep.subr.mxu0 0.0
    %3723 = vmatpush2.msra.mxu0 0.0
    %3724 = vmatprep.subr.mxu0 0.0
    %3725 = vmatpush2.msra.mxu0 0.0
    %3726 = vmatprep.mubr.f32.mxu0 0.0
    %3727 = vmatmul.mubr.f32.gmra.mxu0 %v3660
    %v3728 = vpop.f32.mrf.mxu0
    %v3729 = vadd.f32 0.0, %v3728
    %v3730 = vpop.f32.mrf.mxu0
    %3731 = vdwg.mxu0
    %v3732 = vadd.f32 %v3574, %v3729
    %v3733 = vld [vmem:[#allocation15] sm:$0x1]
    %v3735 = vlaneseq
    %v3736 = vshrl.u32 %v3735, 7
    %v3737 = vsub.s32 0, %v3736
    %v3738 = vrot.slane %v3733, %v3737
    %v3740 = vadd.f32 %v3732, %v3738
    %vm3741 = vcmask 74752
    %3742 = vst.msk [vmem:[%s19] sm:$0x3] %vm3741, %v3740
    // Predicated region
    $region114: #{cnn_encoder_forward.1} parent=1 // pred_check
      _
    $region115: #{cnn_encoder_forward.1} parent=1 // pred_check_branch
      %3744 = sbr.rel (0) target = $region117
    $region116: #{cnn_encoder_forward.1} parent=1 // pred_region
      _
    $region117: #{cnn_encoder_forward.1} parent=1 // pred_fallthru
      _
    // Predicated region
    $region118: #{cnn_encoder_forward.1} parent=1 // pred_check
      _
    $region119: #{cnn_encoder_forward.1} parent=1 // pred_check_branch
      %3746 = sbr.rel (0) target = $region121
    $region120: #{cnn_encoder_forward.1} parent=1 // pred_region
      _
    $region121: #{cnn_encoder_forward.1} parent=1 // pred_fallthru
      _
    %3747 = vsyncpa [#allocation3], 1
    %3748 = vsyncpa [#allocation5], 1
    %3749 = vsyncpa [#allocation8], 1
    %3750 = vsyncpa [#allocation11], 1
    %3751 = vsyncpa [#allocation14], 1

</llo_original>
